<compile_context>
chip_gen: v6e
topology: v6e:2x2x1
jax: 0.10.0
libtpu: 0.0.40
codegen_flags: <defaults>
</compile_context>

<pallas_src>
import functools

import jax
import jax.numpy as jnp
from jax.experimental import pallas as pl
from jax.experimental.pallas import tpu as pltpu


def _round_up(x, m):
    return ((x + m - 1) // m) * m


def _cdiv(a, b):
    return -(-a // b)


_POS_TARGET = 1024   # ~conv output positions per grid step (branch 1)
_ROW_TARGET = 2048   # rows per grid step (branch 2)


# ---------------------------------------------------------------------------
# Kernel 1: conv1 (3x3, stride 2) + ReLU + global-average-pool, im2col in VMEM
# ---------------------------------------------------------------------------
# Input x_ps[n, p, 2*rp+ph, q, c] = padded_x[n, 2p+rp, 2q+ph, c]  (zero padding
# of 2 on top/left, enough on bottom/right).  Output position (i, j) uses padded
# rows 2i+kh and padded cols 2j+kw, i.e. row pair p=i (rp=kh&1 / kh==2 -> pair
# i+1, rp=0) and col-phase ph=kw&1 at offset kw//2 within the phase.

def _conv_pool_kernel(xa_ref, xb_ref, w_ref, b_ref, o_ref, acc_ref, *,
                      ti, S_c, n_extra, inv_valid):
    r = pl.program_id(1)

    @pl.when(r == 0)
    def _():
        acc_ref[...] = jnp.zeros_like(acc_ref)

    # xa: ti row pairs of this tile; xb: the first row pair of the next tile
    # (needed only for the kh=2 taps of the tile's last output row).
    win = jnp.concatenate([xa_ref[...], xb_ref[...]], axis=0)  # (ti+1, 4, Wh, 128)

    acc = jnp.zeros((ti * S_c, 256), jnp.float32)
    for kh in range(3):
        r0, rp = ((0, 0), (0, 1), (1, 0))[kh]          # (pair offset, row parity)
        for kw in range(3):
            ph, c0 = kw % 2, kw // 2                   # (col phase, phase offset)
            tap = win[r0:r0 + ti, 2 * rp + ph, c0:c0 + S_c, :]   # (ti, S_c, 128)
            acc += jnp.dot(tap.reshape(ti * S_c, 128), w_ref[kh * 3 + kw],
                           preferred_element_type=jnp.float32)

    y = jnp.maximum(acc + b_ref[...], 0.0)             # conv1 + bias + ReLU (f32)
    acc_ref[...] += jnp.sum(y, axis=0, keepdims=True)  # pooled partial sum

    @pl.when(r == pl.num_programs(1) - 1)
    def _():
        # Padded (all-zero-input) positions each contributed exactly relu(bias);
        # subtract them analytically, then divide by the true S*S position count.
        corr = n_extra * jnp.maximum(b_ref[...], 0.0)
        o_ref[...] = (acc_ref[...] - corr) * inv_valid


def conv_pool(x_ps, params, *, S, S_c, ti, ntiles, S_pad):
    N, _, _, Wh, _ = x_ps.shape
    kernel = functools.partial(
        _conv_pool_kernel, ti=ti, S_c=S_c,
        n_extra=float(S_pad * S_c - S * S), inv_valid=1.0 / float(S * S))
    return pl.pallas_call(
        kernel,
        out_shape=jax.ShapeDtypeStruct((N, 1, 256), jnp.float32),
        grid=(N, ntiles),
        in_specs=[
            pl.BlockSpec((None, ti, 4, Wh, 128), lambda b, r: (b, r, 0, 0, 0)),
            pl.BlockSpec((None, 1, 4, Wh, 128),
                         lambda b, r: (b, (r + 1) * ti, 0, 0, 0)),
            pl.BlockSpec((9, 128, 256), lambda b, r: (0, 0, 0)),
            pl.BlockSpec((1, 256), lambda b, r: (0, 0)),
        ],
        out_specs=pl.BlockSpec((None, 1, 256), lambda b, r: (b, 0, 0)),
        scratch_shapes=[pltpu.VMEM((1, 256), jnp.float32)],
        compiler_params=pltpu.CompilerParams(
            dimension_semantics=("parallel", "arbitrary")),
    )(x_ps, x_ps, params["w_conv1"], params["b_conv1"])


# ---------------------------------------------------------------------------
# Kernel 1b: dense1 -> ReLU -> dense2 -> ReLU -> dense3 on the pooled (N, 256)
# ---------------------------------------------------------------------------

def _mlp_kernel(p_ref, w1_ref, b1_ref, w2_ref, b2_ref, w3_ref, b3_ref, o_ref):
    h = jnp.dot(p_ref[...].astype(jnp.bfloat16), w1_ref[...],
                preferred_element_type=jnp.float32)
    h = jnp.maximum(h + b1_ref[...], 0.0)
    h = jnp.dot(h.astype(jnp.bfloat16), w2_ref[...],
                preferred_element_type=jnp.float32)
    h = jnp.maximum(h + b2_ref[...], 0.0)
    h = jnp.dot(h.astype(jnp.bfloat16), w3_ref[...],
                preferred_element_type=jnp.float32)
    o_ref[...] = h + b3_ref[...]                        # no ReLU after dense3


def dense_mlp(pooled, params):
    N = pooled.shape[0]
    N8 = _round_up(N, 8)
    if N8 != N:
        pooled = jnp.pad(pooled, ((0, N8 - N), (0, 0)))
    out = pl.pallas_call(
        _mlp_kernel,
        out_shape=jax.ShapeDtypeStruct((N8, 256), jnp.float32),
    )(pooled, params["w_d1"], params["b_d1"], params["w_d2"], params["b_d2"],
      params["w_d3"], params["b_d3"])
    return out[:N]


# ---------------------------------------------------------------------------
# Kernel 2: conv2 (1x1, 128->256)+ReLU -> * t[batch] -> conv3 (1x1, 256->128)+ReLU
# ---------------------------------------------------------------------------

def _scale_conv_kernel(t_ref, x_ref, w2_ref, b2_ref, w3_ref, b3_ref, o_ref):
    h = jnp.dot(x_ref[...], w2_ref[...], preferred_element_type=jnp.float32)
    h = jnp.maximum(h + b2_ref[...], 0.0)               # conv_func2 + ReLU
    h = h * t_ref[...]                                  # per-batch channel scale
    y = jnp.dot(h.astype(jnp.bfloat16), w3_ref[...],
                preferred_element_type=jnp.float32)
    o_ref[...] = jnp.maximum(y + b3_ref[...], 0.0).astype(o_ref.dtype)


def fused_scale_conv(t, x_rows, r_tile, params):
    N, rows_pad, _ = x_rows.shape

    def full(a):
        return pl.BlockSpec(a.shape, lambda b, r: (0,) * a.ndim)

    return pl.pallas_call(
        _scale_conv_kernel,
        out_shape=jax.ShapeDtypeStruct((N, rows_pad, 128), jnp.bfloat16),
        grid=(N, rows_pad // r_tile),
        in_specs=[
            pl.BlockSpec((None, 1, 256), lambda b, r: (b, 0, 0)),
            pl.BlockSpec((None, r_tile, 128), lambda b, r: (b, r, 0)),
            full(params["w_conv2"]), full(params["b_conv2"]),
            full(params["w_conv3"]), full(params["b_conv3"]),
        ],
        out_specs=pl.BlockSpec((None, r_tile, 128), lambda b, r: (b, r, 0)),
        compiler_params=pltpu.CompilerParams(
            dimension_semantics=("parallel", "parallel")),
    )(t, x_rows, params["w_conv2"], params["b_conv2"],
      params["w_conv3"], params["b_conv3"])


# ---------------------------------------------------------------------------
# JAX glue: layout, padded/phase-split view, tile selection, parameters
# ---------------------------------------------------------------------------

def init_params(key):
    """Deterministic synthetic parameters matching the module's shapes.
    Matmul weights in bf16 (f32 MXU accumulation in-kernel); biases f32.
    Mapping from real PyTorch weights: Conv2d OIHW -> (kh,kw,in,out) -> (9,in,out)
    for conv1, (in,out) for 1x1 convs; nn.Linear weight (out,in) -> transpose."""
    ks = jax.random.split(key, 12)

    def w(k, shape, fan_in, dtype=jnp.bfloat16):
        v = jax.random.normal(k, shape, jnp.float32) * (1.0 / jnp.sqrt(fan_in))
        return v.astype(dtype)

    p = {}
    p["w_conv1"] = w(ks[0], (3, 3, 128, 256), 9 * 128).reshape(9, 128, 256)
    p["b_conv1"] = w(ks[1], (1, 256), 9 * 128, jnp.float32)
    p["w_d1"] = w(ks[2], (256, 1024), 256)
    p["b_d1"] = w(ks[3], (1, 1024), 256, jnp.float32)
    p["w_d2"] = w(ks[4], (1024, 512), 1024)
    p["b_d2"] = w(ks[5], (1, 512), 1024, jnp.float32)
    p["w_d3"] = w(ks[6], (512, 256), 512)
    p["b_d3"] = w(ks[7], (1, 256), 512, jnp.float32)
    p["w_conv2"] = w(ks[8], (128, 256), 128)
    p["b_conv2"] = w(ks[9], (1, 256), 128, jnp.float32)
    p["w_conv3"] = w(ks[10], (256, 128), 256)
    p["b_conv3"] = w(ks[11], (1, 128), 256, jnp.float32)
    return p


def global_block_forward(params, x_nchw):
    N, C, H, W = x_nchw.shape
    assert C == 128 and H == W and H % 2 == 0, \
        "module assumes 128 channels, even square spatial"
    x = jnp.transpose(x_nchw, (0, 2, 3, 1)).astype(jnp.bfloat16)   # NHWC, bf16

    # ---- Branch 1: pad + conv3x3/s2 + relu -> global avg pool -> dense1..3 ----
    S = (H + 2) // 2                       # conv1 output spatial (== module's size)
    S_c = _round_up(S, 8)                  # computed output cols (extras corrected)
    ntiles = _cdiv(S, max(1, _POS_TARGET // S_c))
    ti = _cdiv(S, ntiles)                  # output rows per grid step
    S_pad = ti * ntiles                    # computed output rows (extras corrected)
    P2 = S_pad + 1                         # padded-input row pairs
    Wh = S_c + 1                           # cols per column phase

    # Zero-padded (2 top/left, >=2 bottom/right), column-phase-split, row-paired
    # view of x; a single XLA fusion, read once by the conv kernel. No HBM im2col.
    xp = jnp.pad(x, ((0, 0), (2, 2 * S_pad - H), (2, 2 * S_c - W), (0, 0)))
    x_ps = jnp.stack([xp[:, :, 0::2, :], xp[:, :, 1::2, :]], axis=2)
    x_ps = x_ps.reshape(N, P2, 4, Wh, 128)              # [n, pair, 2*rp+ph, q, c]

    pooled = conv_pool(x_ps, params, S=S, S_c=S_c, ti=ti,
                       ntiles=ntiles, S_pad=S_pad)       # (N, 1, 256) f32
    t = dense_mlp(pooled.reshape(N, 256), params)        # (N, 256) f32
    t = t.reshape(N, 1, 256)

    # ---- Branch 2: conv2(1x1)+relu -> * t -> conv3(1x1)+relu, fully fused ----
    rows = H * W
    n_rt = _cdiv(rows, _ROW_TARGET)
    r_tile = _round_up(_cdiv(rows, n_rt), 16)
    rows_pad = r_tile * n_rt
    x_rows = x.reshape(N, rows, 128)
    if rows_pad != rows:
        x_rows = jnp.pad(x_rows, ((0, 0), (0, rows_pad - rows), (0, 0)))
    out = fused_scale_conv(t, x_rows, r_tile, params)    # (N, rows_pad, 128) bf16
    out = out[:, :rows, :].reshape(N, H, W, 128)
    return jnp.transpose(out, (0, 3, 1, 2)).astype(jnp.float32)   # NHWC -> NCHW


# ---------------------------------------------------------------------------

if __name__ == "__main__":
    key = jax.random.PRNGKey(0)
    k_x, k_p = jax.random.split(key)

    # Input spatial size 8 -> global_block(8): size = (8+2)//2 = 5, conv1 out 5x5.
    # (channels=128 is hard-wired by the module.)
    x = jax.random.normal(k_x, (2, 128, 8, 8), jnp.float32)
    params = init_params(k_p)

    fwd = jax.jit(global_block_forward)
    out = jax.block_until_ready(fwd(params, x))

    assert out.shape == (2, 128, 8, 8), out.shape
    assert out.dtype == jnp.float32
    assert bool(jnp.all(jnp.isfinite(out)))
    print("KERNEL_OK")
</pallas_src>

<mosaic_0001>
module attributes {stable_mosaic.version = 11 : i64} {
  func.func @_mlp_kernel(%arg0: memref<8x256xf32, #tpu.memory_space<vmem>>, %arg1: memref<256x1024xbf16, #tpu.memory_space<vmem>>, %arg2: memref<1x1024xf32, #tpu.memory_space<vmem>>, %arg3: memref<1024x512xbf16, #tpu.memory_space<vmem>>, %arg4: memref<1x512xf32, #tpu.memory_space<vmem>>, %arg5: memref<512x256xbf16, #tpu.memory_space<vmem>>, %arg6: memref<1x256xf32, #tpu.memory_space<vmem>>, %arg7: memref<8x256xf32, #tpu.memory_space<vmem>>) attributes {dimension_semantics = [], scalar_prefetch = 0 : i64, scratch_operands = 0 : i64, tpu.core_type = #tpu.core_type<tc>} {
    %c0 = arith.constant 0 : index
    %c0_0 = arith.constant 0 : index
    %0 = vector.load %arg0[%c0, %c0_0] : memref<8x256xf32, #tpu.memory_space<vmem>>, vector<8x256xf32>
    %1 = arith.truncf %0 : vector<8x256xf32> to vector<8x256xbf16>
    %c0_1 = arith.constant 0 : index
    %c0_2 = arith.constant 0 : index
    %2 = vector.load %arg1[%c0_1, %c0_2] : memref<256x1024xbf16, #tpu.memory_space<vmem>>, vector<256x1024xbf16>
    %cst = arith.constant dense<0.000000e+00> : vector<8x1024xf32>
    %3 = tpu.matmul %1, %2, %cst {dimension_numbers = #tpu.dot_dimension_numbers<[1], [0], [0], [1], [0, 0, 1, 1], [], []>} : vector<8x256xbf16>, vector<256x1024xbf16>, vector<8x1024xf32> -> vector<8x1024xf32>
    %c0_3 = arith.constant 0 : index
    %c0_4 = arith.constant 0 : index
    %4 = vector.load %arg2[%c0_3, %c0_4] : memref<1x1024xf32, #tpu.memory_space<vmem>>, vector<1x1024xf32>
    %5 = vector.broadcast %4 : vector<1x1024xf32> to vector<8x1024xf32>
    %6 = arith.addf %3, %5 : vector<8x1024xf32>
    %cst_5 = arith.constant 0.000000e+00 : f32
    %7 = vector.broadcast %cst_5 : f32 to vector<8x1024xf32>
    %8 = arith.maximumf %6, %7 : vector<8x1024xf32>
    %9 = arith.truncf %8 : vector<8x1024xf32> to vector<8x1024xbf16>
    %c0_6 = arith.constant 0 : index
    %c0_7 = arith.constant 0 : index
    %10 = vector.load %arg3[%c0_6, %c0_7] : memref<1024x512xbf16, #tpu.memory_space<vmem>>, vector<1024x512xbf16>
    %cst_8 = arith.constant dense<0.000000e+00> : vector<8x512xf32>
    %11 = tpu.matmul %9, %10, %cst_8 {dimension_numbers = #tpu.dot_dimension_numbers<[1], [0], [0], [1], [0, 0, 1, 1], [], []>} : vector<8x1024xbf16>, vector<1024x512xbf16>, vector<8x512xf32> -> vector<8x512xf32>
    %c0_9 = arith.constant 0 : index
    %c0_10 = arith.constant 0 : index
    %12 = vector.load %arg4[%c0_9, %c0_10] : memref<1x512xf32, #tpu.memory_space<vmem>>, vector<1x512xf32>
    %13 = vector.broadcast %12 : vector<1x512xf32> to vector<8x512xf32>
    %14 = arith.addf %11, %13 : vector<8x512xf32>
    %cst_11 = arith.constant 0.000000e+00 : f32
    %15 = vector.broadcast %cst_11 : f32 to vector<8x512xf32>
    %16 = arith.maximumf %14, %15 : vector<8x512xf32>
    %17 = arith.truncf %16 : vector<8x512xf32> to vector<8x512xbf16>
    %c0_12 = arith.constant 0 : index
    %c0_13 = arith.constant 0 : index
    %18 = vector.load %arg5[%c0_12, %c0_13] : memref<512x256xbf16, #tpu.memory_space<vmem>>, vector<512x256xbf16>
    %cst_14 = arith.constant dense<0.000000e+00> : vector<8x256xf32>
    %19 = tpu.matmul %17, %18, %cst_14 {dimension_numbers = #tpu.dot_dimension_numbers<[1], [0], [0], [1], [0, 0, 1, 1], [], []>} : vector<8x512xbf16>, vector<512x256xbf16>, vector<8x256xf32> -> vector<8x256xf32>
    %c0_15 = arith.constant 0 : index
    %c0_16 = arith.constant 0 : index
    %20 = vector.load %arg6[%c0_15, %c0_16] : memref<1x256xf32, #tpu.memory_space<vmem>>, vector<1x256xf32>
    %21 = vector.broadcast %20 : vector<1x256xf32> to vector<8x256xf32>
    %22 = arith.addf %19, %21 : vector<8x256xf32>
    %c0_17 = arith.constant 0 : index
    %c0_18 = arith.constant 0 : index
    %23 = vector.load %arg7[%c0_17, %c0_18] : memref<8x256xf32, #tpu.memory_space<vmem>>, vector<8x256xf32>
    tpu.vector_store %arg7[%c0_17, %c0_18], %22 {strides = array<i32>} : memref<8x256xf32, #tpu.memory_space<vmem>>, vector<8x256xf32>,
    return
  }
}

module attributes {stable_mosaic.version = 11 : i64} {
  func.func @_conv_pool_kernel(%arg0: i32, %arg1: i32, %arg2: memref<1x5x4x9x128xbf16, #tpu.memory_space<vmem>>, %arg3: memref<1x1x4x9x128xbf16, #tpu.memory_space<vmem>>, %arg4: memref<9x128x256xbf16, #tpu.memory_space<vmem>>, %arg5: memref<1x256xf32, #tpu.memory_space<vmem>>, %arg6: memref<1x1x256xf32, #tpu.memory_space<vmem>>, %arg7: memref<1x256xf32, #tpu.memory_space<vmem>>) attributes {dimension_semantics = [#tpu.dimension_semantics<parallel>, #tpu.dimension_semantics<arbitrary>], iteration_bounds = array<i64: 2, 1>, scalar_prefetch = 0 : i64, scratch_operands = 1 : i64, tpu.core_type = #tpu.core_type<tc>, window_params = [{transform_indices = @transform_0, window_bounds = array<i64: 1, 5, 4, 9, 128>}, {transform_indices = @transform_1, window_bounds = array<i64: 1, 1, 4, 9, 128>}, {pipeline_mode = #tpu.pipeline_mode<synchronous>, transform_indices = @transform_2, window_bounds = array<i64: 9, 128, 256>}, {pipeline_mode = #tpu.pipeline_mode<synchronous>, transform_indices = @transform_3, window_bounds = array<i64: 1, 256>}, {transform_indices = @transform_4, window_bounds = array<i64: 1, 1, 256>}]} {
    %c0_i32 = arith.constant 0 : i32
    %0 = arith.cmpi eq, %arg1, %c0_i32 : i32
    %1 = arith.extui %0 : i1 to i32
    %c0_i32_0 = arith.constant 0 : i32
    %2 = arith.cmpi ne, %1, %c0_i32_0 : i32
    scf.if %2 {
      %cst_48 = arith.constant 0.000000e+00 : f32
      %85 = vector.broadcast %cst_48 : f32 to vector<1x256xf32>
      %c0_49 = arith.constant 0 : index
      %c0_50 = arith.constant 0 : index
      %86 = vector.load %arg7[%c0_49, %c0_50] : memref<1x256xf32, #tpu.memory_space<vmem>>, vector<1x256xf32>
      tpu.vector_store %arg7[%c0_49, %c0_50], %85 {strides = array<i32>} : memref<1x256xf32, #tpu.memory_space<vmem>>, vector<1x256xf32>,
    } else {
    }
    %c0 = arith.constant 0 : index
    %c0_1 = arith.constant 0 : index
    %c0_2 = arith.constant 0 : index
    %c0_3 = arith.constant 0 : index
    %c0_4 = arith.constant 0 : index
    %3 = vector.load %arg2[%c0, %c0_1, %c0_2, %c0_3, %c0_4] : memref<1x5x4x9x128xbf16, #tpu.memory_space<vmem>>, vector<1x5x4x9x128xbf16>
    %4 = vector.shape_cast %3 : vector<1x5x4x9x128xbf16> to vector<5x4x9x128xbf16>
    %c0_5 = arith.constant 0 : index
    %c0_6 = arith.constant 0 : index
    %c0_7 = arith.constant 0 : index
    %c0_8 = arith.constant 0 : index
    %c0_9 = arith.constant 0 : index
    %5 = vector.load %arg3[%c0_5, %c0_6, %c0_7, %c0_8, %c0_9] : memref<1x1x4x9x128xbf16, #tpu.memory_space<vmem>>, vector<1x1x4x9x128xbf16>
    %6 = vector.shape_cast %5 : vector<1x1x4x9x128xbf16> to vector<1x4x9x128xbf16>
    %7 = tpu.concatenate %4, %6 in 0 : vector<5x4x9x128xbf16>, vector<1x4x9x128xbf16> -> vector<6x4x9x128xbf16>
    %cst = arith.constant 0.000000e+00 : f32
    %8 = vector.broadcast %cst : f32 to vector<40x256xf32>
    %9 = vector.extract_strided_slice %7 {offsets = [0, 0, 0, 0], sizes = [5, 1, 8, 128], strides = [1, 1, 1, 1]} : vector<6x4x9x128xbf16> to vector<5x1x8x128xbf16>
    %10 = vector.shape_cast %9 : vector<5x1x8x128xbf16> to vector<5x8x128xbf16>
    %11 = vector.shape_cast %10 : vector<5x8x128xbf16> to vector<40x128xbf16>
    %c0_10 = arith.constant 0 : index
    %c0_11 = arith.constant 0 : index
    %c0_12 = arith.constant 0 : index
    %12 = vector.load %arg4[%c0_10, %c0_11, %c0_12] : memref<9x128x256xbf16, #tpu.memory_space<vmem>>, vector<1x128x256xbf16>
    %13 = vector.shape_cast %12 : vector<1x128x256xbf16> to vector<128x256xbf16>
    %cst_13 = arith.constant dense<0.000000e+00> : vector<40x256xf32>
    %14 = tpu.matmul %11, %13, %cst_13 {dimension_numbers = #tpu.dot_dimension_numbers<[1], [0], [0], [1], [0, 0, 1, 1], [], []>} : vector<40x128xbf16>, vector<128x256xbf16>, vector<40x256xf32> -> vector<40x256xf32>
    %15 = arith.addf %8, %14 : vector<40x256xf32>
    %16 = vector.extract_strided_slice %7 {offsets = [0, 1, 0, 0], sizes = [5, 1, 8, 128], strides = [1, 1, 1, 1]} : vector<6x4x9x128xbf16> to vector<5x1x8x128xbf16>
    %17 = vector.shape_cast %16 : vector<5x1x8x128xbf16> to vector<5x8x128xbf16>
    %18 = vector.shape_cast %17 : vector<5x8x128xbf16> to vector<40x128xbf16>
    %c1 = arith.constant 1 : index
    %c0_14 = arith.constant 0 : index
    %c0_15 = arith.constant 0 : index
    %19 = vector.load %arg4[%c1, %c0_14, %c0_15] : memref<9x128x256xbf16, #tpu.memory_space<vmem>>, vector<1x128x256xbf16>
    %20 = vector.shape_cast %19 : vector<1x128x256xbf16> to vector<128x256xbf16>
    %cst_16 = arith.constant dense<0.000000e+00> : vector<40x256xf32>
    %21 = tpu.matmul %18, %20, %cst_16 {dimension_numbers = #tpu.dot_dimension_numbers<[1], [0], [0], [1], [0, 0, 1, 1], [], []>} : vector<40x128xbf16>, vector<128x256xbf16>, vector<40x256xf32> -> vector<40x256xf32>
    %22 = arith.addf %15, %21 : vector<40x256xf32>
    %23 = vector.extract_strided_slice %7 {offsets = [0, 0, 1, 0], sizes = [5, 1, 8, 128], strides = [1, 1, 1, 1]} : vector<6x4x9x128xbf16> to vector<5x1x8x128xbf16>
    %24 = vector.shape_cast %23 : vector<5x1x8x128xbf16> to vector<5x8x128xbf16>
    %25 = vector.shape_cast %24 : vector<5x8x128xbf16> to vector<40x128xbf16>
    %c2 = arith.constant 2 : index
    %c0_17 = arith.constant 0 : index
    %c0_18 = arith.constant 0 : index
    %26 = vector.load %arg4[%c2, %c0_17, %c0_18] : memref<9x128x256xbf16, #tpu.memory_space<vmem>>, vector<1x128x256xbf16>
    %27 = vector.shape_cast %26 : vector<1x128x256xbf16> to vector<128x256xbf16>
    %cst_19 = arith.constant dense<0.000000e+00> : vector<40x256xf32>
    %28 = tpu.matmul %25, %27, %cst_19 {dimension_numbers = #tpu.dot_dimension_numbers<[1], [0], [0], [1], [0, 0, 1, 1], [], []>} : vector<40x128xbf16>, vector<128x256xbf16>, vector<40x256xf32> -> vector<40x256xf32>
    %29 = arith.addf %22, %28 : vector<40x256xf32>
    %30 = vector.extract_strided_slice %7 {offsets = [0, 2, 0, 0], sizes = [5, 1, 8, 128], strides = [1, 1, 1, 1]} : vector<6x4x9x128xbf16> to vector<5x1x8x128xbf16>
    %31 = vector.shape_cast %30 : vector<5x1x8x128xbf16> to vector<5x8x128xbf16>
    %32 = vector.shape_cast %31 : vector<5x8x128xbf16> to vector<40x128xbf16>
    %c3 = arith.constant 3 : index
    %c0_20 = arith.constant 0 : index
    %c0_21 = arith.constant 0 : index
    %33 = vector.load %arg4[%c3, %c0_20, %c0_21] : memref<9x128x256xbf16, #tpu.memory_space<vmem>>, vector<1x128x256xbf16>
    %34 = vector.shape_cast %33 : vector<1x128x256xbf16> to vector<128x256xbf16>
    %cst_22 = arith.constant dense<0.000000e+00> : vector<40x256xf32>
    %35 = tpu.matmul %32, %34, %cst_22 {dimension_numbers = #tpu.dot_dimension_numbers<[1], [0], [0], [1], [0, 0, 1, 1], [], []>} : vector<40x128xbf16>, vector<128x256xbf16>, vector<40x256xf32> -> vector<40x256xf32>
    %36 = arith.addf %29, %35 : vector<40x256xf32>
    %37 = vector.extract_strided_slice %7 {offsets = [0, 3, 0, 0], sizes = [5, 1, 8, 128], strides = [1, 1, 1, 1]} : vector<6x4x9x128xbf16> to vector<5x1x8x128xbf16>
    %38 = vector.shape_cast %37 : vector<5x1x8x128xbf16> to vector<5x8x128xbf16>
    %39 = vector.shape_cast %38 : vector<5x8x128xbf16> to vector<40x128xbf16>
    %c4 = arith.constant 4 : index
    %c0_23 = arith.constant 0 : index
    %c0_24 = arith.constant 0 : index
    %40 = vector.load %arg4[%c4, %c0_23, %c0_24] : memref<9x128x256xbf16, #tpu.memory_space<vmem>>, vector<1x128x256xbf16>
    %41 = vector.shape_cast %40 : vector<1x128x256xbf16> to vector<128x256xbf16>
    %cst_25 = arith.constant dense<0.000000e+00> : vector<40x256xf32>
    %42 = tpu.matmul %39, %41, %cst_25 {dimension_numbers = #tpu.dot_dimension_numbers<[1], [0], [0], [1], [0, 0, 1, 1], [], []>} : vector<40x128xbf16>, vector<128x256xbf16>, vector<40x256xf32> -> vector<40x256xf32>
    %43 = arith.addf %36, %42 : vector<40x256xf32>
    %44 = vector.extract_strided_slice %7 {offsets = [0, 2, 1, 0], sizes = [5, 1, 8, 128], strides = [1, 1, 1, 1]} : vector<6x4x9x128xbf16> to vector<5x1x8x128xbf16>
    %45 = vector.shape_cast %44 : vector<5x1x8x128xbf16> to vector<5x8x128xbf16>
    %46 = vector.shape_cast %45 : vector<5x8x128xbf16> to vector<40x128xbf16>
    %c5 = arith.constant 5 : index
    %c0_26 = arith.constant 0 : index
    %c0_27 = arith.constant 0 : index
    %47 = vector.load %arg4[%c5, %c0_26, %c0_27] : memref<9x128x256xbf16, #tpu.memory_space<vmem>>, vector<1x128x256xbf16>
    %48 = vector.shape_cast %47 : vector<1x128x256xbf16> to vector<128x256xbf16>
    %cst_28 = arith.constant dense<0.000000e+00> : vector<40x256xf32>
    %49 = tpu.matmul %46, %48, %cst_28 {dimension_numbers = #tpu.dot_dimension_numbers<[1], [0], [0], [1], [0, 0, 1, 1], [], []>} : vector<40x128xbf16>, vector<128x256xbf16>, vector<40x256xf32> -> vector<40x256xf32>
    %50 = arith.addf %43, %49 : vector<40x256xf32>
    %51 = vector.extract_strided_slice %7 {offsets = [1, 0, 0, 0], sizes = [5, 1, 8, 128], strides = [1, 1, 1, 1]} : vector<6x4x9x128xbf16> to vector<5x1x8x128xbf16>
    %52 = vector.shape_cast %51 : vector<5x1x8x128xbf16> to vector<5x8x128xbf16>
    %53 = vector.shape_cast %52 : vector<5x8x128xbf16> to vector<40x128xbf16>
    %c6 = arith.constant 6 : index
    %c0_29 = arith.constant 0 : index
    %c0_30 = arith.constant 0 : index
    %54 = vector.load %arg4[%c6, %c0_29, %c0_30] : memref<9x128x256xbf16, #tpu.memory_space<vmem>>, vector<1x128x256xbf16>
    %55 = vector.shape_cast %54 : vector<1x128x256xbf16> to vector<128x256xbf16>
    %cst_31 = arith.constant dense<0.000000e+00> : vector<40x256xf32>
    %56 = tpu.matmul %53, %55, %cst_31 {dimension_numbers = #tpu.dot_dimension_numbers<[1], [0], [0], [1], [0, 0, 1, 1], [], []>} : vector<40x128xbf16>, vector<128x256xbf16>, vector<40x256xf32> -> vector<40x256xf32>
    %57 = arith.addf %50, %56 : vector<40x256xf32>
    %58 = vector.extract_strided_slice %7 {offsets = [1, 1, 0, 0], sizes = [5, 1, 8, 128], strides = [1, 1, 1, 1]} : vector<6x4x9x128xbf16> to vector<5x1x8x128xbf16>
    %59 = vector.shape_cast %58 : vector<5x1x8x128xbf16> to vector<5x8x128xbf16>
    %60 = vector.shape_cast %59 : vector<5x8x128xbf16> to vector<40x128xbf16>
    %c7 = arith.constant 7 : index
    %c0_32 = arith.constant 0 : index
    %c0_33 = arith.constant 0 : index
    %61 = vector.load %arg4[%c7, %c0_32, %c0_33] : memref<9x128x256xbf16, #tpu.memory_space<vmem>>, vector<1x128x256xbf16>
    %62 = vector.shape_cast %61 : vector<1x128x256xbf16> to vector<128x256xbf16>
    %cst_34 = arith.constant dense<0.000000e+00> : vector<40x256xf32>
    %63 = tpu.matmul %60, %62, %cst_34 {dimension_numbers = #tpu.dot_dimension_numbers<[1], [0], [0], [1], [0, 0, 1, 1], [], []>} : vector<40x128xbf16>, vector<128x256xbf16>, vector<40x256xf32> -> vector<40x256xf32>
    %64 = arith.addf %57, %63 : vector<40x256xf32>
    %65 = vector.extract_strided_slice %7 {offsets = [1, 0, 1, 0], sizes = [5, 1, 8, 128], strides = [1, 1, 1, 1]} : vector<6x4x9x128xbf16> to vector<5x1x8x128xbf16>
    %66 = vector.shape_cast %65 : vector<5x1x8x128xbf16> to vector<5x8x128xbf16>
    %67 = vector.shape_cast %66 : vector<5x8x128xbf16> to vector<40x128xbf16>
    %c8 = arith.constant 8 : index
    %c0_35 = arith.constant 0 : index
    %c0_36 = arith.constant 0 : index
    %68 = vector.load %arg4[%c8, %c0_35, %c0_36] : memref<9x128x256xbf16, #tpu.memory_space<vmem>>, vector<1x128x256xbf16>
    %69 = vector.shape_cast %68 : vector<1x128x256xbf16> to vector<128x256xbf16>
    %cst_37 = arith.constant dense<0.000000e+00> : vector<40x256xf32>
    %70 = tpu.matmul %67, %69, %cst_37 {dimension_numbers = #tpu.dot_dimension_numbers<[1], [0], [0], [1], [0, 0, 1, 1], [], []>} : vector<40x128xbf16>, vector<128x256xbf16>, vector<40x256xf32> -> vector<40x256xf32>
    %71 = arith.addf %64, %70 : vector<40x256xf32>
    %c0_38 = arith.constant 0 : index
    %c0_39 = arith.constant 0 : index
    %72 = vector.load %arg5[%c0_38, %c0_39] : memref<1x256xf32, #tpu.memory_space<vmem>>, vector<1x256xf32>
    %73 = vector.broadcast %72 : vector<1x256xf32> to vector<40x256xf32>
    %74 = arith.addf %71, %73 : vector<40x256xf32>
    %cst_40 = arith.constant 0.000000e+00 : f32
    %75 = vector.broadcast %cst_40 : f32 to vector<40x256xf32>
    %76 = arith.maximumf %74, %75 : vector<40x256xf32>
    %c0_41 = arith.constant 0 : index
    %c0_42 = arith.constant 0 : index
    %77 = vector.load %arg7[%c0_41, %c0_42] : memref<1x256xf32, #tpu.memory_space<vmem>>, vector<1x256xf32>
    %cst_43 = arith.constant dense<0.000000e+00> : vector<256xf32>
    %78 = vector.multi_reduction <add>, %76, %cst_43 [0] : vector<40x256xf32> to vector<256xf32>
    %79 = vector.shape_cast %78 : vector<256xf32> to vector<1x256xf32>
    %80 = arith.addf %77, %79 : vector<1x256xf32>
    %c0_44 = arith.constant 0 : index
    %c0_45 = arith.constant 0 : index
    %81 = vector.load %arg7[%c0_44, %c0_45] : memref<1x256xf32, #tpu.memory_space<vmem>>, vector<1x256xf32>
    tpu.vector_store %arg7[%c0_44, %c0_45], %80 {strides = array<i32>} : memref<1x256xf32, #tpu.memory_space<vmem>>, vector<1x256xf32>,
    %c0_i32_46 = arith.constant 0 : i32
    %82 = arith.cmpi eq, %arg1, %c0_i32_46 : i32
    %83 = arith.extui %82 : i1 to i32
    %c0_i32_47 = arith.constant 0 : i32
    %84 = arith.cmpi ne, %83, %c0_i32_47 : i32
    scf.if %84 {
      %c0_48 = arith.constant 0 : index
      %c0_49 = arith.constant 0 : index
      %85 = vector.load %arg5[%c0_48, %c0_49] : memref<1x256xf32, #tpu.memory_space<vmem>>, vector<1x256xf32>
      %cst_50 = arith.constant 0.000000e+00 : f32
      %86 = vector.broadcast %cst_50 : f32 to vector<1x256xf32>
      %87 = arith.maximumf %85, %86 : vector<1x256xf32>
      %cst_51 = arith.constant 1.500000e+01 : f32
      %88 = vector.broadcast %cst_51 : f32 to vector<1x256xf32>
      %89 = arith.mulf %88, %87 : vector<1x256xf32>
      %c0_52 = arith.constant 0 : index
      %c0_53 = arith.constant 0 : index
      %90 = vector.load %arg7[%c0_52, %c0_53] : memref<1x256xf32, #tpu.memory_space<vmem>>, vector<1x256xf32>
      %91 = arith.subf %90, %89 : vector<1x256xf32>
      %cst_54 = arith.constant 4.000000e-02 : f32
      %92 = vector.broadcast %cst_54 : f32 to vector<1x256xf32>
      %93 = arith.mulf %91, %92 : vector<1x256xf32>
      %c0_55 = arith.constant 0 : index
      %c0_56 = arith.constant 0 : index
      %c0_57 = arith.constant 0 : index
      %94 = vector.load %arg6[%c0_55, %c0_56, %c0_57] : memref<1x1x256xf32, #tpu.memory_space<vmem>>, vector<1x1x256xf32>
      %95 = vector.shape_cast %94 : vector<1x1x256xf32> to vector<1x256xf32>
      %96 = vector.shape_cast %93 : vector<1x256xf32> to vector<1x1x256xf32>
      tpu.vector_store %arg6[%c0_55, %c0_56, %c0_57], %96 {strides = array<i32>} : memref<1x1x256xf32, #tpu.memory_space<vmem>>, vector<1x1x256xf32>,
    } else {
    }
    return
  }
  func.func @transform_0(%arg0: i32, %arg1: i32) -> (i32, i32, i32, i32, i32) {
    %c0_i32 = arith.constant 0 : i32
    %c0_i32_0 = arith.constant 0 : i32
    %c0_i32_1 = arith.constant 0 : i32
    %c0_i32_2 = arith.constant 0 : i32
    return %arg0, %arg1, %c0_i32, %c0_i32_0, %c0_i32_1 : i32, i32, i32, i32, i32
  }
  func.func @transform_1(%arg0: i32, %arg1: i32) -> (i32, i32, i32, i32, i32) {
    %c1_i32 = arith.constant 1 : i32
    %0 = arith.addi %arg1, %c1_i32 : i32
    %c5_i32 = arith.constant 5 : i32
    %1 = arith.muli %0, %c5_i32 : i32
    %c0_i32 = arith.constant 0 : i32
    %c0_i32_0 = arith.constant 0 : i32
    %c0_i32_1 = arith.constant 0 : i32
    %c0_i32_2 = arith.constant 0 : i32
    return %arg0, %1, %c0_i32, %c0_i32_0, %c0_i32_1 : i32, i32, i32, i32, i32
  }
  func.func @transform_2(%arg0: i32, %arg1: i32) -> (i32, i32, i32) {
    %c0_i32 = arith.constant 0 : i32
    %c0_i32_0 = arith.constant 0 : i32
    %c0_i32_1 = arith.constant 0 : i32
    %c0_i32_2 = arith.constant 0 : i32
    return %c0_i32, %c0_i32_0, %c0_i32_1 : i32, i32, i32
  }
  func.func @transform_3(%arg0: i32, %arg1: i32) -> (i32, i32) {
    %c0_i32 = arith.constant 0 : i32
    %c0_i32_0 = arith.constant 0 : i32
    %c0_i32_1 = arith.constant 0 : i32
    return %c0_i32, %c0_i32_0 : i32, i32
  }
  func.func @transform_4(%arg0: i32, %arg1: i32) -> (i32, i32, i32) {
    %c0_i32 = arith.constant 0 : i32
    %c0_i32_0 = arith.constant 0 : i32
    %c0_i32_1 = arith.constant 0 : i32
    return %arg0, %c0_i32, %c0_i32_0 : i32, i32, i32
  }
}

module attributes {stable_mosaic.version = 11 : i64} {
  func.func @_scale_conv_kernel(%arg0: i32, %arg1: i32, %arg2: memref<1x1x256xf32, #tpu.memory_space<vmem>>, %arg3: memref<1x64x128xbf16, #tpu.memory_space<vmem>>, %arg4: memref<128x256xbf16, #tpu.memory_space<vmem>>, %arg5: memref<1x256xf32, #tpu.memory_space<vmem>>, %arg6: memref<256x128xbf16, #tpu.memory_space<vmem>>, %arg7: memref<1x128xf32, #tpu.memory_space<vmem>>, %arg8: memref<1x64x128xbf16, #tpu.memory_space<vmem>>) attributes {dimension_semantics = [#tpu.dimension_semantics<parallel>, #tpu.dimension_semantics<parallel>], iteration_bounds = array<i64: 2, 1>, scalar_prefetch = 0 : i64, scratch_operands = 0 : i64, tpu.core_type = #tpu.core_type<tc>, window_params = [{transform_indices = @transform_0, window_bounds = array<i64: 1, 1, 256>}, {transform_indices = @transform_1, window_bounds = array<i64: 1, 64, 128>}, {pipeline_mode = #tpu.pipeline_mode<synchronous>, transform_indices = @transform_2, window_bounds = array<i64: 128, 256>}, {pipeline_mode = #tpu.pipeline_mode<synchronous>, transform_indices = @transform_3, window_bounds = array<i64: 1, 256>}, {pipeline_mode = #tpu.pipeline_mode<synchronous>, transform_indices = @transform_4, window_bounds = array<i64: 256, 128>}, {pipeline_mode = #tpu.pipeline_mode<synchronous>, transform_indices = @transform_5, window_bounds = array<i64: 1, 128>}, {transform_indices = @transform_6, window_bounds = array<i64: 1, 64, 128>}]} {
    %c0 = arith.constant 0 : index
    %c0_0 = arith.constant 0 : index
    %c0_1 = arith.constant 0 : index
    %0 = vector.load %arg3[%c0, %c0_0, %c0_1] : memref<1x64x128xbf16, #tpu.memory_space<vmem>>, vector<1x64x128xbf16>
    %1 = vector.shape_cast %0 : vector<1x64x128xbf16> to vector<64x128xbf16>
    %c0_2 = arith.constant 0 : index
    %c0_3 = arith.constant 0 : index
    %2 = vector.load %arg4[%c0_2, %c0_3] : memref<128x256xbf16, #tpu.memory_space<vmem>>, vector<128x256xbf16>
    %cst = arith.constant dense<0.000000e+00> : vector<64x256xf32>
    %3 = tpu.matmul %1, %2, %cst {dimension_numbers = #tpu.dot_dimension_numbers<[1], [0], [0], [1], [0, 0, 1, 1], [], []>} : vector<64x128xbf16>, vector<128x256xbf16>, vector<64x256xf32> -> vector<64x256xf32>
    %c0_4 = arith.constant 0 : index
    %c0_5 = arith.constant 0 : index
    %4 = vector.load %arg5[%c0_4, %c0_5] : memref<1x256xf32, #tpu.memory_space<vmem>>, vector<1x256xf32>
    %5 = vector.broadcast %4 : vector<1x256xf32> to vector<64x256xf32>
    %6 = arith.addf %3, %5 : vector<64x256xf32>
    %cst_6 = arith.constant 0.000000e+00 : f32
    %7 = vector.broadcast %cst_6 : f32 to vector<64x256xf32>
    %8 = arith.maximumf %6, %7 : vector<64x256xf32>
    %c0_7 = arith.constant 0 : index
    %c0_8 = arith.constant 0 : index
    %c0_9 = arith.constant 0 : index
    %9 = vector.load %arg2[%c0_7, %c0_8, %c0_9] : memref<1x1x256xf32, #tpu.memory_space<vmem>>, vector<1x1x256xf32>
    %10 = vector.shape_cast %9 : vector<1x1x256xf32> to vector<1x256xf32>
    %11 = vector.broadcast %10 : vector<1x256xf32> to vector<64x256xf32>
    %12 = arith.mulf %8, %11 : vector<64x256xf32>
    %13 = arith.truncf %12 : vector<64x256xf32> to vector<64x256xbf16>
    %c0_10 = arith.constant 0 : index
    %c0_11 = arith.constant 0 : index
    %14 = vector.load %arg6[%c0_10, %c0_11] : memref<256x128xbf16, #tpu.memory_space<vmem>>, vector<256x128xbf16>
    %cst_12 = arith.constant dense<0.000000e+00> : vector<64x128xf32>
    %15 = tpu.matmul %13, %14, %cst_12 {dimension_numbers = #tpu.dot_dimension_numbers<[1], [0], [0], [1], [0, 0, 1, 1], [], []>} : vector<64x256xbf16>, vector<256x128xbf16>, vector<64x128xf32> -> vector<64x128xf32>
    %c0_13 = arith.constant 0 : index
    %c0_14 = arith.constant 0 : index
    %16 = vector.load %arg7[%c0_13, %c0_14] : memref<1x128xf32, #tpu.memory_space<vmem>>, vector<1x128xf32>
    %17 = vector.broadcast %16 : vector<1x128xf32> to vector<64x128xf32>
    %18 = arith.addf %15, %17 : vector<64x128xf32>
    %cst_15 = arith.constant 0.000000e+00 : f32
    %19 = vector.broadcast %cst_15 : f32 to vector<64x128xf32>
    %20 = arith.maximumf %18, %19 : vector<64x128xf32>
    %21 = arith.truncf %20 : vector<64x128xf32> to vector<64x128xbf16>
    %c0_16 = arith.constant 0 : index
    %c0_17 = arith.constant 0 : index
    %c0_18 = arith.constant 0 : index
    %22 = vector.load %arg8[%c0_16, %c0_17, %c0_18] : memref<1x64x128xbf16, #tpu.memory_space<vmem>>, vector<1x64x128xbf16>
    %23 = vector.shape_cast %22 : vector<1x64x128xbf16> to vector<64x128xbf16>
    %24 = vector.shape_cast %21 : vector<64x128xbf16> to vector<1x64x128xbf16>
    tpu.vector_store %arg8[%c0_16, %c0_17, %c0_18], %24 {strides = array<i32>} : memref<1x64x128xbf16, #tpu.memory_space<vmem>>, vector<1x64x128xbf16>,
    return
  }
  func.func @transform_0(%arg0: i32, %arg1: i32) -> (i32, i32, i32) {
    %c0_i32 = arith.constant 0 : i32
    %c0_i32_0 = arith.constant 0 : i32
    %c0_i32_1 = arith.constant 0 : i32
    return %arg0, %c0_i32, %c0_i32_0 : i32, i32, i32
  }
  func.func @transform_1(%arg0: i32, %arg1: i32) -> (i32, i32, i32) {
    %c0_i32 = arith.constant 0 : i32
    %c0_i32_0 = arith.constant 0 : i32
    return %arg0, %arg1, %c0_i32 : i32, i32, i32
  }
  func.func @transform_2(%arg0: i32, %arg1: i32) -> (i32, i32) {
    %c0_i32 = arith.constant 0 : i32
    %c0_i32_0 = arith.constant 0 : i32
    %c0_i32_1 = arith.constant 0 : i32
    return %c0_i32, %c0_i32_0 : i32, i32
  }
  func.func @transform_3(%arg0: i32, %arg1: i32) -> (i32, i32) {
    %c0_i32 = arith.constant 0 : i32
    %c0_i32_0 = arith.constant 0 : i32
    %c0_i32_1 = arith.constant 0 : i32
    return %c0_i32, %c0_i32_0 : i32, i32
  }
  func.func @transform_4(%arg0: i32, %arg1: i32) -> (i32, i32) {
    %c0_i32 = arith.constant 0 : i32
    %c0_i32_0 = arith.constant 0 : i32
    %c0_i32_1 = arith.constant 0 : i32
    return %c0_i32, %c0_i32_0 : i32, i32
  }
  func.func @transform_5(%arg0: i32, %arg1: i32) -> (i32, i32) {
    %c0_i32 = arith.constant 0 : i32
    %c0_i32_0 = arith.constant 0 : i32
    %c0_i32_1 = arith.constant 0 : i32
    return %c0_i32, %c0_i32_0 : i32, i32
  }
  func.func @transform_6(%arg0: i32, %arg1: i32) -> (i32, i32, i32) {
    %c0_i32 = arith.constant 0 : i32
    %c0_i32_0 = arith.constant 0 : i32
    return %arg0, %arg1, %c0_i32 : i32, i32, i32
  }
}

</mosaic_0001>

<llo_original>
// kernel: global_block_forward.5
$region0: #{global_block_forward.5}
  #allocation0 [shape = 'u32[]', space=smem, size = 0x4, offset = 0x4, fixed_abs, tag = 'smem constant byte address 0x4 - core index']
  #allocation1 [shape = 'u32[144,128]{1,0:T(1,128)}', space=vmem, size = 0x12000, scoped, tag = 'internal scratch']
  %s0 = inlined_call_operand.vmem [shape: f32[2,1,256], index: 0, kind: input, shape index: {}]
  %s1 = inlined_call_operand.vmem [shape: bf16[2,64,128], index: 1, kind: input, shape index: {}]
  %s2 = inlined_call_operand.vmem [shape: bf16[128,256], index: 2, kind: input, shape index: {}]
  %s3 = inlined_call_operand.vmem [shape: f32[1,256], index: 3, kind: input, shape index: {}]
  %s4 = inlined_call_operand.vmem [shape: bf16[256,128], index: 4, kind: input, shape index: {}]
  %s5 = inlined_call_operand.vmem [shape: f32[1,128], index: 5, kind: input, shape index: {}]
  %s6 = inlined_call_operand.vmem [shape: bf16[2,64,128], index: 6, kind: output, shape index: {}]
  %s7 = sld [smem:[#allocation0]]
  $region57: #{global_block_forward.5} parent=0
    _
  %s9 = ssub.s32 1, %s7
  %s10 = scalar_select 0, %s9, %s7
  loop: start=0, step=1, limit=4
  $region2: #{global_block_forward.5} parent=0 // loop_pre_header
    _
  $region3: #{global_block_forward.5} parent=0 // loop_header
    %s12 = sphi 0, %s16
    %p13 = scmp.ge.s32.totalorder %s12, 4
    %s19 = sphi 0, %s31
    %s20 = sphi 0, %s27
    %s21 = sphi 0, %s19
    %s22 = sphi 0, %s20
    %s23 = sphi 0, %s21
    %s24 = sphi 0, %s22
    %s34 = sphi 0, %s36
    %s37 = sphi 0, %s34
    %s38 = sphi 0, %s37
    %s54 = sphi 0, %s38
    %s62 = sphi 0, %s64
    %s65 = sphi 0, %s62
    %s66 = sphi 0, %s65
    %s82 = sphi 0, %s66
    %s86 = sphi 0, %s86
    %s88 = sphi 0, %s86
    %s89 = sphi 0, %s88
    %s103 = sphi 0, %s89
    %s107 = sphi 0, %s107
    %s109 = sphi 0, %s107
    %s110 = sphi 0, %s109
    %s124 = sphi 0, %s110
    %s128 = sphi 0, %s128
    %s130 = sphi 0, %s128
    %s131 = sphi 0, %s130
    %s145 = sphi 0, %s131
    %s149 = sphi 0, %s149
    %s151 = sphi 0, %s149
    %s152 = sphi 0, %s151
    %s166 = sphi 0, %s152
    %s174 = sphi 0, %s176
    %s177 = sphi 0, %s174
    %s178 = sphi 0, %s177
    %s194 = sphi 0, %s178
  $region4: #{global_block_forward.5} parent=0 // loop_header_branch
    %15 = sbr.rel (%p13) target = $region8
  $region5: #{global_block_forward.5} parent=0 // loop_body
    %s17 = ssub.s32 %s12, 1
    %s18 = ssub.s32 %s12, 2
    %s25 = sadd.s32 1, %s20
    %p26 = scmp.ge.s32.totalorder %s25, 1
    %s27 = scalar_select %p26, 0, %s25
    %s28 = sadd.s32 1, %s19
    %s29 = scalar_select %p26, %s28, %s19
    %p30 = scmp.ge.s32.totalorder %s29, 2
    %s31 = scalar_select %p30, 0, %s29
    %s32 = ssub.s32 %s19, %s31
    %p33 = scmp.eq.s32.totalorder %s32, 0
    %s35 = sadd.s32 %s34, 1
    %s36 = scalar_select %p33, %s34, %s35
    %p39 = pneg %p33
    %p40 = scmp.eq.s32.totalorder %s12, 1
    %p41 = por %p39, %p40
    %p42 = scmp.ne.s32.totalorder %s34, %s37
    %p43 = scmp.eq.s32.totalorder %s12, 0
    %p44 = por %p42, %p43
    %p45 = scmp.ne.s32.totalorder %s34, %s37
    %p46 = scmp.eq.s32.totalorder %s17, 1
    %p47 = por %p45, %p46
    %p48 = scmp.ne.s32.totalorder %s37, %s38
    %p49 = scmp.eq.s32.totalorder %s17, 0
    %p50 = por %p48, %p49
    %p51 = scmp.ne.s32.totalorder %s37, %s38
    %p52 = scmp.eq.s32.totalorder %s18, 1
    %p53 = por %p51, %p52
    %p55 = scmp.ne.s32.totalorder %s38, %s54
    %p56 = scmp.eq.s32.totalorder %s18, 0
    %p57 = por %p55, %p56
    %s58 = ssub.s32 %s19, %s31
    %s59 = ssub.s32 %s20, %s27
    %s60 = sor.u32 %s58, %s59
    %p61 = scmp.eq.s32.totalorder %s60, 0
    %s63 = sadd.s32 %s62, 1
    %s64 = scalar_select %p61, %s62, %s63
    %p67 = pneg %p61
    %p68 = scmp.eq.s32.totalorder %s12, 1
    %p69 = por %p67, %p68
    %p70 = scmp.ne.s32.totalorder %s62, %s65
    %p71 = scmp.eq.s32.totalorder %s12, 0
    %p72 = por %p70, %p71
    %p73 = scmp.ne.s32.totalorder %s62, %s65
    %p74 = scmp.eq.s32.totalorder %s17, 1
    %p75 = por %p73, %p74
    %p76 = scmp.ne.s32.totalorder %s65, %s66
    %p77 = scmp.eq.s32.totalorder %s17, 0
    %p78 = por %p76, %p77
    %p79 = scmp.ne.s32.totalorder %s65, %s66
    %p80 = scmp.eq.s32.totalorder %s18, 1
    %p81 = por %p79, %p80
    %p83 = scmp.ne.s32.totalorder %s66, %s82
    %p84 = scmp.eq.s32.totalorder %s18, 0
    %p85 = por %p83, %p84
    %s87 = sadd.s32 %s86, 1
    %p90 = scmp.eq.s32.totalorder %s12, 1
    %p91 = scmp.ne.s32.totalorder %s86, %s88
    %p92 = scmp.eq.s32.totalorder %s12, 0
    %p93 = por %p91, %p92
    %p94 = scmp.ne.s32.totalorder %s86, %s88
    %p95 = scmp.eq.s32.totalorder %s17, 1
    %p96 = por %p94, %p95
    %p97 = scmp.ne.s32.totalorder %s88, %s89
    %p98 = scmp.eq.s32.totalorder %s17, 0
    %p99 = por %p97, %p98
    %p100 = scmp.ne.s32.totalorder %s88, %s89
    %p101 = scmp.eq.s32.totalorder %s18, 1
    %p102 = por %p100, %p101
    %p104 = scmp.ne.s32.totalorder %s89, %s103
    %p105 = scmp.eq.s32.totalorder %s18, 0
    %p106 = por %p104, %p105
    %s108 = sadd.s32 %s107, 1
    %p111 = scmp.eq.s32.totalorder %s12, 1
    %p112 = scmp.ne.s32.totalorder %s107, %s109
    %p113 = scmp.eq.s32.totalorder %s12, 0
    %p114 = por %p112, %p113
    %p115 = scmp.ne.s32.totalorder %s107, %s109
    %p116 = scmp.eq.s32.totalorder %s17, 1
    %p117 = por %p115, %p116
    %p118 = scmp.ne.s32.totalorder %s109, %s110
    %p119 = scmp.eq.s32.totalorder %s17, 0
    %p120 = por %p118, %p119
    %p121 = scmp.ne.s32.totalorder %s109, %s110
    %p122 = scmp.eq.s32.totalorder %s18, 1
    %p123 = por %p121, %p122
    %p125 = scmp.ne.s32.totalorder %s110, %s124
    %p126 = scmp.eq.s32.totalorder %s18, 0
    %p127 = por %p125, %p126
    %s129 = sadd.s32 %s128, 1
    %p132 = scmp.eq.s32.totalorder %s12, 1
    %p133 = scmp.ne.s32.totalorder %s128, %s130
    %p134 = scmp.eq.s32.totalorder %s12, 0
    %p135 = por %p133, %p134
    %p136 = scmp.ne.s32.totalorder %s128, %s130
    %p137 = scmp.eq.s32.totalorder %s17, 1
    %p138 = por %p136, %p137
    %p139 = scmp.ne.s32.totalorder %s130, %s131
    %p140 = scmp.eq.s32.totalorder %s17, 0
    %p141 = por %p139, %p140
    %p142 = scmp.ne.s32.totalorder %s130, %s131
    %p143 = scmp.eq.s32.totalorder %s18, 1
    %p144 = por %p142, %p143
    %p146 = scmp.ne.s32.totalorder %s131, %s145
    %p147 = scmp.eq.s32.totalorder %s18, 0
    %p148 = por %p146, %p147
    %s150 = sadd.s32 %s149, 1
    %p153 = scmp.eq.s32.totalorder %s12, 1
    %p154 = scmp.ne.s32.totalorder %s149, %s151
    %p155 = scmp.eq.s32.totalorder %s12, 0
    %p156 = por %p154, %p155
    %p157 = scmp.ne.s32.totalorder %s149, %s151
    %p158 = scmp.eq.s32.totalorder %s17, 1
    %p159 = por %p157, %p158
    %p160 = scmp.ne.s32.totalorder %s151, %s152
    %p161 = scmp.eq.s32.totalorder %s17, 0
    %p162 = por %p160, %p161
    %p163 = scmp.ne.s32.totalorder %s151, %s152
    %p164 = scmp.eq.s32.totalorder %s18, 1
    %p165 = por %p163, %p164
    %p167 = scmp.ne.s32.totalorder %s152, %s166
    %p168 = scmp.eq.s32.totalorder %s18, 0
    %p169 = por %p167, %p168
    %s170 = ssub.s32 %s19, %s31
    %s171 = ssub.s32 %s20, %s27
    %s172 = sor.u32 %s170, %s171
    %p173 = scmp.eq.s32.totalorder %s172, 0
    %s175 = sadd.s32 %s174, 1
    %s176 = scalar_select %p173, %s174, %s175
    %p179 = pneg %p173
    %p180 = scmp.eq.s32.totalorder %s12, 1
    %p181 = por %p179, %p180
    %p182 = scmp.ne.s32.totalorder %s174, %s177
    %p183 = scmp.eq.s32.totalorder %s12, 0
    %p184 = por %p182, %p183
    %p185 = scmp.ne.s32.totalorder %s174, %s177
    %p186 = scmp.eq.s32.totalorder %s17, 1
    %p187 = por %p185, %p186
    %p188 = scmp.ne.s32.totalorder %s177, %s178
    %p189 = scmp.eq.s32.totalorder %s17, 0
    %p190 = por %p188, %p189
    %p191 = scmp.ne.s32.totalorder %s177, %s178
    %p192 = scmp.eq.s32.totalorder %s18, 1
    %p193 = por %p191, %p192
    %p195 = scmp.ne.s32.totalorder %s178, %s194
    %p196 = scmp.eq.s32.totalorder %s18, 0
    %p197 = por %p195, %p196
    %p198 = scmp.le.s32.totalorder 1, %s12
    %p199 = scmp.lt.s32.totalorder %s12, 3
    %p200 = pnand %p198, %p199
    %p201 = pneg %p200
    // Predicated region
    $region9: #{global_block_forward.5} parent=5 // pred_check
      _
    $region10: #{global_block_forward.5} parent=5 // pred_check_branch
      %203 = sbr.rel (%p200) target = $region12
    $region11: #{global_block_forward.5} parent=5 // pred_region
      %s204 = ssub.s32 %s12, 1
      // Predicated region
      $region13: #{global_block_forward.5} parent=11 // pred_check
        %p205 = pneg %p99
      $region14: #{global_block_forward.5} parent=11 // pred_check_branch
        %207 = sbr.rel (%p205) target = $region16
      $region15: #{global_block_forward.5} parent=11 // pred_region
        _
      $region16: #{global_block_forward.5} parent=11 // pred_fallthru
        _
      // Predicated region
      $region17: #{global_block_forward.5} parent=11 // pred_check
        %p208 = pneg %p120
      $region18: #{global_block_forward.5} parent=11 // pred_check_branch
        %210 = sbr.rel (%p208) target = $region20
      $region19: #{global_block_forward.5} parent=11 // pred_region
        _
      $region20: #{global_block_forward.5} parent=11 // pred_fallthru
        _
      // Predicated region
      $region21: #{global_block_forward.5} parent=11 // pred_check
        %p211 = pneg %p141
      $region22: #{global_block_forward.5} parent=11 // pred_check_branch
        %213 = sbr.rel (%p211) target = $region24
      $region23: #{global_block_forward.5} parent=11 // pred_region
        _
      $region24: #{global_block_forward.5} parent=11 // pred_fallthru
        _
      // Predicated region
      $region25: #{global_block_forward.5} parent=11 // pred_check
        %p214 = pneg %p162
      $region26: #{global_block_forward.5} parent=11 // pred_check_branch
        %216 = sbr.rel (%p214) target = $region28
      $region27: #{global_block_forward.5} parent=11 // pred_region
        _
      $region28: #{global_block_forward.5} parent=11 // pred_fallthru
        _
    $region12: #{global_block_forward.5} parent=5 // pred_fallthru
      _
    %p217 = scmp.lt.s32.totalorder %s12, 2
    // Predicated region
    $region29: #{global_block_forward.5} parent=5 // pred_check
      %p218 = pneg %p217
    $region30: #{global_block_forward.5} parent=5 // pred_check_branch
      %220 = sbr.rel (%p218) target = $region32
    $region31: #{global_block_forward.5} parent=5 // pred_region
      // Predicated region
      $region33: #{global_block_forward.5} parent=31 // pred_check
        %p221 = pneg %p44
      $region34: #{global_block_forward.5} parent=31 // pred_check_branch
        %223 = sbr.rel (%p221) target = $region36
      $region35: #{global_block_forward.5} parent=31 // pred_region
        %p224 = scmp.lt.s32.totalorder %s19, 1
        %s225 = scalar_select %p224, %s19, 1
        %s226 = smul.addr %s225, 2
        %s227 = scalar_lea.vmem %s0, %s226
      $region36: #{global_block_forward.5} parent=31 // pred_fallthru
        _
      // Predicated region
      $region37: #{global_block_forward.5} parent=31 // pred_check
        %p228 = pneg %p72
      $region38: #{global_block_forward.5} parent=31 // pred_check_branch
        %230 = sbr.rel (%p228) target = $region40
      $region39: #{global_block_forward.5} parent=31 // pred_region
        %s231 = smul.u32 8, %s20
        %p232 = scmp.lt.s32.totalorder %s19, 1
        %s233 = scalar_select %p232, %s19, 1
        %p234 = scmp.lt.s32.totalorder %s231, 7
        %s235 = scalar_select %p234, %s231, 7
        %s236 = smul.addr %s233, 8
        %s237 = sadd.s32 %s235, %s236
        %s238 = smul.addr %s237, 4
        %s239 = scalar_lea.vmem %s1, %s238
        %s240 = smul.u32 8, %s20
      $region40: #{global_block_forward.5} parent=31 // pred_fallthru
        _
    $region32: #{global_block_forward.5} parent=5 // pred_fallthru
      _
    %p241 = scmp.le.s32.totalorder 1, %s12
    %p242 = scmp.lt.s32.totalorder %s12, 3
    %p243 = pnand %p241, %p242
    %p244 = pneg %p243
    // Predicated region
    $region41: #{global_block_forward.5} parent=5 // pred_check
      _
    $region42: #{global_block_forward.5} parent=5 // pred_check_branch
      %246 = sbr.rel (%p243) target = $region44
    $region43: #{global_block_forward.5} parent=5 // pred_region
      %s247 = ssub.s32 %s12, 1
      %p248 = scmp.lt.s32.totalorder %s21, 1
      %s249 = scalar_select %p248, %s21, 1
      %s250 = smul.addr %s249, 2
      %s251 = scalar_lea.vmem %s0, %s250
      %p252 = pneg %p50
      %p253 = pneg %p47
      %s254 = smul.u32 8, %s22
      %p255 = scmp.lt.s32.totalorder %s21, 1
      %s256 = scalar_select %p255, %s21, 1
      %p257 = scmp.lt.s32.totalorder %s254, 7
      %s258 = scalar_select %p257, %s254, 7
      %s259 = smul.addr %s256, 8
      %s260 = sadd.s32 %s258, %s259
      %s261 = smul.addr %s260, 4
      %s262 = scalar_lea.vmem %s1, %s261
      %p263 = pneg %p78
      %p264 = pneg %p75
      %p265 = pneg %p99
      %p266 = pneg %p96
      %p267 = pneg %p120
      %p268 = pneg %p117
      %p269 = pneg %p141
      %p270 = pneg %p138
      %p271 = pneg %p162
      %p272 = pneg %p159
      %p273 = pneg %p190
      %p274 = pneg %p187
      %s275 = smul.u32 8, %s22
      %p276 = scmp.lt.s32.totalorder %s21, 1
      %s277 = scalar_select %p276, %s21, 1
      %p278 = scmp.lt.s32.totalorder %s275, 7
      %s279 = scalar_select %p278, %s275, 7
      %s280 = smul.addr %s277, 8
      %s281 = sadd.s32 %s279, %s280
      %s282 = smul.addr %s281, 4
      %s283 = scalar_lea.vmem %s6, %s282
      %p284 = scmp.lt.s32.totalorder %s21, 1
      %s285 = scalar_select %p284, %s21, 1
      %s286 = smul.addr %s285, 2
      %s287 = scalar_lea.vmem %s0, %s286
      %s288 = smul.u32 8, %s22
      %p289 = scmp.lt.s32.totalorder %s21, 1
      %s290 = scalar_select %p289, %s21, 1
      %p291 = scmp.lt.s32.totalorder %s288, 7
      %s292 = scalar_select %p291, %s288, 7
      %s293 = smul.addr %s290, 8
      %s294 = sadd.s32 %s292, %s293
      %s295 = smul.addr %s294, 4
      %s296 = scalar_lea.vmem %s1, %s295
      %s297 = smul.u32 8, %s22
      %s298 = smul.u32 8, %s22
      %p299 = scmp.lt.s32.totalorder %s21, 1
      %s300 = scalar_select %p299, %s21, 1
      %p301 = scmp.lt.s32.totalorder %s298, 7
      %s302 = scalar_select %p301, %s298, 7
      %s303 = smul.addr %s300, 8
      %s304 = sadd.s32 %s302, %s303
      %s305 = smul.addr %s304, 4
      %s306 = scalar_lea.vmem %s6, %s305
      %s307 = smul.u32 8, %s22
      %v309 = vld [vmem:[%s296] sm:$0xf]
      %v310 = vld [vmem:[%s296 + $0x4] sm:$0xf]
      %v311 = vld [vmem:[%s296 + $0x8] sm:$0xf]
      %v312 = vld [vmem:[%s296 + $0xc] sm:$0xf]
      %v313 = vld [vmem:[%s296 + $0x10] sm:$0xf]
      %v314 = vld [vmem:[%s296 + $0x14] sm:$0xf]
      %v315 = vld [vmem:[%s296 + $0x18] sm:$0xf]
      %v316 = vld [vmem:[%s296 + $0x1c] sm:$0xf]
      %v317 = vld [vmem:[%s2] sm:$0xff]
      %v318 = vld [vmem:[%s2 + $0x8] sm:$0xff]
      %v319 = vld [vmem:[%s2 + $0x10] sm:$0xff]
      %v320 = vld [vmem:[%s2 + $0x18] sm:$0xff]
      %v321 = vld [vmem:[%s2 + $0x20] sm:$0xff]
      %v322 = vld [vmem:[%s2 + $0x28] sm:$0xff]
      %v323 = vld [vmem:[%s2 + $0x30] sm:$0xff]
      %v324 = vld [vmem:[%s2 + $0x38] sm:$0xff]
      %v325 = vld [vmem:[%s2 + $0x40] sm:$0xff]
      %v326 = vld [vmem:[%s2 + $0x48] sm:$0xff]
      %v327 = vld [vmem:[%s2 + $0x50] sm:$0xff]
      %v328 = vld [vmem:[%s2 + $0x58] sm:$0xff]
      %v329 = vld [vmem:[%s2 + $0x60] sm:$0xff]
      %v330 = vld [vmem:[%s2 + $0x68] sm:$0xff]
      %v331 = vld [vmem:[%s2 + $0x70] sm:$0xff]
      %v332 = vld [vmem:[%s2 + $0x78] sm:$0xff]
      %v333 = vld [vmem:[%s3] sm:$0x3]
      %v335 = vlaneseq
      %v336 = vshrl.u32 %v335, 7
      %v337 = vsub.s32 0, %v336
      %v338 = vrot.slane %v333, %v337
      %v339 = vlaneseq
      %v340 = vshrl.u32 %v339, 7
      %v341 = vsub.s32 1, %v340
      %v342 = vrot.slane %v333, %v341
      %v353 = vunpack.c.l.b16 %v309
      %v354 = vunpack.c.l.b16 %v310
      %v355 = vunpack.c.l.b16 %v311
      %v356 = vunpack.c.l.b16 %v312
      %v357 = vunpack.c.l.b16 %v313
      %v358 = vunpack.c.l.b16 %v314
      %v359 = vunpack.c.l.b16 %v315
      %v360 = vunpack.c.l.b16 %v316
      %v361 = vpack.c.b16 %v354, %v353
      %v362 = vpack.c.b16 %v356, %v355
      %v363 = vpack.c.b16 %v358, %v357
      %v364 = vpack.c.b16 %v360, %v359
      %v385 = vunpack.c.l.b16 %v317
      %v386 = vunpack.c.h.b16 %v317
      %v387 = vunpack.c.l.b16 %v318
      %v388 = vunpack.c.h.b16 %v318
      %v389 = vunpack.c.l.b16 %v319
      %v390 = vunpack.c.h.b16 %v319
      %v391 = vunpack.c.l.b16 %v320
      %v392 = vunpack.c.h.b16 %v320
      %v393 = vunpack.c.l.b16 %v321
      %v394 = vunpack.c.h.b16 %v321
      %v395 = vunpack.c.l.b16 %v322
      %v396 = vunpack.c.h.b16 %v322
      %v397 = vunpack.c.l.b16 %v323
      %v398 = vunpack.c.h.b16 %v323
      %v399 = vunpack.c.l.b16 %v324
      %v400 = vunpack.c.h.b16 %v324
      %v401 = vunpack.c.l.b16 %v325
      %v402 = vunpack.c.h.b16 %v325
      %v403 = vunpack.c.l.b16 %v326
      %v404 = vunpack.c.h.b16 %v326
      %v405 = vunpack.c.l.b16 %v327
      %v406 = vunpack.c.h.b16 %v327
      %v407 = vunpack.c.l.b16 %v328
      %v408 = vunpack.c.h.b16 %v328
      %v409 = vunpack.c.l.b16 %v329
      %v410 = vunpack.c.h.b16 %v329
      %v411 = vunpack.c.l.b16 %v330
      %v412 = vunpack.c.h.b16 %v330
      %v413 = vunpack.c.l.b16 %v331
      %v414 = vunpack.c.h.b16 %v331
      %v415 = vunpack.c.l.b16 %v332
      %v416 = vunpack.c.h.b16 %v332
      %v417 = vpack.c.b16 %v387, %v385
      %v418 = vpack.c.b16 %v388, %v386
      %v419 = vpack.c.b16 %v391, %v389
      %v420 = vpack.c.b16 %v392, %v390
      %v421 = vpack.c.b16 %v395, %v393
      %v422 = vpack.c.b16 %v396, %v394
      %v423 = vpack.c.b16 %v399, %v397
      %v424 = vpack.c.b16 %v400, %v398
      %v425 = vpack.c.b16 %v403, %v401
      %v426 = vpack.c.b16 %v404, %v402
      %v427 = vpack.c.b16 %v407, %v405
      %v428 = vpack.c.b16 %v408, %v406
      %v429 = vpack.c.b16 %v411, %v409
      %v430 = vpack.c.b16 %v412, %v410
      %v431 = vpack.c.b16 %v415, %v413
      %v432 = vpack.c.b16 %v416, %v414
      %449 = vmatprep.subr.bf16.mxu0 %v432
      %450 = vmatpush1.bf16.msra.mxu0 %v431
      %451 = vmatprep.subr.bf16.mxu0 %v430
      %452 = vmatpush1.bf16.msra.mxu0 %v429
      %453 = vmatprep.subr.bf16.mxu0 %v428
      %454 = vmatpush1.bf16.msra.mxu0 %v427
      %455 = vmatprep.subr.bf16.mxu0 %v426
      %456 = vmatpush1.bf16.msra.mxu0 %v425
      %457 = vmatprep.subr.bf16.mxu0 %v424
      %458 = vmatpush1.bf16.msra.mxu0 %v423
      %459 = vmatprep.subr.bf16.mxu0 %v422
      %460 = vmatpush1.bf16.msra.mxu0 %v421
      %461 = vmatprep.subr.bf16.mxu0 %v420
      %462 = vmatpush1.bf16.msra.mxu0 %v419
      %463 = vmatprep.subr.bf16.mxu0 %v418
      %464 = vmatpush1.bf16.msra.mxu0 %v417
      %465 = vmatprep.subr.bf16.mxu0 0
      %466 = vmatpush2.bf16.msra.mxu0 0
      %467 = vmatprep.subr.bf16.mxu0 0
      %468 = vmatpush2.bf16.msra.mxu0 0
      %469 = vmatprep.subr.bf16.mxu0 0
      %470 = vmatpush2.bf16.msra.mxu0 0
      %471 = vmatprep.subr.bf16.mxu0 0
      %472 = vmatpush2.bf16.msra.mxu0 0
      %473 = vmatprep.subr.bf16.mxu0 0
      %474 = vmatpush2.bf16.msra.mxu0 0
      %475 = vmatprep.subr.bf16.mxu0 0
      %476 = vmatpush2.bf16.msra.mxu0 0
      %477 = vmatprep.subr.bf16.mxu0 0
      %478 = vmatpush2.bf16.msra.mxu0 0
      %479 = vmatprep.subr.bf16.mxu0 0
      %480 = vmatpush2.bf16.msra.mxu0 0
      %481 = vmatprep.mubr.bf16.mxu0 0
      %482 = vmatmul.mubr.bf16.gmra.mxu0 %v361
      %v483 = vpop.f32.mrf.mxu0
      %v484 = vadd.f32 %v338, %v483
      %v485 = vpop.f32.mrf.mxu0
      %v486 = vadd.f32 %v342, %v485
      %v487 = vpop.f32.mrf.mxu0
      %v488 = vadd.f32 %v338, %v487
      %v489 = vpop.f32.mrf.mxu0
      %v490 = vadd.f32 %v342, %v489
      %491 = vmatprep.mubr.bf16.mxu0 0
      %492 = vmatmul.mubr.bf16.gmra.mxu0 %v362
      %v493 = vpop.f32.mrf.mxu0
      %v494 = vadd.f32 %v338, %v493
      %v495 = vpop.f32.mrf.mxu0
      %v496 = vadd.f32 %v342, %v495
      %v497 = vpop.f32.mrf.mxu0
      %v498 = vadd.f32 %v338, %v497
      %v499 = vpop.f32.mrf.mxu0
      %v500 = vadd.f32 %v342, %v499
      %501 = vmatprep.mubr.bf16.mxu0 0
      %502 = vmatmul.mubr.bf16.gmra.mxu0 %v363
      %v503 = vpop.f32.mrf.mxu0
      %v504 = vadd.f32 %v338, %v503
      %v505 = vpop.f32.mrf.mxu0
      %v506 = vadd.f32 %v342, %v505
      %v507 = vpop.f32.mrf.mxu0
      %v508 = vadd.f32 %v338, %v507
      %v509 = vpop.f32.mrf.mxu0
      %v510 = vadd.f32 %v342, %v509
      %511 = vmatprep.mubr.bf16.mxu0 0
      %512 = vmatmul.mubr.bf16.gmra.mxu0 %v364
      %v513 = vpop.f32.mrf.mxu0
      %v514 = vadd.f32 %v338, %v513
      %v515 = vpop.f32.mrf.mxu0
      %v516 = vadd.f32 %v342, %v515
      %v517 = vpop.f32.mrf.mxu0
      %v518 = vadd.f32 %v338, %v517
      %v519 = vpop.f32.mrf.mxu0
      %v520 = vadd.f32 %v342, %v519
      %521 = vdwg.mxu0
      %v522 = vmax.f32 %v484, 0.0
      %v523 = vmax.f32 %v486, 0.0
      %v524 = vmax.f32 %v488, 0.0
      %v525 = vmax.f32 %v490, 0.0
      %v526 = vmax.f32 %v494, 0.0
      %v527 = vmax.f32 %v496, 0.0
      %v528 = vmax.f32 %v498, 0.0
      %v529 = vmax.f32 %v500, 0.0
      %v530 = vmax.f32 %v504, 0.0
      %v531 = vmax.f32 %v506, 0.0
      %v532 = vmax.f32 %v508, 0.0
      %v533 = vmax.f32 %v510, 0.0
      %v534 = vmax.f32 %v514, 0.0
      %v535 = vmax.f32 %v516, 0.0
      %v536 = vmax.f32 %v518, 0.0
      %v537 = vmax.f32 %v520, 0.0
      %v538 = vld [vmem:[%s287] sm:$0x3]
      %v540 = vlaneseq
      %v541 = vshrl.u32 %v540, 7
      %v542 = vsub.s32 0, %v541
      %v543 = vrot.slane %v538, %v542
      %v544 = vlaneseq
      %v545 = vshrl.u32 %v544, 7
      %v546 = vsub.s32 1, %v545
      %v547 = vrot.slane %v538, %v546
      %v550 = vmul.f32 %v522, %v543
      %v551 = vmul.f32 %v523, %v547
      %v552 = vmul.f32 %v524, %v543
      %v553 = vmul.f32 %v525, %v547
      %v554 = vmul.f32 %v526, %v543
      %v555 = vmul.f32 %v527, %v547
      %v556 = vmul.f32 %v528, %v543
      %v557 = vmul.f32 %v529, %v547
      %v558 = vmul.f32 %v530, %v543
      %v559 = vmul.f32 %v531, %v547
      %v560 = vmul.f32 %v532, %v543
      %v561 = vmul.f32 %v533, %v547
      %v562 = vmul.f32 %v534, %v543
      %v563 = vmul.f32 %v535, %v547
      %v564 = vmul.f32 %v536, %v543
      %v565 = vmul.f32 %v537, %v547
      %v566 = vpack.c.bf16 %v552, %v550
      %v567 = vpack.c.bf16 %v553, %v551
      %v568 = vpack.c.bf16 %v556, %v554
      %v569 = vpack.c.bf16 %v557, %v555
      %v570 = vpack.c.bf16 %v560, %v558
      %v571 = vpack.c.bf16 %v561, %v559
      %v572 = vpack.c.bf16 %v564, %v562
      %v573 = vpack.c.bf16 %v565, %v563
      %v574 = vld [vmem:[%s4] sm:$0xf]
      %v575 = vld [vmem:[%s4 + $0x4] sm:$0xf]
      %v576 = vld [vmem:[%s4 + $0x8] sm:$0xf]
      %v577 = vld [vmem:[%s4 + $0xc] sm:$0xf]
      %v578 = vld [vmem:[%s4 + $0x10] sm:$0xf]
      %v579 = vld [vmem:[%s4 + $0x14] sm:$0xf]
      %v580 = vld [vmem:[%s4 + $0x18] sm:$0xf]
      %v581 = vld [vmem:[%s4 + $0x1c] sm:$0xf]
      %v582 = vld [vmem:[%s4 + $0x20] sm:$0xf]
      %v583 = vld [vmem:[%s4 + $0x24] sm:$0xf]
      %v584 = vld [vmem:[%s4 + $0x28] sm:$0xf]
      %v585 = vld [vmem:[%s4 + $0x2c] sm:$0xf]
      %v586 = vld [vmem:[%s4 + $0x30] sm:$0xf]
      %v587 = vld [vmem:[%s4 + $0x34] sm:$0xf]
      %v588 = vld [vmem:[%s4 + $0x38] sm:$0xf]
      %v589 = vld [vmem:[%s4 + $0x3c] sm:$0xf]
      %v590 = vld [vmem:[%s4 + $0x40] sm:$0xf]
      %v591 = vld [vmem:[%s4 + $0x44] sm:$0xf]
      %v592 = vld [vmem:[%s4 + $0x48] sm:$0xf]
      %v593 = vld [vmem:[%s4 + $0x4c] sm:$0xf]
      %v594 = vld [vmem:[%s4 + $0x50] sm:$0xf]
      %v595 = vld [vmem:[%s4 + $0x54] sm:$0xf]
      %v596 = vld [vmem:[%s4 + $0x58] sm:$0xf]
      %v597 = vld [vmem:[%s4 + $0x5c] sm:$0xf]
      %v598 = vld [vmem:[%s4 + $0x60] sm:$0xf]
      %v599 = vld [vmem:[%s4 + $0x64] sm:$0xf]
      %v600 = vld [vmem:[%s4 + $0x68] sm:$0xf]
      %v601 = vld [vmem:[%s4 + $0x6c] sm:$0xf]
      %v602 = vld [vmem:[%s4 + $0x70] sm:$0xf]
      %v603 = vld [vmem:[%s4 + $0x74] sm:$0xf]
      %v604 = vld [vmem:[%s4 + $0x78] sm:$0xf]
      %v605 = vld [vmem:[%s4 + $0x7c] sm:$0xf]
      %v606 = vld [vmem:[%s5] sm:$0x1]
      %v608 = vlaneseq
      %v609 = vshrl.u32 %v608, 7
      %v610 = vsub.s32 0, %v609
      %v611 = vrot.slane %v606, %v610
      %v645 = vunpack.c.l.b16 %v574
      %v646 = vunpack.c.l.b16 %v575
      %v647 = vunpack.c.l.b16 %v576
      %v648 = vunpack.c.l.b16 %v577
      %v649 = vunpack.c.l.b16 %v578
      %v650 = vunpack.c.l.b16 %v579
      %v651 = vunpack.c.l.b16 %v580
      %v652 = vunpack.c.l.b16 %v581
      %v653 = vunpack.c.l.b16 %v582
      %v654 = vunpack.c.l.b16 %v583
      %v655 = vunpack.c.l.b16 %v584
      %v656 = vunpack.c.l.b16 %v585
      %v657 = vunpack.c.l.b16 %v586
      %v658 = vunpack.c.l.b16 %v587
      %v659 = vunpack.c.l.b16 %v588
      %v660 = vunpack.c.l.b16 %v589
      %v661 = vunpack.c.l.b16 %v590
      %v662 = vunpack.c.l.b16 %v591
      %v663 = vunpack.c.l.b16 %v592
      %v664 = vunpack.c.l.b16 %v593
      %v665 = vunpack.c.l.b16 %v594
      %v666 = vunpack.c.l.b16 %v595
      %v667 = vunpack.c.l.b16 %v596
      %v668 = vunpack.c.l.b16 %v597
      %v669 = vunpack.c.l.b16 %v598
      %v670 = vunpack.c.l.b16 %v599
      %v671 = vunpack.c.l.b16 %v600
      %v672 = vunpack.c.l.b16 %v601
      %v673 = vunpack.c.l.b16 %v602
      %v674 = vunpack.c.l.b16 %v603
      %v675 = vunpack.c.l.b16 %v604
      %v676 = vunpack.c.l.b16 %v605
      %v677 = vpack.c.b16 %v646, %v645
      %v678 = vpack.c.b16 %v648, %v647
      %v679 = vpack.c.b16 %v650, %v649
      %v680 = vpack.c.b16 %v652, %v651
      %v681 = vpack.c.b16 %v654, %v653
      %v682 = vpack.c.b16 %v656, %v655
      %v683 = vpack.c.b16 %v658, %v657
      %v684 = vpack.c.b16 %v660, %v659
      %v685 = vpack.c.b16 %v662, %v661
      %v686 = vpack.c.b16 %v664, %v663
      %v687 = vpack.c.b16 %v666, %v665
      %v688 = vpack.c.b16 %v668, %v667
      %v689 = vpack.c.b16 %v670, %v669
      %v690 = vpack.c.b16 %v672, %v671
      %v691 = vpack.c.b16 %v674, %v673
      %v692 = vpack.c.b16 %v676, %v675
      %709 = vmatprep.subr.bf16.mxu0 0
      %710 = vmatpush1.bf16.msra.mxu0 %v684
      %711 = vmatprep.subr.bf16.mxu0 0
      %712 = vmatpush1.bf16.msra.mxu0 %v683
      %713 = vmatprep.subr.bf16.mxu0 0
      %714 = vmatpush1.bf16.msra.mxu0 %v682
      %715 = vmatprep.subr.bf16.mxu0 0
      %716 = vmatpush1.bf16.msra.mxu0 %v681
      %717 = vmatprep.subr.bf16.mxu0 0
      %718 = vmatpush1.bf16.msra.mxu0 %v680
      %719 = vmatprep.subr.bf16.mxu0 0
      %720 = vmatpush1.bf16.msra.mxu0 %v679
      %721 = vmatprep.subr.bf16.mxu0 0
      %722 = vmatpush1.bf16.msra.mxu0 %v678
      %723 = vmatprep.subr.bf16.mxu0 0
      %724 = vmatpush1.bf16.msra.mxu0 %v677
      %725 = vmatprep.subr.bf16.mxu0 0
      %726 = vmatpush2.bf16.msra.mxu0 %v692
      %727 = vmatprep.subr.bf16.mxu0 0
      %728 = vmatpush2.bf16.msra.mxu0 %v691
      %729 = vmatprep.subr.bf16.mxu0 0
      %730 = vmatpush2.bf16.msra.mxu0 %v690
      %731 = vmatprep.subr.bf16.mxu0 0
      %732 = vmatpush2.bf16.msra.mxu0 %v689
      %733 = vmatprep.subr.bf16.mxu0 0
      %734 = vmatpush2.bf16.msra.mxu0 %v688
      %735 = vmatprep.subr.bf16.mxu0 0
      %736 = vmatpush2.bf16.msra.mxu0 %v687
      %737 = vmatprep.subr.bf16.mxu0 0
      %738 = vmatpush2.bf16.msra.mxu0 %v686
      %739 = vmatprep.subr.bf16.mxu0 0
      %740 = vmatpush2.bf16.msra.mxu0 %v685
      %741 = vmatprep.mubr.bf16.mxu0 %v567
      %742 = vmatmul.mubr.bf16.gmra.mxu0 %v566
      %v743 = vpop.f32.mrf.mxu0
      %v744 = vadd.f32 %v611, %v743
      %v745 = vpop.f32.mrf.mxu0
      %v746 = vpop.f32.mrf.mxu0
      %v747 = vadd.f32 %v611, %v746
      %v748 = vpop.f32.mrf.mxu0
      %749 = vmatprep.mubr.bf16.mxu0 %v569
      %750 = vmatmul.mubr.bf16.gmra.mxu0 %v568
      %v751 = vpop.f32.mrf.mxu0
      %v752 = vadd.f32 %v611, %v751
      %v753 = vpop.f32.mrf.mxu0
      %v754 = vpop.f32.mrf.mxu0
      %v755 = vadd.f32 %v611, %v754
      %v756 = vpop.f32.mrf.mxu0
      %757 = vmatprep.mubr.bf16.mxu0 %v571
      %758 = vmatmul.mubr.bf16.gmra.mxu0 %v570
      %v759 = vpop.f32.mrf.mxu0
      %v760 = vadd.f32 %v611, %v759
      %v761 = vpop.f32.mrf.mxu0
      %v762 = vpop.f32.mrf.mxu0
      %v763 = vadd.f32 %v611, %v762
      %v764 = vpop.f32.mrf.mxu0
      %765 = vmatprep.mubr.bf16.mxu0 %v573
      %766 = vmatmul.mubr.bf16.gmra.mxu0 %v572
      %v767 = vpop.f32.mrf.mxu0
      %v768 = vadd.f32 %v611, %v767
      %v769 = vpop.f32.mrf.mxu0
      %v770 = vpop.f32.mrf.mxu0
      %v771 = vadd.f32 %v611, %v770
      %v772 = vpop.f32.mrf.mxu0
      %773 = vdwg.mxu0
      %v774 = vmax.f32 %v744, 0.0
      %v775 = vmax.f32 %v747, 0.0
      %v776 = vmax.f32 %v752, 0.0
      %v777 = vmax.f32 %v755, 0.0
      %v778 = vmax.f32 %v760, 0.0
      %v779 = vmax.f32 %v763, 0.0
      %v780 = vmax.f32 %v768, 0.0
      %v781 = vmax.f32 %v771, 0.0
      %v782 = vpack.c.bf16 %v775, %v774
      %v783 = vpack.c.bf16 %v777, %v776
      %v784 = vpack.c.bf16 %v779, %v778
      %v785 = vpack.c.bf16 %v781, %v780
      %v790 = vunpack.c.l.b16 %v782
      %v791 = vunpack.c.h.b16 %v782
      %v792 = vunpack.c.l.b16 %v783
      %v793 = vunpack.c.h.b16 %v783
      %v794 = vunpack.c.l.b16 %v784
      %v795 = vunpack.c.h.b16 %v784
      %v796 = vunpack.c.l.b16 %v785
      %v797 = vunpack.c.h.b16 %v785
      %v798 = vpack.c.b16 %v790, %v790
      %v799 = vpack.c.b16 %v791, %v791
      %v800 = vpack.c.b16 %v792, %v792
      %v801 = vpack.c.b16 %v793, %v793
      %v802 = vpack.c.b16 %v794, %v794
      %v803 = vpack.c.b16 %v795, %v795
      %v804 = vpack.c.b16 %v796, %v796
      %v805 = vpack.c.b16 %v797, %v797
      %814 = vst [vmem:[%s306] sm:$0xf] %v798
      %815 = vst [vmem:[%s306 + $0x4] sm:$0xf] %v799
      %816 = vst [vmem:[%s306 + $0x8] sm:$0xf] %v800
      %817 = vst [vmem:[%s306 + $0xc] sm:$0xf] %v801
      %818 = vst [vmem:[%s306 + $0x10] sm:$0xf] %v802
      %819 = vst [vmem:[%s306 + $0x14] sm:$0xf] %v803
      %820 = vst [vmem:[%s306 + $0x18] sm:$0xf] %v804
      %821 = vst [vmem:[%s306 + $0x1c] sm:$0xf] %v805
      %s822 = smul.u32 8, %s22
      %p823 = scmp.lt.s32.totalorder %s21, 1
      %s824 = scalar_select %p823, %s21, 1
      %p825 = scmp.lt.s32.totalorder %s822, 7
      %s826 = scalar_select %p825, %s822, 7
      %s827 = smul.addr %s824, 8
      %s828 = sadd.s32 %s826, %s827
      %s829 = smul.addr %s828, 4
      %s830 = scalar_lea.vmem %s6, %s829
      // Predicated region
      $region45: #{global_block_forward.5} parent=43 // pred_check
        %p831 = pneg %p187
      $region46: #{global_block_forward.5} parent=43 // pred_check_branch
        %833 = sbr.rel (%p831) target = $region48
      $region47: #{global_block_forward.5} parent=43 // pred_region
        %s834 = smul.u32 8, %s22
      $region48: #{global_block_forward.5} parent=43 // pred_fallthru
        _
    $region44: #{global_block_forward.5} parent=5 // pred_fallthru
      _
    %p835 = scmp.le.s32.totalorder 2, %s12
    // Predicated region
    $region49: #{global_block_forward.5} parent=5 // pred_check
      %p836 = pneg %p835
    $region50: #{global_block_forward.5} parent=5 // pred_check_branch
      %838 = sbr.rel (%p836) target = $region52
    $region51: #{global_block_forward.5} parent=5 // pred_region
      %s839 = ssub.s32 %s12, 2
      // Predicated region
      $region53: #{global_block_forward.5} parent=51 // pred_check
        %p840 = pneg %p193
      $region54: #{global_block_forward.5} parent=51 // pred_check_branch
        %842 = sbr.rel (%p840) target = $region56
      $region55: #{global_block_forward.5} parent=51 // pred_region
        %s843 = smul.u32 8, %s24
        %p844 = scmp.lt.s32.totalorder %s23, 1
        %s845 = scalar_select %p844, %s23, 1
        %p846 = scmp.lt.s32.totalorder %s843, 7
        %s847 = scalar_select %p846, %s843, 7
        %s848 = smul.addr %s845, 8
        %s849 = sadd.s32 %s847, %s848
        %s850 = smul.addr %s849, 4
        %s851 = scalar_lea.vmem %s6, %s850
      $region56: #{global_block_forward.5} parent=51 // pred_fallthru
        _
    $region52: #{global_block_forward.5} parent=5 // pred_fallthru
      _
  $region6: #{global_block_forward.5} parent=0 // loop_footer
    %s16 = sadd.s32 1, %s12
  $region7: #{global_block_forward.5} parent=0 // loop_footer_branch
    %11 = sbr.rel target = $region3
  $region8: #{global_block_forward.5} parent=0 // loop_exit
    _

// kernel: global_block_forward.3
$region0: #{global_block_forward.3}
  #allocation0 [shape = 'u32[]', space=smem, size = 0x4, offset = 0x4, fixed_abs, tag = 'smem constant byte address 0x4 - core index']
  #allocation1 [shape = 'u32[144,128]{1,0:T(1,128)}', space=vmem, size = 0x12000, scoped, tag = 'internal scratch']
  #allocation2 [shape = 'f32[1,256]{1,0:T(1,128)}', space=vmem, size = 0x400, scoped, tag = 'scratch operand']
  %s0 = inlined_call_operand.vmem [shape: bf16[2,6,4,9,128], index: 0, kind: input, shape index: {}, may-alias: {0,1}]
  %s1 = inlined_call_operand.vmem [shape: bf16[2,6,4,9,128], index: 1, kind: input, shape index: {}, may-alias: {0,1}]
  %s2 = inlined_call_operand.vmem [shape: bf16[9,128,256], index: 2, kind: input, shape index: {}]
  %s3 = inlined_call_operand.vmem [shape: f32[1,256], index: 3, kind: input, shape index: {}]
  %s4 = inlined_call_operand.vmem [shape: f32[2,1,256], index: 4, kind: output, shape index: {}]
  %s5 = sld [smem:[#allocation0]]
  $region57: #{global_block_forward.3} parent=0
    _
  %s7 = ssub.s32 1, %s5
  %s8 = scalar_select 0, %s7, %s5
  loop: start=0, step=1, limit=4
  $region2: #{global_block_forward.3} parent=0 // loop_pre_header
    _
  $region3: #{global_block_forward.3} parent=0 // loop_header
    %s10 = sphi 0, %s14
    %p11 = scmp.ge.s32.totalorder %s10, 4
    %s17 = sphi 0, %s29
    %s18 = sphi 0, %s25
    %s19 = sphi 0, %s17
    %s20 = sphi 0, %s18
    %s21 = sphi 0, %s19
    %s22 = sphi 0, %s20
    %s34 = sphi 0, %s36
    %s37 = sphi 0, %s34
    %s38 = sphi 0, %s37
    %s54 = sphi 0, %s38
    %s66 = sphi 0, %s68
    %s69 = sphi 0, %s66
    %s70 = sphi 0, %s69
    %s86 = sphi 0, %s70
    %s90 = sphi 0, %s90
    %s92 = sphi 0, %s90
    %s93 = sphi 0, %s92
    %s107 = sphi 0, %s93
    %s111 = sphi 0, %s111
    %s113 = sphi 0, %s111
    %s114 = sphi 0, %s113
    %s128 = sphi 0, %s114
    %s134 = sphi 0, %s136
    %s137 = sphi 0, %s134
    %s138 = sphi 0, %s137
    %s154 = sphi 0, %s138
  $region4: #{global_block_forward.3} parent=0 // loop_header_branch
    %13 = sbr.rel (%p11) target = $region8
  $region5: #{global_block_forward.3} parent=0 // loop_body
    %s15 = ssub.s32 %s10, 1
    %s16 = ssub.s32 %s10, 2
    %s23 = sadd.s32 1, %s18
    %p24 = scmp.ge.s32.totalorder %s23, 1
    %s25 = scalar_select %p24, 0, %s23
    %s26 = sadd.s32 1, %s17
    %s27 = scalar_select %p24, %s26, %s17
    %p28 = scmp.ge.s32.totalorder %s27, 2
    %s29 = scalar_select %p28, 0, %s27
    %s30 = ssub.s32 %s17, %s29
    %s31 = ssub.s32 %s18, %s25
    %s32 = sor.u32 %s30, %s31
    %p33 = scmp.eq.s32.totalorder %s32, 0
    %s35 = sadd.s32 %s34, 1
    %s36 = scalar_select %p33, %s34, %s35
    %p39 = pneg %p33
    %p40 = scmp.eq.s32.totalorder %s10, 1
    %p41 = por %p39, %p40
    %p42 = scmp.ne.s32.totalorder %s34, %s37
    %p43 = scmp.eq.s32.totalorder %s10, 0
    %p44 = por %p42, %p43
    %p45 = scmp.ne.s32.totalorder %s34, %s37
    %p46 = scmp.eq.s32.totalorder %s15, 1
    %p47 = por %p45, %p46
    %p48 = scmp.ne.s32.totalorder %s37, %s38
    %p49 = scmp.eq.s32.totalorder %s15, 0
    %p50 = por %p48, %p49
    %p51 = scmp.ne.s32.totalorder %s37, %s38
    %p52 = scmp.eq.s32.totalorder %s16, 1
    %p53 = por %p51, %p52
    %p55 = scmp.ne.s32.totalorder %s38, %s54
    %p56 = scmp.eq.s32.totalorder %s16, 0
    %p57 = por %p55, %p56
    %s58 = sadd.s32 %s18, 1
    %s59 = smul.u32 %s58, 5
    %s60 = sadd.s32 %s25, 1
    %s61 = smul.u32 %s60, 5
    %s62 = ssub.s32 %s17, %s29
    %s63 = ssub.s32 %s59, %s61
    %s64 = sor.u32 %s62, %s63
    %p65 = scmp.eq.s32.totalorder %s64, 0
    %s67 = sadd.s32 %s66, 1
    %s68 = scalar_select %p65, %s66, %s67
    %p71 = pneg %p65
    %p72 = scmp.eq.s32.totalorder %s10, 1
    %p73 = por %p71, %p72
    %p74 = scmp.ne.s32.totalorder %s66, %s69
    %p75 = scmp.eq.s32.totalorder %s10, 0
    %p76 = por %p74, %p75
    %p77 = scmp.ne.s32.totalorder %s66, %s69
    %p78 = scmp.eq.s32.totalorder %s15, 1
    %p79 = por %p77, %p78
    %p80 = scmp.ne.s32.totalorder %s69, %s70
    %p81 = scmp.eq.s32.totalorder %s15, 0
    %p82 = por %p80, %p81
    %p83 = scmp.ne.s32.totalorder %s69, %s70
    %p84 = scmp.eq.s32.totalorder %s16, 1
    %p85 = por %p83, %p84
    %p87 = scmp.ne.s32.totalorder %s70, %s86
    %p88 = scmp.eq.s32.totalorder %s16, 0
    %p89 = por %p87, %p88
    %s91 = sadd.s32 %s90, 1
    %p94 = scmp.eq.s32.totalorder %s10, 1
    %p95 = scmp.ne.s32.totalorder %s90, %s92
    %p96 = scmp.eq.s32.totalorder %s10, 0
    %p97 = por %p95, %p96
    %p98 = scmp.ne.s32.totalorder %s90, %s92
    %p99 = scmp.eq.s32.totalorder %s15, 1
    %p100 = por %p98, %p99
    %p101 = scmp.ne.s32.totalorder %s92, %s93
    %p102 = scmp.eq.s32.totalorder %s15, 0
    %p103 = por %p101, %p102
    %p104 = scmp.ne.s32.totalorder %s92, %s93
    %p105 = scmp.eq.s32.totalorder %s16, 1
    %p106 = por %p104, %p105
    %p108 = scmp.ne.s32.totalorder %s93, %s107
    %p109 = scmp.eq.s32.totalorder %s16, 0
    %p110 = por %p108, %p109
    %s112 = sadd.s32 %s111, 1
    %p115 = scmp.eq.s32.totalorder %s10, 1
    %p116 = scmp.ne.s32.totalorder %s111, %s113
    %p117 = scmp.eq.s32.totalorder %s10, 0
    %p118 = por %p116, %p117
    %p119 = scmp.ne.s32.totalorder %s111, %s113
    %p120 = scmp.eq.s32.totalorder %s15, 1
    %p121 = por %p119, %p120
    %p122 = scmp.ne.s32.totalorder %s113, %s114
    %p123 = scmp.eq.s32.totalorder %s15, 0
    %p124 = por %p122, %p123
    %p125 = scmp.ne.s32.totalorder %s113, %s114
    %p126 = scmp.eq.s32.totalorder %s16, 1
    %p127 = por %p125, %p126
    %p129 = scmp.ne.s32.totalorder %s114, %s128
    %p130 = scmp.eq.s32.totalorder %s16, 0
    %p131 = por %p129, %p130
    %s132 = ssub.s32 %s17, %s29
    %p133 = scmp.eq.s32.totalorder %s132, 0
    %s135 = sadd.s32 %s134, 1
    %s136 = scalar_select %p133, %s134, %s135
    %p139 = pneg %p133
    %p140 = scmp.eq.s32.totalorder %s10, 1
    %p141 = por %p139, %p140
    %p142 = scmp.ne.s32.totalorder %s134, %s137
    %p143 = scmp.eq.s32.totalorder %s10, 0
    %p144 = por %p142, %p143
    %p145 = scmp.ne.s32.totalorder %s134, %s137
    %p146 = scmp.eq.s32.totalorder %s15, 1
    %p147 = por %p145, %p146
    %p148 = scmp.ne.s32.totalorder %s137, %s138
    %p149 = scmp.eq.s32.totalorder %s15, 0
    %p150 = por %p148, %p149
    %p151 = scmp.ne.s32.totalorder %s137, %s138
    %p152 = scmp.eq.s32.totalorder %s16, 1
    %p153 = por %p151, %p152
    %p155 = scmp.ne.s32.totalorder %s138, %s154
    %p156 = scmp.eq.s32.totalorder %s16, 0
    %p157 = por %p155, %p156
    %p158 = scmp.le.s32.totalorder 1, %s10
    %p159 = scmp.lt.s32.totalorder %s10, 3
    %p160 = pnand %p158, %p159
    %p161 = pneg %p160
    // Predicated region
    $region9: #{global_block_forward.3} parent=5 // pred_check
      _
    $region10: #{global_block_forward.3} parent=5 // pred_check_branch
      %163 = sbr.rel (%p160) target = $region12
    $region11: #{global_block_forward.3} parent=5 // pred_region
      %s164 = ssub.s32 %s10, 1
      // Predicated region
      $region13: #{global_block_forward.3} parent=11 // pred_check
        %p165 = pneg %p103
      $region14: #{global_block_forward.3} parent=11 // pred_check_branch
        %167 = sbr.rel (%p165) target = $region16
      $region15: #{global_block_forward.3} parent=11 // pred_region
        _
      $region16: #{global_block_forward.3} parent=11 // pred_fallthru
        _
      // Predicated region
      $region17: #{global_block_forward.3} parent=11 // pred_check
        %p168 = pneg %p124
      $region18: #{global_block_forward.3} parent=11 // pred_check_branch
        %170 = sbr.rel (%p168) target = $region20
      $region19: #{global_block_forward.3} parent=11 // pred_region
        _
      $region20: #{global_block_forward.3} parent=11 // pred_fallthru
        _
    $region12: #{global_block_forward.3} parent=5 // pred_fallthru
      _
    %p171 = scmp.lt.s32.totalorder %s10, 2
    // Predicated region
    $region21: #{global_block_forward.3} parent=5 // pred_check
      %p172 = pneg %p171
    $region22: #{global_block_forward.3} parent=5 // pred_check_branch
      %174 = sbr.rel (%p172) target = $region24
    $region23: #{global_block_forward.3} parent=5 // pred_region
      // Predicated region
      $region25: #{global_block_forward.3} parent=23 // pred_check
        %p175 = pneg %p44
      $region26: #{global_block_forward.3} parent=23 // pred_check_branch
        %177 = sbr.rel (%p175) target = $region28
      $region27: #{global_block_forward.3} parent=23 // pred_region
        %s178 = smul.u32 5, %s18
        %s179 = ssub.s32 6, %s178
        %p180 = scmp.lt.s32.totalorder %s179, 5
        %s181 = scalar_select %p180, %s179, 5
        %s182 = smul.u32 64, %s181
        %s183 = smul.u32 %s182, 4
        %s184 = smul.u32 %s183, 2
        %p185 = scmp.lt.s32.totalorder %s17, 1
        %s186 = scalar_select %p185, %s17, 1
        %p187 = scmp.lt.s32.totalorder %s178, 5
        %s188 = scalar_select %p187, %s178, 5
        %s189 = smul.addr %s188, 8
        %s190 = smul.addr %s186, 48
        %s191 = sadd.s32 %s189, %s190
        %s192 = smul.addr %s191, 4
        %s193 = scalar_lea.vmem %s0, %s192
        %s194 = smul.u32 5, %s18
        %s195 = ssub.s32 6, %s194
        %p196 = scmp.lt.s32.totalorder %s195, 5
        %s197 = scalar_select %p196, %s195, 5
        %s198 = smul.u32 64, %s197
        %s199 = smul.u32 %s198, 4
        %s200 = smul.u32 %s199, 2
      $region28: #{global_block_forward.3} parent=23 // pred_fallthru
        _
      // Predicated region
      $region29: #{global_block_forward.3} parent=23 // pred_check
        %p201 = pneg %p76
      $region30: #{global_block_forward.3} parent=23 // pred_check_branch
        %203 = sbr.rel (%p201) target = $region32
      $region31: #{global_block_forward.3} parent=23 // pred_region
        %s204 = sadd.s32 %s18, 1
        %s205 = smul.u32 %s204, 5
        %p206 = scmp.lt.s32.totalorder %s17, 1
        %s207 = scalar_select %p206, %s17, 1
        %p208 = scmp.lt.s32.totalorder %s205, 5
        %s209 = scalar_select %p208, %s205, 5
        %s210 = smul.addr %s209, 8
        %s211 = smul.addr %s207, 48
        %s212 = sadd.s32 %s210, %s211
        %s213 = smul.addr %s212, 4
        %s214 = scalar_lea.vmem %s1, %s213
        %s215 = sadd.s32 %s18, 1
        %s216 = smul.u32 %s215, 5
      $region32: #{global_block_forward.3} parent=23 // pred_fallthru
        _
    $region24: #{global_block_forward.3} parent=5 // pred_fallthru
      _
    %p217 = scmp.le.s32.totalorder 1, %s10
    %p218 = scmp.lt.s32.totalorder %s10, 3
    %p219 = pnand %p217, %p218
    %p220 = pneg %p219
    // Predicated region
    $region33: #{global_block_forward.3} parent=5 // pred_check
      _
    $region34: #{global_block_forward.3} parent=5 // pred_check_branch
      %222 = sbr.rel (%p219) target = $region36
    $region35: #{global_block_forward.3} parent=5 // pred_region
      %s223 = ssub.s32 %s10, 1
      %s224 = smul.u32 5, %s20
      %s225 = ssub.s32 6, %s224
      %p226 = scmp.lt.s32.totalorder %s225, 5
      %s227 = scalar_select %p226, %s225, 5
      %s228 = smul.u32 64, %s227
      %s229 = smul.u32 %s228, 4
      %s230 = smul.u32 %s229, 2
      %p231 = scmp.lt.s32.totalorder %s19, 1
      %s232 = scalar_select %p231, %s19, 1
      %p233 = scmp.lt.s32.totalorder %s224, 5
      %s234 = scalar_select %p233, %s224, 5
      %s235 = smul.addr %s234, 8
      %s236 = smul.addr %s232, 48
      %s237 = sadd.s32 %s235, %s236
      %s238 = smul.addr %s237, 4
      %s239 = scalar_lea.vmem %s0, %s238
      %p240 = pneg %p50
      %p241 = pneg %p47
      %s242 = sadd.s32 %s20, 1
      %s243 = smul.u32 %s242, 5
      %p244 = scmp.lt.s32.totalorder %s19, 1
      %s245 = scalar_select %p244, %s19, 1
      %p246 = scmp.lt.s32.totalorder %s243, 5
      %s247 = scalar_select %p246, %s243, 5
      %s248 = smul.addr %s247, 8
      %s249 = smul.addr %s245, 48
      %s250 = sadd.s32 %s248, %s249
      %s251 = smul.addr %s250, 4
      %s252 = scalar_lea.vmem %s1, %s251
      %p253 = pneg %p82
      %p254 = pneg %p79
      %p255 = pneg %p103
      %p256 = pneg %p100
      %p257 = pneg %p124
      %p258 = pneg %p121
      %p259 = pneg %p150
      %p260 = pneg %p147
      %p261 = scmp.lt.s32.totalorder %s19, 1
      %s262 = scalar_select %p261, %s19, 1
      %s263 = smul.addr %s262, 2
      %s264 = scalar_lea.vmem %s4, %s263
      %s265 = smul.u32 5, %s20
      %s266 = ssub.s32 6, %s265
      %p267 = scmp.lt.s32.totalorder %s266, 5
      %s268 = scalar_select %p267, %s266, 5
      %s269 = smul.u32 64, %s268
      %s270 = smul.u32 %s269, 4
      %s271 = smul.u32 %s270, 2
      %p272 = scmp.lt.s32.totalorder %s19, 1
      %s273 = scalar_select %p272, %s19, 1
      %p274 = scmp.lt.s32.totalorder %s265, 5
      %s275 = scalar_select %p274, %s265, 5
      %s276 = smul.addr %s275, 8
      %s277 = smul.addr %s273, 48
      %s278 = sadd.s32 %s276, %s277
      %s279 = smul.addr %s278, 4
      %s280 = scalar_lea.vmem %s0, %s279
      %s281 = smul.u32 5, %s20
      %s282 = ssub.s32 6, %s281
      %p283 = scmp.lt.s32.totalorder %s282, 5
      %s284 = scalar_select %p283, %s282, 5
      %s285 = smul.u32 64, %s284
      %s286 = smul.u32 %s285, 4
      %s287 = smul.u32 %s286, 2
      %s288 = sadd.s32 %s20, 1
      %s289 = smul.u32 %s288, 5
      %p290 = scmp.lt.s32.totalorder %s19, 1
      %s291 = scalar_select %p290, %s19, 1
      %p292 = scmp.lt.s32.totalorder %s289, 5
      %s293 = scalar_select %p292, %s289, 5
      %s294 = smul.addr %s293, 8
      %s295 = smul.addr %s291, 48
      %s296 = sadd.s32 %s294, %s295
      %s297 = smul.addr %s296, 4
      %s298 = scalar_lea.vmem %s1, %s297
      %s299 = sadd.s32 %s20, 1
      %s300 = smul.u32 %s299, 5
      %p301 = scmp.lt.s32.totalorder %s19, 1
      %s302 = scalar_select %p301, %s19, 1
      %s303 = smul.addr %s302, 2
      %s304 = scalar_lea.vmem %s4, %s303
      %p306 = scmp.eq.s32.totalorder %s20, 0
      // Predicated region
      $region37: #{global_block_forward.3} parent=35 // pred_check
        %p307 = pneg %p306
      $region38: #{global_block_forward.3} parent=35 // pred_check_branch
        %309 = sbr.rel (%p307) target = $region40
      $region39: #{global_block_forward.3} parent=35 // pred_region
        %v310 = vlaneseq
        %vm311 = vcmp.ge.s32.totalorder %v310, 0
        %vm312 = vcmp.lt.s32.totalorder %v310, 256
        %vm313 = vmand %vm311, %vm312
        %314 = vst.msk [vmem:[#allocation2] sm:$0x3] %vm313, 0.0
      $region40: #{global_block_forward.3} parent=35 // pred_fallthru
        _
      %v315 = vld [vmem:[%s280] sm:$0xf]
      %v316 = vld [vmem:[%s280 + $0x4] sm:$0x1]
      %v317 = vld [vmem:[%s280 + $0x8] sm:$0xf]
      %v318 = vld [vmem:[%s280 + $0x10] sm:$0xf]
      %v319 = vld [vmem:[%s280 + $0x14] sm:$0x1]
      %v320 = vld [vmem:[%s280 + $0x18] sm:$0xf]
      %v321 = vld [vmem:[%s280 + $0x20] sm:$0xf]
      %v322 = vld [vmem:[%s280 + $0x24] sm:$0x1]
      %v323 = vld [vmem:[%s280 + $0x28] sm:$0xf]
      %v324 = vld [vmem:[%s280 + $0x30] sm:$0xf]
      %v325 = vld [vmem:[%s280 + $0x34] sm:$0x1]
      %v326 = vld [vmem:[%s280 + $0x38] sm:$0xf]
      %v327 = vld [vmem:[%s280 + $0x40] sm:$0xf]
      %v328 = vld [vmem:[%s280 + $0x44] sm:$0x1]
      %v329 = vld [vmem:[%s280 + $0x48] sm:$0xf]
      %v330 = vld [vmem:[%s280 + $0x50] sm:$0xf]
      %v331 = vld [vmem:[%s280 + $0x54] sm:$0x1]
      %v332 = vld [vmem:[%s280 + $0x58] sm:$0xf]
      %v333 = vld [vmem:[%s280 + $0x60] sm:$0xf]
      %v334 = vld [vmem:[%s280 + $0x64] sm:$0x1]
      %v335 = vld [vmem:[%s280 + $0x68] sm:$0xf]
      %v336 = vld [vmem:[%s280 + $0x70] sm:$0xf]
      %v337 = vld [vmem:[%s280 + $0x74] sm:$0x1]
      %v338 = vld [vmem:[%s280 + $0x78] sm:$0xf]
      %v339 = vld [vmem:[%s280 + $0x80] sm:$0xf]
      %v340 = vld [vmem:[%s280 + $0x84] sm:$0x1]
      %v341 = vld [vmem:[%s280 + $0x88] sm:$0xf]
      %v342 = vld [vmem:[%s280 + $0x90] sm:$0xf]
      %v343 = vld [vmem:[%s280 + $0x94] sm:$0x1]
      %v344 = vld [vmem:[%s280 + $0x98] sm:$0xf]
      %v345 = vld [vmem:[%s298] sm:$0xf]
      %v346 = vld [vmem:[%s298 + $0x4] sm:$0x1]
      %v347 = vld [vmem:[%s298 + $0x8] sm:$0xf]
      %v348 = vld [vmem:[%s2] sm:$0xff]
      %v349 = vld [vmem:[%s2 + $0x8] sm:$0xff]
      %v350 = vld [vmem:[%s2 + $0x10] sm:$0xff]
      %v351 = vld [vmem:[%s2 + $0x18] sm:$0xff]
      %v352 = vld [vmem:[%s2 + $0x20] sm:$0xff]
      %v353 = vld [vmem:[%s2 + $0x28] sm:$0xff]
      %v354 = vld [vmem:[%s2 + $0x30] sm:$0xff]
      %v355 = vld [vmem:[%s2 + $0x38] sm:$0xff]
      %v356 = vld [vmem:[%s2 + $0x40] sm:$0xff]
      %v357 = vld [vmem:[%s2 + $0x48] sm:$0xff]
      %v358 = vld [vmem:[%s2 + $0x50] sm:$0xff]
      %v359 = vld [vmem:[%s2 + $0x58] sm:$0xff]
      %v360 = vld [vmem:[%s2 + $0x60] sm:$0xff]
      %v361 = vld [vmem:[%s2 + $0x68] sm:$0xff]
      %v362 = vld [vmem:[%s2 + $0x70] sm:$0xff]
      %v363 = vld [vmem:[%s2 + $0x78] sm:$0xff]
      %s364 = scalar_lea.vmem %s2, 128
      %v365 = vld [vmem:[%s364] sm:$0xff]
      %v366 = vld [vmem:[%s364 + $0x8] sm:$0xff]
      %v367 = vld [vmem:[%s364 + $0x10] sm:$0xff]
      %v368 = vld [vmem:[%s364 + $0x18] sm:$0xff]
      %v369 = vld [vmem:[%s364 + $0x20] sm:$0xff]
      %v370 = vld [vmem:[%s364 + $0x28] sm:$0xff]
      %v371 = vld [vmem:[%s364 + $0x30] sm:$0xff]
      %v372 = vld [vmem:[%s364 + $0x38] sm:$0xff]
      %v373 = vld [vmem:[%s364 + $0x40] sm:$0xff]
      %v374 = vld [vmem:[%s364 + $0x48] sm:$0xff]
      %v375 = vld [vmem:[%s364 + $0x50] sm:$0xff]
      %v376 = vld [vmem:[%s364 + $0x58] sm:$0xff]
      %v377 = vld [vmem:[%s364 + $0x60] sm:$0xff]
      %v378 = vld [vmem:[%s364 + $0x68] sm:$0xff]
      %v379 = vld [vmem:[%s364 + $0x70] sm:$0xff]
      %v380 = vld [vmem:[%s364 + $0x78] sm:$0xff]
      %v386 = vunpack.c.l.b16 %v317
      %v387 = vunpack.c.l.b16 %v323
      %v388 = vunpack.c.l.b16 %v329
      %v389 = vunpack.c.l.b16 %v335
      %v390 = vunpack.c.l.b16 %v341
      %v391 = vpack.c.b16 %v387, %v386
      %v392 = vpack.c.b16 %v389, %v388
      %v393 = vpack.c.b16 %v390, %v390
      %v413 = vunpack.c.l.b16 %v365
      %v414 = vunpack.c.h.b16 %v365
      %v415 = vunpack.c.l.b16 %v366
      %v416 = vunpack.c.h.b16 %v366
      %v417 = vunpack.c.l.b16 %v367
      %v418 = vunpack.c.h.b16 %v367
      %v419 = vunpack.c.l.b16 %v368
      %v420 = vunpack.c.h.b16 %v368
      %v421 = vunpack.c.l.b16 %v369
      %v422 = vunpack.c.h.b16 %v369
      %v423 = vunpack.c.l.b16 %v370
      %v424 = vunpack.c.h.b16 %v370
      %v425 = vunpack.c.l.b16 %v371
      %v426 = vunpack.c.h.b16 %v371
      %v427 = vunpack.c.l.b16 %v372
      %v428 = vunpack.c.h.b16 %v372
      %v429 = vunpack.c.l.b16 %v373
      %v430 = vunpack.c.h.b16 %v373
      %v431 = vunpack.c.l.b16 %v374
      %v432 = vunpack.c.h.b16 %v374
      %v433 = vunpack.c.l.b16 %v375
      %v434 = vunpack.c.h.b16 %v375
      %v435 = vunpack.c.l.b16 %v376
      %v436 = vunpack.c.h.b16 %v376
      %v437 = vunpack.c.l.b16 %v377
      %v438 = vunpack.c.h.b16 %v377
      %v439 = vunpack.c.l.b16 %v378
      %v440 = vunpack.c.h.b16 %v378
      %v441 = vunpack.c.l.b16 %v379
      %v442 = vunpack.c.h.b16 %v379
      %v443 = vunpack.c.l.b16 %v380
      %v444 = vunpack.c.h.b16 %v380
      %v445 = vpack.c.b16 %v415, %v413
      %v446 = vpack.c.b16 %v416, %v414
      %v447 = vpack.c.b16 %v419, %v417
      %v448 = vpack.c.b16 %v420, %v418
      %v449 = vpack.c.b16 %v423, %v421
      %v450 = vpack.c.b16 %v424, %v422
      %v451 = vpack.c.b16 %v427, %v425
      %v452 = vpack.c.b16 %v428, %v426
      %v453 = vpack.c.b16 %v431, %v429
      %v454 = vpack.c.b16 %v432, %v430
      %v455 = vpack.c.b16 %v435, %v433
      %v456 = vpack.c.b16 %v436, %v434
      %v457 = vpack.c.b16 %v439, %v437
      %v458 = vpack.c.b16 %v440, %v438
      %v459 = vpack.c.b16 %v443, %v441
      %v460 = vpack.c.b16 %v444, %v442
      %477 = vmatprep.subr.bf16.mxu0 %v460
      %478 = vmatpush1.bf16.msra.mxu0 %v459
      %479 = vmatprep.subr.bf16.mxu0 %v458
      %480 = vmatpush1.bf16.msra.mxu0 %v457
      %481 = vmatprep.subr.bf16.mxu0 %v456
      %482 = vmatpush1.bf16.msra.mxu0 %v455
      %483 = vmatprep.subr.bf16.mxu0 %v454
      %484 = vmatpush1.bf16.msra.mxu0 %v453
      %485 = vmatprep.subr.bf16.mxu0 %v452
      %486 = vmatpush1.bf16.msra.mxu0 %v451
      %487 = vmatprep.subr.bf16.mxu0 %v450
      %488 = vmatpush1.bf16.msra.mxu0 %v449
      %489 = vmatprep.subr.bf16.mxu0 %v448
      %490 = vmatpush1.bf16.msra.mxu0 %v447
      %491 = vmatprep.subr.bf16.mxu0 %v446
      %492 = vmatpush1.bf16.msra.mxu0 %v445
      %493 = vmatprep.subr.bf16.mxu0 0
      %494 = vmatpush2.bf16.msra.mxu0 0
      %495 = vmatprep.subr.bf16.mxu0 0
      %496 = vmatpush2.bf16.msra.mxu0 0
      %497 = vmatprep.subr.bf16.mxu0 0
      %498 = vmatpush2.bf16.msra.mxu0 0
      %499 = vmatprep.subr.bf16.mxu0 0
      %500 = vmatpush2.bf16.msra.mxu0 0
      %501 = vmatprep.subr.bf16.mxu0 0
      %502 = vmatpush2.bf16.msra.mxu0 0
      %503 = vmatprep.subr.bf16.mxu0 0
      %504 = vmatpush2.bf16.msra.mxu0 0
      %505 = vmatprep.subr.bf16.mxu0 0
      %506 = vmatpush2.bf16.msra.mxu0 0
      %507 = vmatprep.subr.bf16.mxu0 0
      %508 = vmatpush2.bf16.msra.mxu0 0
      %509 = vmatprep.mubr.bf16.mxu0 0
      %510 = vmatmul.mubr.bf16.gmra.mxu0 %v391
      %v511 = vpop.f32.mrf.mxu0
      %v512 = vadd.f32 0.0, %v511
      %v513 = vpop.f32.mrf.mxu0
      %v514 = vadd.f32 0.0, %v513
      %v515 = vpop.f32.mrf.mxu0
      %v516 = vadd.f32 0.0, %v515
      %v517 = vpop.f32.mrf.mxu0
      %v518 = vadd.f32 0.0, %v517
      %519 = vmatprep.mubr.bf16.mxu0 0
      %520 = vmatmul.mubr.bf16.gmra.mxu0 %v392
      %v521 = vpop.f32.mrf.mxu0
      %v522 = vadd.f32 0.0, %v521
      %v523 = vpop.f32.mrf.mxu0
      %v524 = vadd.f32 0.0, %v523
      %v525 = vpop.f32.mrf.mxu0
      %v526 = vadd.f32 0.0, %v525
      %v527 = vpop.f32.mrf.mxu0
      %v528 = vadd.f32 0.0, %v527
      %529 = vmatprep.mubr.bf16.mxu0 0
      %530 = vmatmul.mubr.bf16.gmra.mxu0 %v393
      %v531 = vpop.f32.mrf.mxu0
      %v532 = vadd.f32 0.0, %v531
      %v533 = vpop.f32.mrf.mxu0
      %v534 = vadd.f32 0.0, %v533
      %v535 = vpop.f32.mrf.mxu0
      %v536 = vpop.f32.mrf.mxu0
      %537 = vdwg.mxu0
      %v543 = vunpack.c.l.b16 %v315
      %v544 = vunpack.c.l.b16 %v321
      %v545 = vunpack.c.l.b16 %v327
      %v546 = vunpack.c.l.b16 %v333
      %v547 = vunpack.c.l.b16 %v339
      %v548 = vpack.c.b16 %v544, %v543
      %v549 = vpack.c.b16 %v546, %v545
      %v550 = vpack.c.b16 %v547, %v547
      %v570 = vunpack.c.l.b16 %v348
      %v571 = vunpack.c.h.b16 %v348
      %v572 = vunpack.c.l.b16 %v349
      %v573 = vunpack.c.h.b16 %v349
      %v574 = vunpack.c.l.b16 %v350
      %v575 = vunpack.c.h.b16 %v350
      %v576 = vunpack.c.l.b16 %v351
      %v577 = vunpack.c.h.b16 %v351
      %v578 = vunpack.c.l.b16 %v352
      %v579 = vunpack.c.h.b16 %v352
      %v580 = vunpack.c.l.b16 %v353
      %v581 = vunpack.c.h.b16 %v353
      %v582 = vunpack.c.l.b16 %v354
      %v583 = vunpack.c.h.b16 %v354
      %v584 = vunpack.c.l.b16 %v355
      %v585 = vunpack.c.h.b16 %v355
      %v586 = vunpack.c.l.b16 %v356
      %v587 = vunpack.c.h.b16 %v356
      %v588 = vunpack.c.l.b16 %v357
      %v589 = vunpack.c.h.b16 %v357
      %v590 = vunpack.c.l.b16 %v358
      %v591 = vunpack.c.h.b16 %v358
      %v592 = vunpack.c.l.b16 %v359
      %v593 = vunpack.c.h.b16 %v359
      %v594 = vunpack.c.l.b16 %v360
      %v595 = vunpack.c.h.b16 %v360
      %v596 = vunpack.c.l.b16 %v361
      %v597 = vunpack.c.h.b16 %v361
      %v598 = vunpack.c.l.b16 %v362
      %v599 = vunpack.c.h.b16 %v362
      %v600 = vunpack.c.l.b16 %v363
      %v601 = vunpack.c.h.b16 %v363
      %v602 = vpack.c.b16 %v572, %v570
      %v603 = vpack.c.b16 %v573, %v571
      %v604 = vpack.c.b16 %v576, %v574
      %v605 = vpack.c.b16 %v577, %v575
      %v606 = vpack.c.b16 %v580, %v578
      %v607 = vpack.c.b16 %v581, %v579
      %v608 = vpack.c.b16 %v584, %v582
      %v609 = vpack.c.b16 %v585, %v583
      %v610 = vpack.c.b16 %v588, %v586
      %v611 = vpack.c.b16 %v589, %v587
      %v612 = vpack.c.b16 %v592, %v590
      %v613 = vpack.c.b16 %v593, %v591
      %v614 = vpack.c.b16 %v596, %v594
      %v615 = vpack.c.b16 %v597, %v595
      %v616 = vpack.c.b16 %v600, %v598
      %v617 = vpack.c.b16 %v601, %v599
      %634 = vmatprep.subr.bf16.mxu0 %v617
      %635 = vmatpush1.bf16.msra.mxu0 %v616
      %636 = vmatprep.subr.bf16.mxu0 %v615
      %637 = vmatpush1.bf16.msra.mxu0 %v614
      %638 = vmatprep.subr.bf16.mxu0 %v613
      %639 = vmatpush1.bf16.msra.mxu0 %v612
      %640 = vmatprep.subr.bf16.mxu0 %v611
      %641 = vmatpush1.bf16.msra.mxu0 %v610
      %642 = vmatprep.subr.bf16.mxu0 %v609
      %643 = vmatpush1.bf16.msra.mxu0 %v608
      %644 = vmatprep.subr.bf16.mxu0 %v607
      %645 = vmatpush1.bf16.msra.mxu0 %v606
      %646 = vmatprep.subr.bf16.mxu0 %v605
      %647 = vmatpush1.bf16.msra.mxu0 %v604
      %648 = vmatprep.subr.bf16.mxu0 %v603
      %649 = vmatpush1.bf16.msra.mxu0 %v602
      %650 = vmatprep.subr.bf16.mxu0 0
      %651 = vmatpush2.bf16.msra.mxu0 0
      %652 = vmatprep.subr.bf16.mxu0 0
      %653 = vmatpush2.bf16.msra.mxu0 0
      %654 = vmatprep.subr.bf16.mxu0 0
      %655 = vmatpush2.bf16.msra.mxu0 0
      %656 = vmatprep.subr.bf16.mxu0 0
      %657 = vmatpush2.bf16.msra.mxu0 0
      %658 = vmatprep.subr.bf16.mxu0 0
      %659 = vmatpush2.bf16.msra.mxu0 0
      %660 = vmatprep.subr.bf16.mxu0 0
      %661 = vmatpush2.bf16.msra.mxu0 0
      %662 = vmatprep.subr.bf16.mxu0 0
      %663 = vmatpush2.bf16.msra.mxu0 0
      %664 = vmatprep.subr.bf16.mxu0 0
      %665 = vmatpush2.bf16.msra.mxu0 0
      %666 = vmatprep.mubr.bf16.mxu0 0
      %667 = vmatmul.mubr.bf16.gmra.mxu0 %v548
      %v668 = vpop.f32.mrf.mxu0
      %v669 = vadd.f32 %v512, %v668
      %v670 = vpop.f32.mrf.mxu0
      %v671 = vadd.f32 %v514, %v670
      %v672 = vpop.f32.mrf.mxu0
      %v673 = vadd.f32 %v516, %v672
      %v674 = vpop.f32.mrf.mxu0
      %v675 = vadd.f32 %v518, %v674
      %676 = vmatprep.mubr.bf16.mxu0 0
      %677 = vmatmul.mubr.bf16.gmra.mxu0 %v549
      %v678 = vpop.f32.mrf.mxu0
      %v679 = vadd.f32 %v522, %v678
      %v680 = vpop.f32.mrf.mxu0
      %v681 = vadd.f32 %v524, %v680
      %v682 = vpop.f32.mrf.mxu0
      %v683 = vadd.f32 %v526, %v682
      %v684 = vpop.f32.mrf.mxu0
      %v685 = vadd.f32 %v528, %v684
      %686 = vmatprep.mubr.bf16.mxu0 0
      %687 = vmatmul.mubr.bf16.gmra.mxu0 %v550
      %v688 = vpop.f32.mrf.mxu0
      %v689 = vadd.f32 %v532, %v688
      %v690 = vpop.f32.mrf.mxu0
      %v691 = vadd.f32 %v534, %v690
      %v692 = vpop.f32.mrf.mxu0
      %v693 = vpop.f32.mrf.mxu0
      %694 = vdwg.mxu0
      %vm695 = vsmask.f32 3328
      %vm696 = vsmask.f32 7440
      %vm697 = vmor %vm695, %vm696
      %v699 = vshrl.u32 %v315, 16
      %v701 = vrot.slane %v699, 4
      %v702 = vshll.u32 %v315, 16
      %v704 = vrot.slane %v702, 5
      %v705 = vor.u32 %v701, %v704
      %v706 = vrot.slane %v705, 4
      %v708 = vshll.u32 %v316, 16
      %v710 = vrot.slane %v708, 5
      %v711 = vsel %vm697, %v706, %v710
      %v713 = vshrl.u32 %v321, 16
      %v715 = vrot.slane %v713, 4
      %v716 = vshll.u32 %v321, 16
      %v718 = vrot.slane %v716, 5
      %v719 = vor.u32 %v715, %v718
      %v720 = vrot.slane %v719, 4
      %v722 = vshll.u32 %v322, 16
      %v724 = vrot.slane %v722, 5
      %v725 = vsel %vm697, %v720, %v724
      %v727 = vshrl.u32 %v327, 16
      %v729 = vrot.slane %v727, 4
      %v730 = vshll.u32 %v327, 16
      %v732 = vrot.slane %v730, 5
      %v733 = vor.u32 %v729, %v732
      %v734 = vrot.slane %v733, 4
      %v736 = vshll.u32 %v328, 16
      %v738 = vrot.slane %v736, 5
      %v739 = vsel %vm697, %v734, %v738
      %v741 = vshrl.u32 %v333, 16
      %v743 = vrot.slane %v741, 4
      %v744 = vshll.u32 %v333, 16
      %v746 = vrot.slane %v744, 5
      %v747 = vor.u32 %v743, %v746
      %v748 = vrot.slane %v747, 4
      %v750 = vshll.u32 %v334, 16
      %v752 = vrot.slane %v750, 5
      %v753 = vsel %vm697, %v748, %v752
      %v755 = vshrl.u32 %v339, 16
      %v757 = vrot.slane %v755, 4
      %v758 = vshll.u32 %v339, 16
      %v760 = vrot.slane %v758, 5
      %v761 = vor.u32 %v757, %v760
      %v762 = vrot.slane %v761, 4
      %v764 = vshll.u32 %v340, 16
      %v766 = vrot.slane %v764, 5
      %v767 = vsel %vm697, %v762, %v766
      %s768 = scalar_lea.vmem %s2, 256
      %v769 = vld [vmem:[%s768] sm:$0xff]
      %v770 = vld [vmem:[%s768 + $0x8] sm:$0xff]
      %v771 = vld [vmem:[%s768 + $0x10] sm:$0xff]
      %v772 = vld [vmem:[%s768 + $0x18] sm:$0xff]
      %v773 = vld [vmem:[%s768 + $0x20] sm:$0xff]
      %v774 = vld [vmem:[%s768 + $0x28] sm:$0xff]
      %v775 = vld [vmem:[%s768 + $0x30] sm:$0xff]
      %v776 = vld [vmem:[%s768 + $0x38] sm:$0xff]
      %v777 = vld [vmem:[%s768 + $0x40] sm:$0xff]
      %v778 = vld [vmem:[%s768 + $0x48] sm:$0xff]
      %v779 = vld [vmem:[%s768 + $0x50] sm:$0xff]
      %v780 = vld [vmem:[%s768 + $0x58] sm:$0xff]
      %v781 = vld [vmem:[%s768 + $0x60] sm:$0xff]
      %v782 = vld [vmem:[%s768 + $0x68] sm:$0xff]
      %v783 = vld [vmem:[%s768 + $0x70] sm:$0xff]
      %v784 = vld [vmem:[%s768 + $0x78] sm:$0xff]
      %v785 = vunpack.c.l.b16 %v711
      %v786 = vunpack.c.l.b16 %v725
      %v787 = vunpack.c.l.b16 %v739
      %v788 = vunpack.c.l.b16 %v753
      %v789 = vunpack.c.l.b16 %v767
      %v790 = vpack.c.b16 %v786, %v785
      %v791 = vpack.c.b16 %v788, %v787
      %v792 = vpack.c.b16 %v789, %v789
      %v812 = vunpack.c.l.b16 %v769
      %v813 = vunpack.c.h.b16 %v769
      %v814 = vunpack.c.l.b16 %v770
      %v815 = vunpack.c.h.b16 %v770
      %v816 = vunpack.c.l.b16 %v771
      %v817 = vunpack.c.h.b16 %v771
      %v818 = vunpack.c.l.b16 %v772
      %v819 = vunpack.c.h.b16 %v772
      %v820 = vunpack.c.l.b16 %v773
      %v821 = vunpack.c.h.b16 %v773
      %v822 = vunpack.c.l.b16 %v774
      %v823 = vunpack.c.h.b16 %v774
      %v824 = vunpack.c.l.b16 %v775
      %v825 = vunpack.c.h.b16 %v775
      %v826 = vunpack.c.l.b16 %v776
      %v827 = vunpack.c.h.b16 %v776
      %v828 = vunpack.c.l.b16 %v777
      %v829 = vunpack.c.h.b16 %v777
      %v830 = vunpack.c.l.b16 %v778
      %v831 = vunpack.c.h.b16 %v778
      %v832 = vunpack.c.l.b16 %v779
      %v833 = vunpack.c.h.b16 %v779
      %v834 = vunpack.c.l.b16 %v780
      %v835 = vunpack.c.h.b16 %v780
      %v836 = vunpack.c.l.b16 %v781
      %v837 = vunpack.c.h.b16 %v781
      %v838 = vunpack.c.l.b16 %v782
      %v839 = vunpack.c.h.b16 %v782
      %v840 = vunpack.c.l.b16 %v783
      %v841 = vunpack.c.h.b16 %v783
      %v842 = vunpack.c.l.b16 %v784
      %v843 = vunpack.c.h.b16 %v784
      %v844 = vpack.c.b16 %v814, %v812
      %v845 = vpack.c.b16 %v815, %v813
      %v846 = vpack.c.b16 %v818, %v816
      %v847 = vpack.c.b16 %v819, %v817
      %v848 = vpack.c.b16 %v822, %v820
      %v849 = vpack.c.b16 %v823, %v821
      %v850 = vpack.c.b16 %v826, %v824
      %v851 = vpack.c.b16 %v827, %v825
      %v852 = vpack.c.b16 %v830, %v828
      %v853 = vpack.c.b16 %v831, %v829
      %v854 = vpack.c.b16 %v834, %v832
      %v855 = vpack.c.b16 %v835, %v833
      %v856 = vpack.c.b16 %v838, %v836
      %v857 = vpack.c.b16 %v839, %v837
      %v858 = vpack.c.b16 %v842, %v840
      %v859 = vpack.c.b16 %v843, %v841
      %876 = vmatprep.subr.bf16.mxu0 %v859
      %877 = vmatpush1.bf16.msra.mxu0 %v858
      %878 = vmatprep.subr.bf16.mxu0 %v857
      %879 = vmatpush1.bf16.msra.mxu0 %v856
      %880 = vmatprep.subr.bf16.mxu0 %v855
      %881 = vmatpush1.bf16.msra.mxu0 %v854
      %882 = vmatprep.subr.bf16.mxu0 %v853
      %883 = vmatpush1.bf16.msra.mxu0 %v852
      %884 = vmatprep.subr.bf16.mxu0 %v851
      %885 = vmatpush1.bf16.msra.mxu0 %v850
      %886 = vmatprep.subr.bf16.mxu0 %v849
      %887 = vmatpush1.bf16.msra.mxu0 %v848
      %888 = vmatprep.subr.bf16.mxu0 %v847
      %889 = vmatpush1.bf16.msra.mxu0 %v846
      %890 = vmatprep.subr.bf16.mxu0 %v845
      %891 = vmatpush1.bf16.msra.mxu0 %v844
      %892 = vmatprep.subr.bf16.mxu0 0
      %893 = vmatpush2.bf16.msra.mxu0 0
      %894 = vmatprep.subr.bf16.mxu0 0
      %895 = vmatpush2.bf16.msra.mxu0 0
      %896 = vmatprep.subr.bf16.mxu0 0
      %897 = vmatpush2.bf16.msra.mxu0 0
      %898 = vmatprep.subr.bf16.mxu0 0
      %899 = vmatpush2.bf16.msra.mxu0 0
      %900 = vmatprep.subr.bf16.mxu0 0
      %901 = vmatpush2.bf16.msra.mxu0 0
      %902 = vmatprep.subr.bf16.mxu0 0
      %903 = vmatpush2.bf16.msra.mxu0 0
      %904 = vmatprep.subr.bf16.mxu0 0
      %905 = vmatpush2.bf16.msra.mxu0 0
      %906 = vmatprep.subr.bf16.mxu0 0
      %907 = vmatpush2.bf16.msra.mxu0 0
      %908 = vmatprep.mubr.bf16.mxu0 0
      %909 = vmatmul.mubr.bf16.gmra.mxu0 %v790
      %v910 = vpop.f32.mrf.mxu0
      %v911 = vadd.f32 0.0, %v910
      %v912 = vpop.f32.mrf.mxu0
      %v913 = vadd.f32 0.0, %v912
      %v914 = vpop.f32.mrf.mxu0
      %v915 = vadd.f32 0.0, %v914
      %v916 = vpop.f32.mrf.mxu0
      %v917 = vadd.f32 0.0, %v916
      %918 = vmatprep.mubr.bf16.mxu0 0
      %919 = vmatmul.mubr.bf16.gmra.mxu0 %v791
      %v920 = vpop.f32.mrf.mxu0
      %v921 = vadd.f32 0.0, %v920
      %v922 = vpop.f32.mrf.mxu0
      %v923 = vadd.f32 0.0, %v922
      %v924 = vpop.f32.mrf.mxu0
      %v925 = vadd.f32 0.0, %v924
      %v926 = vpop.f32.mrf.mxu0
      %v927 = vadd.f32 0.0, %v926
      %928 = vmatprep.mubr.bf16.mxu0 0
      %929 = vmatmul.mubr.bf16.gmra.mxu0 %v792
      %v930 = vpop.f32.mrf.mxu0
      %v931 = vadd.f32 0.0, %v930
      %v932 = vpop.f32.mrf.mxu0
      %v933 = vadd.f32 0.0, %v932
      %v934 = vpop.f32.mrf.mxu0
      %v935 = vpop.f32.mrf.mxu0
      %936 = vdwg.mxu0
      %v937 = vadd.f32 %v669, %v911
      %v938 = vadd.f32 %v671, %v913
      %v939 = vadd.f32 %v673, %v915
      %v940 = vadd.f32 %v675, %v917
      %v941 = vadd.f32 %v679, %v921
      %v942 = vadd.f32 %v681, %v923
      %v943 = vadd.f32 %v683, %v925
      %v944 = vadd.f32 %v685, %v927
      %v945 = vadd.f32 %v689, %v931
      %v946 = vadd.f32 %v691, %v933
      %s947 = scalar_lea.vmem %s2, 384
      %v948 = vld [vmem:[%s947] sm:$0xff]
      %v949 = vld [vmem:[%s947 + $0x8] sm:$0xff]
      %v950 = vld [vmem:[%s947 + $0x10] sm:$0xff]
      %v951 = vld [vmem:[%s947 + $0x18] sm:$0xff]
      %v952 = vld [vmem:[%s947 + $0x20] sm:$0xff]
      %v953 = vld [vmem:[%s947 + $0x28] sm:$0xff]
      %v954 = vld [vmem:[%s947 + $0x30] sm:$0xff]
      %v955 = vld [vmem:[%s947 + $0x38] sm:$0xff]
      %v956 = vld [vmem:[%s947 + $0x40] sm:$0xff]
      %v957 = vld [vmem:[%s947 + $0x48] sm:$0xff]
      %v958 = vld [vmem:[%s947 + $0x50] sm:$0xff]
      %v959 = vld [vmem:[%s947 + $0x58] sm:$0xff]
      %v960 = vld [vmem:[%s947 + $0x60] sm:$0xff]
      %v961 = vld [vmem:[%s947 + $0x68] sm:$0xff]
      %v962 = vld [vmem:[%s947 + $0x70] sm:$0xff]
      %v963 = vld [vmem:[%s947 + $0x78] sm:$0xff]
      %v969 = vunpack.c.l.b16 %v318
      %v970 = vunpack.c.l.b16 %v324
      %v971 = vunpack.c.l.b16 %v330
      %v972 = vunpack.c.l.b16 %v336
      %v973 = vunpack.c.l.b16 %v342
      %v974 = vpack.c.b16 %v970, %v969
      %v975 = vpack.c.b16 %v972, %v971
      %v976 = vpack.c.b16 %v973, %v973
      %v996 = vunpack.c.l.b16 %v948
      %v997 = vunpack.c.h.b16 %v948
      %v998 = vunpack.c.l.b16 %v949
      %v999 = vunpack.c.h.b16 %v949
      %v1000 = vunpack.c.l.b16 %v950
      %v1001 = vunpack.c.h.b16 %v950
      %v1002 = vunpack.c.l.b16 %v951
      %v1003 = vunpack.c.h.b16 %v951
      %v1004 = vunpack.c.l.b16 %v952
      %v1005 = vunpack.c.h.b16 %v952
      %v1006 = vunpack.c.l.b16 %v953
      %v1007 = vunpack.c.h.b16 %v953
      %v1008 = vunpack.c.l.b16 %v954
      %v1009 = vunpack.c.h.b16 %v954
      %v1010 = vunpack.c.l.b16 %v955
      %v1011 = vunpack.c.h.b16 %v955
      %v1012 = vunpack.c.l.b16 %v956
      %v1013 = vunpack.c.h.b16 %v956
      %v1014 = vunpack.c.l.b16 %v957
      %v1015 = vunpack.c.h.b16 %v957
      %v1016 = vunpack.c.l.b16 %v958
      %v1017 = vunpack.c.h.b16 %v958
      %v1018 = vunpack.c.l.b16 %v959
      %v1019 = vunpack.c.h.b16 %v959
      %v1020 = vunpack.c.l.b16 %v960
      %v1021 = vunpack.c.h.b16 %v960
      %v1022 = vunpack.c.l.b16 %v961
      %v1023 = vunpack.c.h.b16 %v961
      %v1024 = vunpack.c.l.b16 %v962
      %v1025 = vunpack.c.h.b16 %v962
      %v1026 = vunpack.c.l.b16 %v963
      %v1027 = vunpack.c.h.b16 %v963
      %v1028 = vpack.c.b16 %v998, %v996
      %v1029 = vpack.c.b16 %v999, %v997
      %v1030 = vpack.c.b16 %v1002, %v1000
      %v1031 = vpack.c.b16 %v1003, %v1001
      %v1032 = vpack.c.b16 %v1006, %v1004
      %v1033 = vpack.c.b16 %v1007, %v1005
      %v1034 = vpack.c.b16 %v1010, %v1008
      %v1035 = vpack.c.b16 %v1011, %v1009
      %v1036 = vpack.c.b16 %v1014, %v1012
      %v1037 = vpack.c.b16 %v1015, %v1013
      %v1038 = vpack.c.b16 %v1018, %v1016
      %v1039 = vpack.c.b16 %v1019, %v1017
      %v1040 = vpack.c.b16 %v1022, %v1020
      %v1041 = vpack.c.b16 %v1023, %v1021
      %v1042 = vpack.c.b16 %v1026, %v1024
      %v1043 = vpack.c.b16 %v1027, %v1025
      %1060 = vmatprep.subr.bf16.mxu0 %v1043
      %1061 = vmatpush1.bf16.msra.mxu0 %v1042
      %1062 = vmatprep.subr.bf16.mxu0 %v1041
      %1063 = vmatpush1.bf16.msra.mxu0 %v1040
      %1064 = vmatprep.subr.bf16.mxu0 %v1039
      %1065 = vmatpush1.bf16.msra.mxu0 %v1038
      %1066 = vmatprep.subr.bf16.mxu0 %v1037
      %1067 = vmatpush1.bf16.msra.mxu0 %v1036
      %1068 = vmatprep.subr.bf16.mxu0 %v1035
      %1069 = vmatpush1.bf16.msra.mxu0 %v1034
      %1070 = vmatprep.subr.bf16.mxu0 %v1033
      %1071 = vmatpush1.bf16.msra.mxu0 %v1032
      %1072 = vmatprep.subr.bf16.mxu0 %v1031
      %1073 = vmatpush1.bf16.msra.mxu0 %v1030
      %1074 = vmatprep.subr.bf16.mxu0 %v1029
      %1075 = vmatpush1.bf16.msra.mxu0 %v1028
      %1076 = vmatprep.subr.bf16.mxu0 0
      %1077 = vmatpush2.bf16.msra.mxu0 0
      %1078 = vmatprep.subr.bf16.mxu0 0
      %1079 = vmatpush2.bf16.msra.mxu0 0
      %1080 = vmatprep.subr.bf16.mxu0 0
      %1081 = vmatpush2.bf16.msra.mxu0 0
      %1082 = vmatprep.subr.bf16.mxu0 0
      %1083 = vmatpush2.bf16.msra.mxu0 0
      %1084 = vmatprep.subr.bf16.mxu0 0
      %1085 = vmatpush2.bf16.msra.mxu0 0
      %1086 = vmatprep.subr.bf16.mxu0 0
      %1087 = vmatpush2.bf16.msra.mxu0 0
      %1088 = vmatprep.subr.bf16.mxu0 0
      %1089 = vmatpush2.bf16.msra.mxu0 0
      %1090 = vmatprep.subr.bf16.mxu0 0
      %1091 = vmatpush2.bf16.msra.mxu0 0
      %1092 = vmatprep.mubr.bf16.mxu0 0
      %1093 = vmatmul.mubr.bf16.gmra.mxu0 %v974
      %v1094 = vpop.f32.mrf.mxu0
      %v1095 = vadd.f32 0.0, %v1094
      %v1096 = vpop.f32.mrf.mxu0
      %v1097 = vadd.f32 0.0, %v1096
      %v1098 = vpop.f32.mrf.mxu0
      %v1099 = vadd.f32 0.0, %v1098
      %v1100 = vpop.f32.mrf.mxu0
      %v1101 = vadd.f32 0.0, %v1100
      %1102 = vmatprep.mubr.bf16.mxu0 0
      %1103 = vmatmul.mubr.bf16.gmra.mxu0 %v975
      %v1104 = vpop.f32.mrf.mxu0
      %v1105 = vadd.f32 0.0, %v1104
      %v1106 = vpop.f32.mrf.mxu0
      %v1107 = vadd.f32 0.0, %v1106
      %v1108 = vpop.f32.mrf.mxu0
      %v1109 = vadd.f32 0.0, %v1108
      %v1110 = vpop.f32.mrf.mxu0
      %v1111 = vadd.f32 0.0, %v1110
      %1112 = vmatprep.mubr.bf16.mxu0 0
      %1113 = vmatmul.mubr.bf16.gmra.mxu0 %v976
      %v1114 = vpop.f32.mrf.mxu0
      %v1115 = vadd.f32 0.0, %v1114
      %v1116 = vpop.f32.mrf.mxu0
      %v1117 = vadd.f32 0.0, %v1116
      %v1118 = vpop.f32.mrf.mxu0
      %v1119 = vpop.f32.mrf.mxu0
      %1120 = vdwg.mxu0
      %v1121 = vadd.f32 %v937, %v1095
      %v1122 = vadd.f32 %v938, %v1097
      %v1123 = vadd.f32 %v939, %v1099
      %v1124 = vadd.f32 %v940, %v1101
      %v1125 = vadd.f32 %v941, %v1105
      %v1126 = vadd.f32 %v942, %v1107
      %v1127 = vadd.f32 %v943, %v1109
      %v1128 = vadd.f32 %v944, %v1111
      %v1129 = vadd.f32 %v945, %v1115
      %v1130 = vadd.f32 %v946, %v1117
      %s1131 = scalar_lea.vmem %s2, 512
      %v1132 = vld [vmem:[%s1131] sm:$0xff]
      %v1133 = vld [vmem:[%s1131 + $0x8] sm:$0xff]
      %v1134 = vld [vmem:[%s1131 + $0x10] sm:$0xff]
      %v1135 = vld [vmem:[%s1131 + $0x18] sm:$0xff]
      %v1136 = vld [vmem:[%s1131 + $0x20] sm:$0xff]
      %v1137 = vld [vmem:[%s1131 + $0x28] sm:$0xff]
      %v1138 = vld [vmem:[%s1131 + $0x30] sm:$0xff]
      %v1139 = vld [vmem:[%s1131 + $0x38] sm:$0xff]
      %v1140 = vld [vmem:[%s1131 + $0x40] sm:$0xff]
      %v1141 = vld [vmem:[%s1131 + $0x48] sm:$0xff]
      %v1142 = vld [vmem:[%s1131 + $0x50] sm:$0xff]
      %v1143 = vld [vmem:[%s1131 + $0x58] sm:$0xff]
      %v1144 = vld [vmem:[%s1131 + $0x60] sm:$0xff]
      %v1145 = vld [vmem:[%s1131 + $0x68] sm:$0xff]
      %v1146 = vld [vmem:[%s1131 + $0x70] sm:$0xff]
      %v1147 = vld [vmem:[%s1131 + $0x78] sm:$0xff]
      %v1153 = vunpack.c.l.b16 %v320
      %v1154 = vunpack.c.l.b16 %v326
      %v1155 = vunpack.c.l.b16 %v332
      %v1156 = vunpack.c.l.b16 %v338
      %v1157 = vunpack.c.l.b16 %v344
      %v1158 = vpack.c.b16 %v1154, %v1153
      %v1159 = vpack.c.b16 %v1156, %v1155
      %v1160 = vpack.c.b16 %v1157, %v1157
      %v1180 = vunpack.c.l.b16 %v1132
      %v1181 = vunpack.c.h.b16 %v1132
      %v1182 = vunpack.c.l.b16 %v1133
      %v1183 = vunpack.c.h.b16 %v1133
      %v1184 = vunpack.c.l.b16 %v1134
      %v1185 = vunpack.c.h.b16 %v1134
      %v1186 = vunpack.c.l.b16 %v1135
      %v1187 = vunpack.c.h.b16 %v1135
      %v1188 = vunpack.c.l.b16 %v1136
      %v1189 = vunpack.c.h.b16 %v1136
      %v1190 = vunpack.c.l.b16 %v1137
      %v1191 = vunpack.c.h.b16 %v1137
      %v1192 = vunpack.c.l.b16 %v1138
      %v1193 = vunpack.c.h.b16 %v1138
      %v1194 = vunpack.c.l.b16 %v1139
      %v1195 = vunpack.c.h.b16 %v1139
      %v1196 = vunpack.c.l.b16 %v1140
      %v1197 = vunpack.c.h.b16 %v1140
      %v1198 = vunpack.c.l.b16 %v1141
      %v1199 = vunpack.c.h.b16 %v1141
      %v1200 = vunpack.c.l.b16 %v1142
      %v1201 = vunpack.c.h.b16 %v1142
      %v1202 = vunpack.c.l.b16 %v1143
      %v1203 = vunpack.c.h.b16 %v1143
      %v1204 = vunpack.c.l.b16 %v1144
      %v1205 = vunpack.c.h.b16 %v1144
      %v1206 = vunpack.c.l.b16 %v1145
      %v1207 = vunpack.c.h.b16 %v1145
      %v1208 = vunpack.c.l.b16 %v1146
      %v1209 = vunpack.c.h.b16 %v1146
      %v1210 = vunpack.c.l.b16 %v1147
      %v1211 = vunpack.c.h.b16 %v1147
      %v1212 = vpack.c.b16 %v1182, %v1180
      %v1213 = vpack.c.b16 %v1183, %v1181
      %v1214 = vpack.c.b16 %v1186, %v1184
      %v1215 = vpack.c.b16 %v1187, %v1185
      %v1216 = vpack.c.b16 %v1190, %v1188
      %v1217 = vpack.c.b16 %v1191, %v1189
      %v1218 = vpack.c.b16 %v1194, %v1192
      %v1219 = vpack.c.b16 %v1195, %v1193
      %v1220 = vpack.c.b16 %v1198, %v1196
      %v1221 = vpack.c.b16 %v1199, %v1197
      %v1222 = vpack.c.b16 %v1202, %v1200
      %v1223 = vpack.c.b16 %v1203, %v1201
      %v1224 = vpack.c.b16 %v1206, %v1204
      %v1225 = vpack.c.b16 %v1207, %v1205
      %v1226 = vpack.c.b16 %v1210, %v1208
      %v1227 = vpack.c.b16 %v1211, %v1209
      %1244 = vmatprep.subr.bf16.mxu0 %v1227
      %1245 = vmatpush1.bf16.msra.mxu0 %v1226
      %1246 = vmatprep.subr.bf16.mxu0 %v1225
      %1247 = vmatpush1.bf16.msra.mxu0 %v1224
      %1248 = vmatprep.subr.bf16.mxu0 %v1223
      %1249 = vmatpush1.bf16.msra.mxu0 %v1222
      %1250 = vmatprep.subr.bf16.mxu0 %v1221
      %1251 = vmatpush1.bf16.msra.mxu0 %v1220
      %1252 = vmatprep.subr.bf16.mxu0 %v1219
      %1253 = vmatpush1.bf16.msra.mxu0 %v1218
      %1254 = vmatprep.subr.bf16.mxu0 %v1217
      %1255 = vmatpush1.bf16.msra.mxu0 %v1216
      %1256 = vmatprep.subr.bf16.mxu0 %v1215
      %1257 = vmatpush1.bf16.msra.mxu0 %v1214
      %1258 = vmatprep.subr.bf16.mxu0 %v1213
      %1259 = vmatpush1.bf16.msra.mxu0 %v1212
      %1260 = vmatprep.subr.bf16.mxu0 0
      %1261 = vmatpush2.bf16.msra.mxu0 0
      %1262 = vmatprep.subr.bf16.mxu0 0
      %1263 = vmatpush2.bf16.msra.mxu0 0
      %1264 = vmatprep.subr.bf16.mxu0 0
      %1265 = vmatpush2.bf16.msra.mxu0 0
      %1266 = vmatprep.subr.bf16.mxu0 0
      %1267 = vmatpush2.bf16.msra.mxu0 0
      %1268 = vmatprep.subr.bf16.mxu0 0
      %1269 = vmatpush2.bf16.msra.mxu0 0
      %1270 = vmatprep.subr.bf16.mxu0 0
      %1271 = vmatpush2.bf16.msra.mxu0 0
      %1272 = vmatprep.subr.bf16.mxu0 0
      %1273 = vmatpush2.bf16.msra.mxu0 0
      %1274 = vmatprep.subr.bf16.mxu0 0
      %1275 = vmatpush2.bf16.msra.mxu0 0
      %1276 = vmatprep.mubr.bf16.mxu0 0
      %1277 = vmatmul.mubr.bf16.gmra.mxu0 %v1158
      %v1278 = vpop.f32.mrf.mxu0
      %v1279 = vadd.f32 0.0, %v1278
      %v1280 = vpop.f32.mrf.mxu0
      %v1281 = vadd.f32 0.0, %v1280
      %v1282 = vpop.f32.mrf.mxu0
      %v1283 = vadd.f32 0.0, %v1282
      %v1284 = vpop.f32.mrf.mxu0
      %v1285 = vadd.f32 0.0, %v1284
      %1286 = vmatprep.mubr.bf16.mxu0 0
      %1287 = vmatmul.mubr.bf16.gmra.mxu0 %v1159
      %v1288 = vpop.f32.mrf.mxu0
      %v1289 = vadd.f32 0.0, %v1288
      %v1290 = vpop.f32.mrf.mxu0
      %v1291 = vadd.f32 0.0, %v1290
      %v1292 = vpop.f32.mrf.mxu0
      %v1293 = vadd.f32 0.0, %v1292
      %v1294 = vpop.f32.mrf.mxu0
      %v1295 = vadd.f32 0.0, %v1294
      %1296 = vmatprep.mubr.bf16.mxu0 0
      %1297 = vmatmul.mubr.bf16.gmra.mxu0 %v1160
      %v1298 = vpop.f32.mrf.mxu0
      %v1299 = vadd.f32 0.0, %v1298
      %v1300 = vpop.f32.mrf.mxu0
      %v1301 = vadd.f32 0.0, %v1300
      %v1302 = vpop.f32.mrf.mxu0
      %v1303 = vpop.f32.mrf.mxu0
      %1304 = vdwg.mxu0
      %v1305 = vadd.f32 %v1121, %v1279
      %v1306 = vadd.f32 %v1122, %v1281
      %v1307 = vadd.f32 %v1123, %v1283
      %v1308 = vadd.f32 %v1124, %v1285
      %v1309 = vadd.f32 %v1125, %v1289
      %v1310 = vadd.f32 %v1126, %v1291
      %v1311 = vadd.f32 %v1127, %v1293
      %v1312 = vadd.f32 %v1128, %v1295
      %v1313 = vadd.f32 %v1129, %v1299
      %v1314 = vadd.f32 %v1130, %v1301
      %v1316 = vshrl.u32 %v318, 16
      %v1318 = vrot.slane %v1316, 4
      %v1319 = vshll.u32 %v318, 16
      %v1321 = vrot.slane %v1319, 5
      %v1322 = vor.u32 %v1318, %v1321
      %v1323 = vrot.slane %v1322, 4
      %v1325 = vshll.u32 %v319, 16
      %v1327 = vrot.slane %v1325, 5
      %v1328 = vsel %vm697, %v1323, %v1327
      %v1330 = vshrl.u32 %v324, 16
      %v1332 = vrot.slane %v1330, 4
      %v1333 = vshll.u32 %v324, 16
      %v1335 = vrot.slane %v1333, 5
      %v1336 = vor.u32 %v1332, %v1335
      %v1337 = vrot.slane %v1336, 4
      %v1339 = vshll.u32 %v325, 16
      %v1341 = vrot.slane %v1339, 5
      %v1342 = vsel %vm697, %v1337, %v1341
      %v1344 = vshrl.u32 %v330, 16
      %v1346 = vrot.slane %v1344, 4
      %v1347 = vshll.u32 %v330, 16
      %v1349 = vrot.slane %v1347, 5
      %v1350 = vor.u32 %v1346, %v1349
      %v1351 = vrot.slane %v1350, 4
      %v1353 = vshll.u32 %v331, 16
      %v1355 = vrot.slane %v1353, 5
      %v1356 = vsel %vm697, %v1351, %v1355
      %v1358 = vshrl.u32 %v336, 16
      %v1360 = vrot.slane %v1358, 4
      %v1361 = vshll.u32 %v336, 16
      %v1363 = vrot.slane %v1361, 5
      %v1364 = vor.u32 %v1360, %v1363
      %v1365 = vrot.slane %v1364, 4
      %v1367 = vshll.u32 %v337, 16
      %v1369 = vrot.slane %v1367, 5
      %v1370 = vsel %vm697, %v1365, %v1369
      %v1372 = vshrl.u32 %v342, 16
      %v1374 = vrot.slane %v1372, 4
      %v1375 = vshll.u32 %v342, 16
      %v1377 = vrot.slane %v1375, 5
      %v1378 = vor.u32 %v1374, %v1377
      %v1379 = vrot.slane %v1378, 4
      %v1381 = vshll.u32 %v343, 16
      %v1383 = vrot.slane %v1381, 5
      %v1384 = vsel %vm697, %v1379, %v1383
      %s1385 = scalar_lea.vmem %s2, 640
      %v1386 = vld [vmem:[%s1385] sm:$0xff]
      %v1387 = vld [vmem:[%s1385 + $0x8] sm:$0xff]
      %v1388 = vld [vmem:[%s1385 + $0x10] sm:$0xff]
      %v1389 = vld [vmem:[%s1385 + $0x18] sm:$0xff]
      %v1390 = vld [vmem:[%s1385 + $0x20] sm:$0xff]
      %v1391 = vld [vmem:[%s1385 + $0x28] sm:$0xff]
      %v1392 = vld [vmem:[%s1385 + $0x30] sm:$0xff]
      %v1393 = vld [vmem:[%s1385 + $0x38] sm:$0xff]
      %v1394 = vld [vmem:[%s1385 + $0x40] sm:$0xff]
      %v1395 = vld [vmem:[%s1385 + $0x48] sm:$0xff]
      %v1396 = vld [vmem:[%s1385 + $0x50] sm:$0xff]
      %v1397 = vld [vmem:[%s1385 + $0x58] sm:$0xff]
      %v1398 = vld [vmem:[%s1385 + $0x60] sm:$0xff]
      %v1399 = vld [vmem:[%s1385 + $0x68] sm:$0xff]
      %v1400 = vld [vmem:[%s1385 + $0x70] sm:$0xff]
      %v1401 = vld [vmem:[%s1385 + $0x78] sm:$0xff]
      %v1402 = vunpack.c.l.b16 %v1328
      %v1403 = vunpack.c.l.b16 %v1342
      %v1404 = vunpack.c.l.b16 %v1356
      %v1405 = vunpack.c.l.b16 %v1370
      %v1406 = vunpack.c.l.b16 %v1384
      %v1407 = vpack.c.b16 %v1403, %v1402
      %v1408 = vpack.c.b16 %v1405, %v1404
      %v1409 = vpack.c.b16 %v1406, %v1406
      %v1429 = vunpack.c.l.b16 %v1386
      %v1430 = vunpack.c.h.b16 %v1386
      %v1431 = vunpack.c.l.b16 %v1387
      %v1432 = vunpack.c.h.b16 %v1387
      %v1433 = vunpack.c.l.b16 %v1388
      %v1434 = vunpack.c.h.b16 %v1388
      %v1435 = vunpack.c.l.b16 %v1389
      %v1436 = vunpack.c.h.b16 %v1389
      %v1437 = vunpack.c.l.b16 %v1390
      %v1438 = vunpack.c.h.b16 %v1390
      %v1439 = vunpack.c.l.b16 %v1391
      %v1440 = vunpack.c.h.b16 %v1391
      %v1441 = vunpack.c.l.b16 %v1392
      %v1442 = vunpack.c.h.b16 %v1392
      %v1443 = vunpack.c.l.b16 %v1393
      %v1444 = vunpack.c.h.b16 %v1393
      %v1445 = vunpack.c.l.b16 %v1394
      %v1446 = vunpack.c.h.b16 %v1394
      %v1447 = vunpack.c.l.b16 %v1395
      %v1448 = vunpack.c.h.b16 %v1395
      %v1449 = vunpack.c.l.b16 %v1396
      %v1450 = vunpack.c.h.b16 %v1396
      %v1451 = vunpack.c.l.b16 %v1397
      %v1452 = vunpack.c.h.b16 %v1397
      %v1453 = vunpack.c.l.b16 %v1398
      %v1454 = vunpack.c.h.b16 %v1398
      %v1455 = vunpack.c.l.b16 %v1399
      %v1456 = vunpack.c.h.b16 %v1399
      %v1457 = vunpack.c.l.b16 %v1400
      %v1458 = vunpack.c.h.b16 %v1400
      %v1459 = vunpack.c.l.b16 %v1401
      %v1460 = vunpack.c.h.b16 %v1401
      %v1461 = vpack.c.b16 %v1431, %v1429
      %v1462 = vpack.c.b16 %v1432, %v1430
      %v1463 = vpack.c.b16 %v1435, %v1433
      %v1464 = vpack.c.b16 %v1436, %v1434
      %v1465 = vpack.c.b16 %v1439, %v1437
      %v1466 = vpack.c.b16 %v1440, %v1438
      %v1467 = vpack.c.b16 %v1443, %v1441
      %v1468 = vpack.c.b16 %v1444, %v1442
      %v1469 = vpack.c.b16 %v1447, %v1445
      %v1470 = vpack.c.b16 %v1448, %v1446
      %v1471 = vpack.c.b16 %v1451, %v1449
      %v1472 = vpack.c.b16 %v1452, %v1450
      %v1473 = vpack.c.b16 %v1455, %v1453
      %v1474 = vpack.c.b16 %v1456, %v1454
      %v1475 = vpack.c.b16 %v1459, %v1457
      %v1476 = vpack.c.b16 %v1460, %v1458
      %1493 = vmatprep.subr.bf16.mxu0 %v1476
      %1494 = vmatpush1.bf16.msra.mxu0 %v1475
      %1495 = vmatprep.subr.bf16.mxu0 %v1474
      %1496 = vmatpush1.bf16.msra.mxu0 %v1473
      %1497 = vmatprep.subr.bf16.mxu0 %v1472
      %1498 = vmatpush1.bf16.msra.mxu0 %v1471
      %1499 = vmatprep.subr.bf16.mxu0 %v1470
      %1500 = vmatpush1.bf16.msra.mxu0 %v1469
      %1501 = vmatprep.subr.bf16.mxu0 %v1468
      %1502 = vmatpush1.bf16.msra.mxu0 %v1467
      %1503 = vmatprep.subr.bf16.mxu0 %v1466
      %1504 = vmatpush1.bf16.msra.mxu0 %v1465
      %1505 = vmatprep.subr.bf16.mxu0 %v1464
      %1506 = vmatpush1.bf16.msra.mxu0 %v1463
      %1507 = vmatprep.subr.bf16.mxu0 %v1462
      %1508 = vmatpush1.bf16.msra.mxu0 %v1461
      %1509 = vmatprep.subr.bf16.mxu0 0
      %1510 = vmatpush2.bf16.msra.mxu0 0
      %1511 = vmatprep.subr.bf16.mxu0 0
      %1512 = vmatpush2.bf16.msra.mxu0 0
      %1513 = vmatprep.subr.bf16.mxu0 0
      %1514 = vmatpush2.bf16.msra.mxu0 0
      %1515 = vmatprep.subr.bf16.mxu0 0
      %1516 = vmatpush2.bf16.msra.mxu0 0
      %1517 = vmatprep.subr.bf16.mxu0 0
      %1518 = vmatpush2.bf16.msra.mxu0 0
      %1519 = vmatprep.subr.bf16.mxu0 0
      %1520 = vmatpush2.bf16.msra.mxu0 0
      %1521 = vmatprep.subr.bf16.mxu0 0
      %1522 = vmatpush2.bf16.msra.mxu0 0
      %1523 = vmatprep.subr.bf16.mxu0 0
      %1524 = vmatpush2.bf16.msra.mxu0 0
      %1525 = vmatprep.mubr.bf16.mxu0 0
      %1526 = vmatmul.mubr.bf16.gmra.mxu0 %v1407
      %v1527 = vpop.f32.mrf.mxu0
      %v1528 = vadd.f32 0.0, %v1527
      %v1529 = vpop.f32.mrf.mxu0
      %v1530 = vadd.f32 0.0, %v1529
      %v1531 = vpop.f32.mrf.mxu0
      %v1532 = vadd.f32 0.0, %v1531
      %v1533 = vpop.f32.mrf.mxu0
      %v1534 = vadd.f32 0.0, %v1533
      %1535 = vmatprep.mubr.bf16.mxu0 0
      %1536 = vmatmul.mubr.bf16.gmra.mxu0 %v1408
      %v1537 = vpop.f32.mrf.mxu0
      %v1538 = vadd.f32 0.0, %v1537
      %v1539 = vpop.f32.mrf.mxu0
      %v1540 = vadd.f32 0.0, %v1539
      %v1541 = vpop.f32.mrf.mxu0
      %v1542 = vadd.f32 0.0, %v1541
      %v1543 = vpop.f32.mrf.mxu0
      %v1544 = vadd.f32 0.0, %v1543
      %1545 = vmatprep.mubr.bf16.mxu0 0
      %1546 = vmatmul.mubr.bf16.gmra.mxu0 %v1409
      %v1547 = vpop.f32.mrf.mxu0
      %v1548 = vadd.f32 0.0, %v1547
      %v1549 = vpop.f32.mrf.mxu0
      %v1550 = vadd.f32 0.0, %v1549
      %v1551 = vpop.f32.mrf.mxu0
      %v1552 = vpop.f32.mrf.mxu0
      %1553 = vdwg.mxu0
      %v1554 = vadd.f32 %v1305, %v1528
      %v1555 = vadd.f32 %v1306, %v1530
      %v1556 = vadd.f32 %v1307, %v1532
      %v1557 = vadd.f32 %v1308, %v1534
      %v1558 = vadd.f32 %v1309, %v1538
      %v1559 = vadd.f32 %v1310, %v1540
      %v1560 = vadd.f32 %v1311, %v1542
      %v1561 = vadd.f32 %v1312, %v1544
      %v1562 = vadd.f32 %v1313, %v1548
      %v1563 = vadd.f32 %v1314, %v1550
      %s1564 = scalar_lea.vmem %s2, 768
      %v1565 = vld [vmem:[%s1564] sm:$0xff]
      %v1566 = vld [vmem:[%s1564 + $0x8] sm:$0xff]
      %v1567 = vld [vmem:[%s1564 + $0x10] sm:$0xff]
      %v1568 = vld [vmem:[%s1564 + $0x18] sm:$0xff]
      %v1569 = vld [vmem:[%s1564 + $0x20] sm:$0xff]
      %v1570 = vld [vmem:[%s1564 + $0x28] sm:$0xff]
      %v1571 = vld [vmem:[%s1564 + $0x30] sm:$0xff]
      %v1572 = vld [vmem:[%s1564 + $0x38] sm:$0xff]
      %v1573 = vld [vmem:[%s1564 + $0x40] sm:$0xff]
      %v1574 = vld [vmem:[%s1564 + $0x48] sm:$0xff]
      %v1575 = vld [vmem:[%s1564 + $0x50] sm:$0xff]
      %v1576 = vld [vmem:[%s1564 + $0x58] sm:$0xff]
      %v1577 = vld [vmem:[%s1564 + $0x60] sm:$0xff]
      %v1578 = vld [vmem:[%s1564 + $0x68] sm:$0xff]
      %v1579 = vld [vmem:[%s1564 + $0x70] sm:$0xff]
      %v1580 = vld [vmem:[%s1564 + $0x78] sm:$0xff]
      %v1582 = vunpack.c.l.b16 %v345
      %v1583 = vpack.c.b16 %v545, %v544
      %v1584 = vpack.c.b16 %v547, %v546
      %v1585 = vpack.c.b16 %v1582, %v1582
      %v1605 = vunpack.c.l.b16 %v1565
      %v1606 = vunpack.c.h.b16 %v1565
      %v1607 = vunpack.c.l.b16 %v1566
      %v1608 = vunpack.c.h.b16 %v1566
      %v1609 = vunpack.c.l.b16 %v1567
      %v1610 = vunpack.c.h.b16 %v1567
      %v1611 = vunpack.c.l.b16 %v1568
      %v1612 = vunpack.c.h.b16 %v1568
      %v1613 = vunpack.c.l.b16 %v1569
      %v1614 = vunpack.c.h.b16 %v1569
      %v1615 = vunpack.c.l.b16 %v1570
      %v1616 = vunpack.c.h.b16 %v1570
      %v1617 = vunpack.c.l.b16 %v1571
      %v1618 = vunpack.c.h.b16 %v1571
      %v1619 = vunpack.c.l.b16 %v1572
      %v1620 = vunpack.c.h.b16 %v1572
      %v1621 = vunpack.c.l.b16 %v1573
      %v1622 = vunpack.c.h.b16 %v1573
      %v1623 = vunpack.c.l.b16 %v1574
      %v1624 = vunpack.c.h.b16 %v1574
      %v1625 = vunpack.c.l.b16 %v1575
      %v1626 = vunpack.c.h.b16 %v1575
      %v1627 = vunpack.c.l.b16 %v1576
      %v1628 = vunpack.c.h.b16 %v1576
      %v1629 = vunpack.c.l.b16 %v1577
      %v1630 = vunpack.c.h.b16 %v1577
      %v1631 = vunpack.c.l.b16 %v1578
      %v1632 = vunpack.c.h.b16 %v1578
      %v1633 = vunpack.c.l.b16 %v1579
      %v1634 = vunpack.c.h.b16 %v1579
      %v1635 = vunpack.c.l.b16 %v1580
      %v1636 = vunpack.c.h.b16 %v1580
      %v1637 = vpack.c.b16 %v1607, %v1605
      %v1638 = vpack.c.b16 %v1608, %v1606
      %v1639 = vpack.c.b16 %v1611, %v1609
      %v1640 = vpack.c.b16 %v1612, %v1610
      %v1641 = vpack.c.b16 %v1615, %v1613
      %v1642 = vpack.c.b16 %v1616, %v1614
      %v1643 = vpack.c.b16 %v1619, %v1617
      %v1644 = vpack.c.b16 %v1620, %v1618
      %v1645 = vpack.c.b16 %v1623, %v1621
      %v1646 = vpack.c.b16 %v1624, %v1622
      %v1647 = vpack.c.b16 %v1627, %v1625
      %v1648 = vpack.c.b16 %v1628, %v1626
      %v1649 = vpack.c.b16 %v1631, %v1629
      %v1650 = vpack.c.b16 %v1632, %v1630
      %v1651 = vpack.c.b16 %v1635, %v1633
      %v1652 = vpack.c.b16 %v1636, %v1634
      %1669 = vmatprep.subr.bf16.mxu0 %v1652
      %1670 = vmatpush1.bf16.msra.mxu0 %v1651
      %1671 = vmatprep.subr.bf16.mxu0 %v1650
      %1672 = vmatpush1.bf16.msra.mxu0 %v1649
      %1673 = vmatprep.subr.bf16.mxu0 %v1648
      %1674 = vmatpush1.bf16.msra.mxu0 %v1647
      %1675 = vmatprep.subr.bf16.mxu0 %v1646
      %1676 = vmatpush1.bf16.msra.mxu0 %v1645
      %1677 = vmatprep.subr.bf16.mxu0 %v1644
      %1678 = vmatpush1.bf16.msra.mxu0 %v1643
      %1679 = vmatprep.subr.bf16.mxu0 %v1642
      %1680 = vmatpush1.bf16.msra.mxu0 %v1641
      %1681 = vmatprep.subr.bf16.mxu0 %v1640
      %1682 = vmatpush1.bf16.msra.mxu0 %v1639
      %1683 = vmatprep.subr.bf16.mxu0 %v1638
      %1684 = vmatpush1.bf16.msra.mxu0 %v1637
      %1685 = vmatprep.subr.bf16.mxu0 0
      %1686 = vmatpush2.bf16.msra.mxu0 0
      %1687 = vmatprep.subr.bf16.mxu0 0
      %1688 = vmatpush2.bf16.msra.mxu0 0
      %1689 = vmatprep.subr.bf16.mxu0 0
      %1690 = vmatpush2.bf16.msra.mxu0 0
      %1691 = vmatprep.subr.bf16.mxu0 0
      %1692 = vmatpush2.bf16.msra.mxu0 0
      %1693 = vmatprep.subr.bf16.mxu0 0
      %1694 = vmatpush2.bf16.msra.mxu0 0
      %1695 = vmatprep.subr.bf16.mxu0 0
      %1696 = vmatpush2.bf16.msra.mxu0 0
      %1697 = vmatprep.subr.bf16.mxu0 0
      %1698 = vmatpush2.bf16.msra.mxu0 0
      %1699 = vmatprep.subr.bf16.mxu0 0
      %1700 = vmatpush2.bf16.msra.mxu0 0
      %1701 = vmatprep.mubr.bf16.mxu0 0
      %1702 = vmatmul.mubr.bf16.gmra.mxu0 %v1583
      %v1703 = vpop.f32.mrf.mxu0
      %v1704 = vadd.f32 0.0, %v1703
      %v1705 = vpop.f32.mrf.mxu0
      %v1706 = vadd.f32 0.0, %v1705
      %v1707 = vpop.f32.mrf.mxu0
      %v1708 = vadd.f32 0.0, %v1707
      %v1709 = vpop.f32.mrf.mxu0
      %v1710 = vadd.f32 0.0, %v1709
      %1711 = vmatprep.mubr.bf16.mxu0 0
      %1712 = vmatmul.mubr.bf16.gmra.mxu0 %v1584
      %v1713 = vpop.f32.mrf.mxu0
      %v1714 = vadd.f32 0.0, %v1713
      %v1715 = vpop.f32.mrf.mxu0
      %v1716 = vadd.f32 0.0, %v1715
      %v1717 = vpop.f32.mrf.mxu0
      %v1718 = vadd.f32 0.0, %v1717
      %v1719 = vpop.f32.mrf.mxu0
      %v1720 = vadd.f32 0.0, %v1719
      %1721 = vmatprep.mubr.bf16.mxu0 0
      %1722 = vmatmul.mubr.bf16.gmra.mxu0 %v1585
      %v1723 = vpop.f32.mrf.mxu0
      %v1724 = vadd.f32 0.0, %v1723
      %v1725 = vpop.f32.mrf.mxu0
      %v1726 = vadd.f32 0.0, %v1725
      %v1727 = vpop.f32.mrf.mxu0
      %v1728 = vpop.f32.mrf.mxu0
      %1729 = vdwg.mxu0
      %v1730 = vadd.f32 %v1554, %v1704
      %v1731 = vadd.f32 %v1555, %v1706
      %v1732 = vadd.f32 %v1556, %v1708
      %v1733 = vadd.f32 %v1557, %v1710
      %v1734 = vadd.f32 %v1558, %v1714
      %v1735 = vadd.f32 %v1559, %v1716
      %v1736 = vadd.f32 %v1560, %v1718
      %v1737 = vadd.f32 %v1561, %v1720
      %v1738 = vadd.f32 %v1562, %v1724
      %v1739 = vadd.f32 %v1563, %v1726
      %s1740 = scalar_lea.vmem %s2, 896
      %v1741 = vld [vmem:[%s1740] sm:$0xff]
      %v1742 = vld [vmem:[%s1740 + $0x8] sm:$0xff]
      %v1743 = vld [vmem:[%s1740 + $0x10] sm:$0xff]
      %v1744 = vld [vmem:[%s1740 + $0x18] sm:$0xff]
      %v1745 = vld [vmem:[%s1740 + $0x20] sm:$0xff]
      %v1746 = vld [vmem:[%s1740 + $0x28] sm:$0xff]
      %v1747 = vld [vmem:[%s1740 + $0x30] sm:$0xff]
      %v1748 = vld [vmem:[%s1740 + $0x38] sm:$0xff]
      %v1749 = vld [vmem:[%s1740 + $0x40] sm:$0xff]
      %v1750 = vld [vmem:[%s1740 + $0x48] sm:$0xff]
      %v1751 = vld [vmem:[%s1740 + $0x50] sm:$0xff]
      %v1752 = vld [vmem:[%s1740 + $0x58] sm:$0xff]
      %v1753 = vld [vmem:[%s1740 + $0x60] sm:$0xff]
      %v1754 = vld [vmem:[%s1740 + $0x68] sm:$0xff]
      %v1755 = vld [vmem:[%s1740 + $0x70] sm:$0xff]
      %v1756 = vld [vmem:[%s1740 + $0x78] sm:$0xff]
      %v1758 = vunpack.c.l.b16 %v347
      %v1759 = vpack.c.b16 %v388, %v387
      %v1760 = vpack.c.b16 %v390, %v389
      %v1761 = vpack.c.b16 %v1758, %v1758
      %v1781 = vunpack.c.l.b16 %v1741
      %v1782 = vunpack.c.h.b16 %v1741
      %v1783 = vunpack.c.l.b16 %v1742
      %v1784 = vunpack.c.h.b16 %v1742
      %v1785 = vunpack.c.l.b16 %v1743
      %v1786 = vunpack.c.h.b16 %v1743
      %v1787 = vunpack.c.l.b16 %v1744
      %v1788 = vunpack.c.h.b16 %v1744
      %v1789 = vunpack.c.l.b16 %v1745
      %v1790 = vunpack.c.h.b16 %v1745
      %v1791 = vunpack.c.l.b16 %v1746
      %v1792 = vunpack.c.h.b16 %v1746
      %v1793 = vunpack.c.l.b16 %v1747
      %v1794 = vunpack.c.h.b16 %v1747
      %v1795 = vunpack.c.l.b16 %v1748
      %v1796 = vunpack.c.h.b16 %v1748
      %v1797 = vunpack.c.l.b16 %v1749
      %v1798 = vunpack.c.h.b16 %v1749
      %v1799 = vunpack.c.l.b16 %v1750
      %v1800 = vunpack.c.h.b16 %v1750
      %v1801 = vunpack.c.l.b16 %v1751
      %v1802 = vunpack.c.h.b16 %v1751
      %v1803 = vunpack.c.l.b16 %v1752
      %v1804 = vunpack.c.h.b16 %v1752
      %v1805 = vunpack.c.l.b16 %v1753
      %v1806 = vunpack.c.h.b16 %v1753
      %v1807 = vunpack.c.l.b16 %v1754
      %v1808 = vunpack.c.h.b16 %v1754
      %v1809 = vunpack.c.l.b16 %v1755
      %v1810 = vunpack.c.h.b16 %v1755
      %v1811 = vunpack.c.l.b16 %v1756
      %v1812 = vunpack.c.h.b16 %v1756
      %v1813 = vpack.c.b16 %v1783, %v1781
      %v1814 = vpack.c.b16 %v1784, %v1782
      %v1815 = vpack.c.b16 %v1787, %v1785
      %v1816 = vpack.c.b16 %v1788, %v1786
      %v1817 = vpack.c.b16 %v1791, %v1789
      %v1818 = vpack.c.b16 %v1792, %v1790
      %v1819 = vpack.c.b16 %v1795, %v1793
      %v1820 = vpack.c.b16 %v1796, %v1794
      %v1821 = vpack.c.b16 %v1799, %v1797
      %v1822 = vpack.c.b16 %v1800, %v1798
      %v1823 = vpack.c.b16 %v1803, %v1801
      %v1824 = vpack.c.b16 %v1804, %v1802
      %v1825 = vpack.c.b16 %v1807, %v1805
      %v1826 = vpack.c.b16 %v1808, %v1806
      %v1827 = vpack.c.b16 %v1811, %v1809
      %v1828 = vpack.c.b16 %v1812, %v1810
      %1845 = vmatprep.subr.bf16.mxu0 %v1828
      %1846 = vmatpush1.bf16.msra.mxu0 %v1827
      %1847 = vmatprep.subr.bf16.mxu0 %v1826
      %1848 = vmatpush1.bf16.msra.mxu0 %v1825
      %1849 = vmatprep.subr.bf16.mxu0 %v1824
      %1850 = vmatpush1.bf16.msra.mxu0 %v1823
      %1851 = vmatprep.subr.bf16.mxu0 %v1822
      %1852 = vmatpush1.bf16.msra.mxu0 %v1821
      %1853 = vmatprep.subr.bf16.mxu0 %v1820
      %1854 = vmatpush1.bf16.msra.mxu0 %v1819
      %1855 = vmatprep.subr.bf16.mxu0 %v1818
      %1856 = vmatpush1.bf16.msra.mxu0 %v1817
      %1857 = vmatprep.subr.bf16.mxu0 %v1816
      %1858 = vmatpush1.bf16.msra.mxu0 %v1815
      %1859 = vmatprep.subr.bf16.mxu0 %v1814
      %1860 = vmatpush1.bf16.msra.mxu0 %v1813
      %1861 = vmatprep.subr.bf16.mxu0 0
      %1862 = vmatpush2.bf16.msra.mxu0 0
      %1863 = vmatprep.subr.bf16.mxu0 0
      %1864 = vmatpush2.bf16.msra.mxu0 0
      %1865 = vmatprep.subr.bf16.mxu0 0
      %1866 = vmatpush2.bf16.msra.mxu0 0
      %1867 = vmatprep.subr.bf16.mxu0 0
      %1868 = vmatpush2.bf16.msra.mxu0 0
      %1869 = vmatprep.subr.bf16.mxu0 0
      %1870 = vmatpush2.bf16.msra.mxu0 0
      %1871 = vmatprep.subr.bf16.mxu0 0
      %1872 = vmatpush2.bf16.msra.mxu0 0
      %1873 = vmatprep.subr.bf16.mxu0 0
      %1874 = vmatpush2.bf16.msra.mxu0 0
      %1875 = vmatprep.subr.bf16.mxu0 0
      %1876 = vmatpush2.bf16.msra.mxu0 0
      %1877 = vmatprep.mubr.bf16.mxu0 0
      %1878 = vmatmul.mubr.bf16.gmra.mxu0 %v1759
      %v1879 = vpop.f32.mrf.mxu0
      %v1880 = vadd.f32 0.0, %v1879
      %v1881 = vpop.f32.mrf.mxu0
      %v1882 = vadd.f32 0.0, %v1881
      %v1883 = vpop.f32.mrf.mxu0
      %v1884 = vadd.f32 0.0, %v1883
      %v1885 = vpop.f32.mrf.mxu0
      %v1886 = vadd.f32 0.0, %v1885
      %1887 = vmatprep.mubr.bf16.mxu0 0
      %1888 = vmatmul.mubr.bf16.gmra.mxu0 %v1760
      %v1889 = vpop.f32.mrf.mxu0
      %v1890 = vadd.f32 0.0, %v1889
      %v1891 = vpop.f32.mrf.mxu0
      %v1892 = vadd.f32 0.0, %v1891
      %v1893 = vpop.f32.mrf.mxu0
      %v1894 = vadd.f32 0.0, %v1893
      %v1895 = vpop.f32.mrf.mxu0
      %v1896 = vadd.f32 0.0, %v1895
      %1897 = vmatprep.mubr.bf16.mxu0 0
      %1898 = vmatmul.mubr.bf16.gmra.mxu0 %v1761
      %v1899 = vpop.f32.mrf.mxu0
      %v1900 = vadd.f32 0.0, %v1899
      %v1901 = vpop.f32.mrf.mxu0
      %v1902 = vadd.f32 0.0, %v1901
      %v1903 = vpop.f32.mrf.mxu0
      %v1904 = vpop.f32.mrf.mxu0
      %1905 = vdwg.mxu0
      %v1906 = vadd.f32 %v1730, %v1880
      %v1907 = vadd.f32 %v1731, %v1882
      %v1908 = vadd.f32 %v1732, %v1884
      %v1909 = vadd.f32 %v1733, %v1886
      %v1910 = vadd.f32 %v1734, %v1890
      %v1911 = vadd.f32 %v1735, %v1892
      %v1912 = vadd.f32 %v1736, %v1894
      %v1913 = vadd.f32 %v1737, %v1896
      %v1914 = vadd.f32 %v1738, %v1900
      %v1915 = vadd.f32 %v1739, %v1902
      %v1917 = vshrl.u32 %v345, 16
      %v1919 = vrot.slane %v1917, 4
      %v1920 = vshll.u32 %v345, 16
      %v1922 = vrot.slane %v1920, 5
      %v1923 = vor.u32 %v1919, %v1922
      %v1924 = vrot.slane %v1923, 4
      %v1926 = vshll.u32 %v346, 16
      %v1928 = vrot.slane %v1926, 5
      %v1929 = vsel %vm697, %v1924, %v1928
      %s1930 = scalar_lea.vmem %s2, 1024
      %v1931 = vld [vmem:[%s1930] sm:$0xff]
      %v1932 = vld [vmem:[%s1930 + $0x8] sm:$0xff]
      %v1933 = vld [vmem:[%s1930 + $0x10] sm:$0xff]
      %v1934 = vld [vmem:[%s1930 + $0x18] sm:$0xff]
      %v1935 = vld [vmem:[%s1930 + $0x20] sm:$0xff]
      %v1936 = vld [vmem:[%s1930 + $0x28] sm:$0xff]
      %v1937 = vld [vmem:[%s1930 + $0x30] sm:$0xff]
      %v1938 = vld [vmem:[%s1930 + $0x38] sm:$0xff]
      %v1939 = vld [vmem:[%s1930 + $0x40] sm:$0xff]
      %v1940 = vld [vmem:[%s1930 + $0x48] sm:$0xff]
      %v1941 = vld [vmem:[%s1930 + $0x50] sm:$0xff]
      %v1942 = vld [vmem:[%s1930 + $0x58] sm:$0xff]
      %v1943 = vld [vmem:[%s1930 + $0x60] sm:$0xff]
      %v1944 = vld [vmem:[%s1930 + $0x68] sm:$0xff]
      %v1945 = vld [vmem:[%s1930 + $0x70] sm:$0xff]
      %v1946 = vld [vmem:[%s1930 + $0x78] sm:$0xff]
      %v1947 = vunpack.c.l.b16 %v1929
      %v1948 = vpack.c.b16 %v787, %v786
      %v1949 = vpack.c.b16 %v789, %v788
      %v1950 = vpack.c.b16 %v1947, %v1947
      %v1970 = vunpack.c.l.b16 %v1931
      %v1971 = vunpack.c.h.b16 %v1931
      %v1972 = vunpack.c.l.b16 %v1932
      %v1973 = vunpack.c.h.b16 %v1932
      %v1974 = vunpack.c.l.b16 %v1933
      %v1975 = vunpack.c.h.b16 %v1933
      %v1976 = vunpack.c.l.b16 %v1934
      %v1977 = vunpack.c.h.b16 %v1934
      %v1978 = vunpack.c.l.b16 %v1935
      %v1979 = vunpack.c.h.b16 %v1935
      %v1980 = vunpack.c.l.b16 %v1936
      %v1981 = vunpack.c.h.b16 %v1936
      %v1982 = vunpack.c.l.b16 %v1937
      %v1983 = vunpack.c.h.b16 %v1937
      %v1984 = vunpack.c.l.b16 %v1938
      %v1985 = vunpack.c.h.b16 %v1938
      %v1986 = vunpack.c.l.b16 %v1939
      %v1987 = vunpack.c.h.b16 %v1939
      %v1988 = vunpack.c.l.b16 %v1940
      %v1989 = vunpack.c.h.b16 %v1940
      %v1990 = vunpack.c.l.b16 %v1941
      %v1991 = vunpack.c.h.b16 %v1941
      %v1992 = vunpack.c.l.b16 %v1942
      %v1993 = vunpack.c.h.b16 %v1942
      %v1994 = vunpack.c.l.b16 %v1943
      %v1995 = vunpack.c.h.b16 %v1943
      %v1996 = vunpack.c.l.b16 %v1944
      %v1997 = vunpack.c.h.b16 %v1944
      %v1998 = vunpack.c.l.b16 %v1945
      %v1999 = vunpack.c.h.b16 %v1945
      %v2000 = vunpack.c.l.b16 %v1946
      %v2001 = vunpack.c.h.b16 %v1946
      %v2002 = vpack.c.b16 %v1972, %v1970
      %v2003 = vpack.c.b16 %v1973, %v1971
      %v2004 = vpack.c.b16 %v1976, %v1974
      %v2005 = vpack.c.b16 %v1977, %v1975
      %v2006 = vpack.c.b16 %v1980, %v1978
      %v2007 = vpack.c.b16 %v1981, %v1979
      %v2008 = vpack.c.b16 %v1984, %v1982
      %v2009 = vpack.c.b16 %v1985, %v1983
      %v2010 = vpack.c.b16 %v1988, %v1986
      %v2011 = vpack.c.b16 %v1989, %v1987
      %v2012 = vpack.c.b16 %v1992, %v1990
      %v2013 = vpack.c.b16 %v1993, %v1991
      %v2014 = vpack.c.b16 %v1996, %v1994
      %v2015 = vpack.c.b16 %v1997, %v1995
      %v2016 = vpack.c.b16 %v2000, %v1998
      %v2017 = vpack.c.b16 %v2001, %v1999
      %2034 = vmatprep.subr.bf16.mxu0 %v2017
      %2035 = vmatpush1.bf16.msra.mxu0 %v2016
      %2036 = vmatprep.subr.bf16.mxu0 %v2015
      %2037 = vmatpush1.bf16.msra.mxu0 %v2014
      %2038 = vmatprep.subr.bf16.mxu0 %v2013
      %2039 = vmatpush1.bf16.msra.mxu0 %v2012
      %2040 = vmatprep.subr.bf16.mxu0 %v2011
      %2041 = vmatpush1.bf16.msra.mxu0 %v2010
      %2042 = vmatprep.subr.bf16.mxu0 %v2009
      %2043 = vmatpush1.bf16.msra.mxu0 %v2008
      %2044 = vmatprep.subr.bf16.mxu0 %v2007
      %2045 = vmatpush1.bf16.msra.mxu0 %v2006
      %2046 = vmatprep.subr.bf16.mxu0 %v2005
      %2047 = vmatpush1.bf16.msra.mxu0 %v2004
      %2048 = vmatprep.subr.bf16.mxu0 %v2003
      %2049 = vmatpush1.bf16.msra.mxu0 %v2002
      %2050 = vmatprep.subr.bf16.mxu0 0
      %2051 = vmatpush2.bf16.msra.mxu0 0
      %2052 = vmatprep.subr.bf16.mxu0 0
      %2053 = vmatpush2.bf16.msra.mxu0 0
      %2054 = vmatprep.subr.bf16.mxu0 0
      %2055 = vmatpush2.bf16.msra.mxu0 0
      %2056 = vmatprep.subr.bf16.mxu0 0
      %2057 = vmatpush2.bf16.msra.mxu0 0
      %2058 = vmatprep.subr.bf16.mxu0 0
      %2059 = vmatpush2.bf16.msra.mxu0 0
      %2060 = vmatprep.subr.bf16.mxu0 0
      %2061 = vmatpush2.bf16.msra.mxu0 0
      %2062 = vmatprep.subr.bf16.mxu0 0
      %2063 = vmatpush2.bf16.msra.mxu0 0
      %2064 = vmatprep.subr.bf16.mxu0 0
      %2065 = vmatpush2.bf16.msra.mxu0 0
      %2066 = vmatprep.mubr.bf16.mxu0 0
      %2067 = vmatmul.mubr.bf16.gmra.mxu0 %v1948
      %v2068 = vpop.f32.mrf.mxu0
      %v2069 = vadd.f32 0.0, %v2068
      %v2070 = vpop.f32.mrf.mxu0
      %v2071 = vadd.f32 0.0, %v2070
      %v2072 = vpop.f32.mrf.mxu0
      %v2073 = vadd.f32 0.0, %v2072
      %v2074 = vpop.f32.mrf.mxu0
      %v2075 = vadd.f32 0.0, %v2074
      %2076 = vmatprep.mubr.bf16.mxu0 0
      %2077 = vmatmul.mubr.bf16.gmra.mxu0 %v1949
      %v2078 = vpop.f32.mrf.mxu0
      %v2079 = vadd.f32 0.0, %v2078
      %v2080 = vpop.f32.mrf.mxu0
      %v2081 = vadd.f32 0.0, %v2080
      %v2082 = vpop.f32.mrf.mxu0
      %v2083 = vadd.f32 0.0, %v2082
      %v2084 = vpop.f32.mrf.mxu0
      %v2085 = vadd.f32 0.0, %v2084
      %2086 = vmatprep.mubr.bf16.mxu0 0
      %2087 = vmatmul.mubr.bf16.gmra.mxu0 %v1950
      %v2088 = vpop.f32.mrf.mxu0
      %v2089 = vadd.f32 0.0, %v2088
      %v2090 = vpop.f32.mrf.mxu0
      %v2091 = vadd.f32 0.0, %v2090
      %v2092 = vpop.f32.mrf.mxu0
      %v2093 = vpop.f32.mrf.mxu0
      %2094 = vdwg.mxu0
      %v2095 = vadd.f32 %v1906, %v2069
      %v2096 = vadd.f32 %v1907, %v2071
      %v2097 = vadd.f32 %v1908, %v2073
      %v2098 = vadd.f32 %v1909, %v2075
      %v2099 = vadd.f32 %v1910, %v2079
      %v2100 = vadd.f32 %v1911, %v2081
      %v2101 = vadd.f32 %v1912, %v2083
      %v2102 = vadd.f32 %v1913, %v2085
      %v2103 = vadd.f32 %v1914, %v2089
      %v2104 = vadd.f32 %v1915, %v2091
      %v2105 = vld [vmem:[%s3] sm:$0x3]
      %v2107 = vlaneseq
      %v2108 = vshrl.u32 %v2107, 7
      %v2109 = vsub.s32 0, %v2108
      %v2110 = vrot.slane %v2105, %v2109
      %v2111 = vlaneseq
      %v2112 = vshrl.u32 %v2111, 7
      %v2113 = vsub.s32 1, %v2112
      %v2114 = vrot.slane %v2105, %v2113
      %v2117 = vadd.f32 %v2095, %v2110
      %v2118 = vadd.f32 %v2096, %v2114
      %v2119 = vadd.f32 %v2097, %v2110
      %v2120 = vadd.f32 %v2098, %v2114
      %v2121 = vadd.f32 %v2099, %v2110
      %v2122 = vadd.f32 %v2100, %v2114
      %v2123 = vadd.f32 %v2101, %v2110
      %v2124 = vadd.f32 %v2102, %v2114
      %v2125 = vadd.f32 %v2103, %v2110
      %v2126 = vadd.f32 %v2104, %v2114
      %v2127 = vmax.f32 %v2117, 0.0
      %v2128 = vmax.f32 %v2118, 0.0
      %v2129 = vmax.f32 %v2119, 0.0
      %v2130 = vmax.f32 %v2120, 0.0
      %v2131 = vmax.f32 %v2121, 0.0
      %v2132 = vmax.f32 %v2122, 0.0
      %v2133 = vmax.f32 %v2123, 0.0
      %v2134 = vmax.f32 %v2124, 0.0
      %v2135 = vmax.f32 %v2125, 0.0
      %v2136 = vmax.f32 %v2126, 0.0
      %v2137 = vld [vmem:[#allocation2] sm:$0x3]
      %v2138 = vadd.f32 %v2127, %v2129
      %v2139 = vadd.f32 %v2138, %v2131
      %v2140 = vadd.f32 %v2139, %v2133
      %v2141 = vadd.f32 %v2140, %v2135
      %v2142 = vrot.slane %v2141, 4
      %v2143 = vadd.f32 %v2141, %v2142
      %v2144 = vrot.slane %v2143, 2
      %v2145 = vadd.f32 %v2143, %v2144
      %v2146 = vrot.slane %v2145, 1
      %v2147 = vadd.f32 %v2145, %v2146
      %v2148 = vadd.f32 %v2128, %v2130
      %v2149 = vadd.f32 %v2148, %v2132
      %v2150 = vadd.f32 %v2149, %v2134
      %v2151 = vadd.f32 %v2150, %v2136
      %v2152 = vrot.slane %v2151, 4
      %v2153 = vadd.f32 %v2151, %v2152
      %v2154 = vrot.slane %v2153, 2
      %v2155 = vadd.f32 %v2153, %v2154
      %v2156 = vrot.slane %v2155, 1
      %v2157 = vadd.f32 %v2155, %v2156
      %v2160 = vcombine.low %v2147, %v2157
      %v2162 = vunpack.c.l.s4 1966171168
      %v2163 = vunpack.c.0.s8 %v2162
      %v2164 = vlaneseq
      %v2165 = vshrl.u32 %v2164, 7
      %v2166 = vsub.s32 %v2163, %v2165
      %v2167 = vrot.slane %v2160, %v2166
      %v2169 = vunpack.c.l.s4 1966171168
      %v2170 = vunpack.c.0.s8 %v2169
      %v2171 = vlaneseq
      %v2172 = vshrl.u32 %v2171, 7
      %v2173 = vsub.s32 %v2170, %v2172
      %v2174 = vrot.slane %v2167, %v2173
      %v2176 = vadd.f32 %v2137, %v2174
      %v2177 = vlaneseq
      %vm2178 = vcmp.ge.s32.totalorder %v2177, 0
      %vm2179 = vcmp.lt.s32.totalorder %v2177, 256
      %vm2180 = vmand %vm2178, %vm2179
      %2181 = vst.msk [vmem:[#allocation2] sm:$0x3] %vm2180, %v2176
      // Predicated region
      $region41: #{global_block_forward.3} parent=35 // pred_check
        %p2182 = pneg %p306
      $region42: #{global_block_forward.3} parent=35 // pred_check_branch
        %2184 = sbr.rel (%p2182) target = $region44
      $region43: #{global_block_forward.3} parent=35 // pred_region
        %v2185 = vld [vmem:[%s3] sm:$0x3]
        %v2186 = vmax.f32 %v2185, 0.0
        %v2187 = vmul.f32 %v2186, 15.0
        %v2188 = vld [vmem:[#allocation2] sm:$0x3]
        %v2189 = vsub.f32 %v2188, %v2187
        %v2190 = vmul.f32 %v2189, 0.04
        %2191 = vst.msk [vmem:[%s304] sm:$0x3] %vm2180, %v2190
      $region44: #{global_block_forward.3} parent=35 // pred_fallthru
        _
      %p2192 = scmp.lt.s32.totalorder %s19, 1
      %s2193 = scalar_select %p2192, %s19, 1
      %s2194 = smul.addr %s2193, 2
      %s2195 = scalar_lea.vmem %s4, %s2194
      // Predicated region
      $region45: #{global_block_forward.3} parent=35 // pred_check
        %p2196 = pneg %p147
      $region46: #{global_block_forward.3} parent=35 // pred_check_branch
        %2198 = sbr.rel (%p2196) target = $region48
      $region47: #{global_block_forward.3} parent=35 // pred_region
        _
      $region48: #{global_block_forward.3} parent=35 // pred_fallthru
        _
    $region36: #{global_block_forward.3} parent=5 // pred_fallthru
      _
    %p2199 = scmp.le.s32.totalorder 2, %s10
    // Predicated region
    $region49: #{global_block_forward.3} parent=5 // pred_check
      %p2200 = pneg %p2199
    $region50: #{global_block_forward.3} parent=5 // pred_check_branch
      %2202 = sbr.rel (%p2200) target = $region52
    $region51: #{global_block_forward.3} parent=5 // pred_region
      %s2203 = ssub.s32 %s10, 2
      // Predicated region
      $region53: #{global_block_forward.3} parent=51 // pred_check
        %p2204 = pneg %p153
      $region54: #{global_block_forward.3} parent=51 // pred_check_branch
        %2206 = sbr.rel (%p2204) target = $region56
      $region55: #{global_block_forward.3} parent=51 // pred_region
        %p2207 = scmp.lt.s32.totalorder %s21, 1
        %s2208 = scalar_select %p2207, %s21, 1
        %s2209 = smul.addr %s2208, 2
        %s2210 = scalar_lea.vmem %s4, %s2209
      $region56: #{global_block_forward.3} parent=51 // pred_fallthru
        _
    $region52: #{global_block_forward.3} parent=5 // pred_fallthru
      _
  $region6: #{global_block_forward.3} parent=0 // loop_footer
    %s14 = sadd.s32 1, %s10
  $region7: #{global_block_forward.3} parent=0 // loop_footer_branch
    %9 = sbr.rel target = $region3
  $region8: #{global_block_forward.3} parent=0 // loop_exit
    _

// kernel: global_block_forward.4
$region0: #{global_block_forward.4}
  #allocation0 [shape = 'u32[]', space=smem, size = 0x4, offset = 0x4, fixed_abs, tag = 'smem constant byte address 0x4 - core index']
  #allocation1 [shape = 'u32[144,128]{1,0:T(1,128)}', space=vmem, size = 0x12000, scoped, tag = 'internal scratch']
  %s0 = inlined_call_operand.vmem [shape: f32[8,256], index: 0, kind: input, shape index: {}]
  %s1 = inlined_call_operand.vmem [shape: bf16[256,1024], index: 1, kind: input, shape index: {}]
  %s2 = inlined_call_operand.vmem [shape: f32[1,1024], index: 2, kind: input, shape index: {}]
  %s3 = inlined_call_operand.vmem [shape: bf16[1024,512], index: 3, kind: input, shape index: {}]
  %s4 = inlined_call_operand.vmem [shape: f32[1,512], index: 4, kind: input, shape index: {}]
  %s5 = inlined_call_operand.vmem [shape: bf16[512,256], index: 5, kind: input, shape index: {}]
  %s6 = inlined_call_operand.vmem [shape: f32[1,256], index: 6, kind: input, shape index: {}]
  %s7 = inlined_call_operand.vmem [shape: f32[8,256], index: 7, kind: output, shape index: {}]
  %s8 = sld [smem:[#allocation0]]
  $region38: #{global_block_forward.4} parent=0
    _
  %s10 = ssub.s32 1, %s8
  %s11 = scalar_select 0, %s10, %s8
  // Predicated region
  $region2: #{global_block_forward.4} parent=0 // pred_check
    _
  $region3: #{global_block_forward.4} parent=0 // pred_check_branch
    %13 = sbr.rel (0) target = $region5
  $region4: #{global_block_forward.4} parent=0 // pred_region
    _
  $region5: #{global_block_forward.4} parent=0 // pred_fallthru
    _
  // Predicated region
  $region6: #{global_block_forward.4} parent=0 // pred_check
    _
  $region7: #{global_block_forward.4} parent=0 // pred_check_branch
    %15 = sbr.rel (0) target = $region9
  $region8: #{global_block_forward.4} parent=0 // pred_region
    _
  $region9: #{global_block_forward.4} parent=0 // pred_fallthru
    _
  // Predicated region
  $region10: #{global_block_forward.4} parent=0 // pred_check
    _
  $region11: #{global_block_forward.4} parent=0 // pred_check_branch
    %17 = sbr.rel (0) target = $region13
  $region12: #{global_block_forward.4} parent=0 // pred_region
    _
  $region13: #{global_block_forward.4} parent=0 // pred_fallthru
    _
  // Predicated region
  $region14: #{global_block_forward.4} parent=0 // pred_check
    _
  $region15: #{global_block_forward.4} parent=0 // pred_check_branch
    %19 = sbr.rel (0) target = $region17
  $region16: #{global_block_forward.4} parent=0 // pred_region
    _
  $region17: #{global_block_forward.4} parent=0 // pred_fallthru
    _
  // Predicated region
  $region18: #{global_block_forward.4} parent=0 // pred_check
    _
  $region19: #{global_block_forward.4} parent=0 // pred_check_branch
    %21 = sbr.rel (0) target = $region21
  $region20: #{global_block_forward.4} parent=0 // pred_region
    _
  $region21: #{global_block_forward.4} parent=0 // pred_fallthru
    _
  // Predicated region
  $region22: #{global_block_forward.4} parent=0 // pred_check
    _
  $region23: #{global_block_forward.4} parent=0 // pred_check_branch
    %23 = sbr.rel (0) target = $region25
  $region24: #{global_block_forward.4} parent=0 // pred_region
    _
  $region25: #{global_block_forward.4} parent=0 // pred_fallthru
    _
  // Predicated region
  $region26: #{global_block_forward.4} parent=0 // pred_check
    _
  $region27: #{global_block_forward.4} parent=0 // pred_check_branch
    %25 = sbr.rel (0) target = $region29
  $region28: #{global_block_forward.4} parent=0 // pred_region
    _
  $region29: #{global_block_forward.4} parent=0 // pred_fallthru
    _
  %v26 = vld [vmem:[%s0] sm:$0xff]
  %v27 = vld [vmem:[%s0 + $0x8] sm:$0xff]
  %v28 = vpack.c.bf16 %v26, %v26
  %v29 = vpack.c.bf16 %v27, %v27
  %v30 = vld [vmem:[%s1] sm:$0xff]
  %v31 = vld [vmem:[%s1 + $0x8] sm:$0xff]
  %v32 = vld [vmem:[%s1 + $0x10] sm:$0xff]
  %v33 = vld [vmem:[%s1 + $0x18] sm:$0xff]
  %v34 = vld [vmem:[%s1 + $0x20] sm:$0xff]
  %v35 = vld [vmem:[%s1 + $0x28] sm:$0xff]
  %v36 = vld [vmem:[%s1 + $0x30] sm:$0xff]
  %v37 = vld [vmem:[%s1 + $0x38] sm:$0xff]
  %v38 = vld [vmem:[%s1 + $0x40] sm:$0xff]
  %v39 = vld [vmem:[%s1 + $0x48] sm:$0xff]
  %v40 = vld [vmem:[%s1 + $0x50] sm:$0xff]
  %v41 = vld [vmem:[%s1 + $0x58] sm:$0xff]
  %v42 = vld [vmem:[%s1 + $0x60] sm:$0xff]
  %v43 = vld [vmem:[%s1 + $0x68] sm:$0xff]
  %v44 = vld [vmem:[%s1 + $0x70] sm:$0xff]
  %v45 = vld [vmem:[%s1 + $0x78] sm:$0xff]
  %v46 = vld [vmem:[%s1 + $0x80] sm:$0xff]
  %v47 = vld [vmem:[%s1 + $0x88] sm:$0xff]
  %v48 = vld [vmem:[%s1 + $0x90] sm:$0xff]
  %v49 = vld [vmem:[%s1 + $0x98] sm:$0xff]
  %v50 = vld [vmem:[%s1 + $0xa0] sm:$0xff]
  %v51 = vld [vmem:[%s1 + $0xa8] sm:$0xff]
  %v52 = vld [vmem:[%s1 + $0xb0] sm:$0xff]
  %v53 = vld [vmem:[%s1 + $0xb8] sm:$0xff]
  %v54 = vld [vmem:[%s1 + $0xc0] sm:$0xff]
  %v55 = vld [vmem:[%s1 + $0xc8] sm:$0xff]
  %v56 = vld [vmem:[%s1 + $0xd0] sm:$0xff]
  %v57 = vld [vmem:[%s1 + $0xd8] sm:$0xff]
  %v58 = vld [vmem:[%s1 + $0xe0] sm:$0xff]
  %v59 = vld [vmem:[%s1 + $0xe8] sm:$0xff]
  %v60 = vld [vmem:[%s1 + $0xf0] sm:$0xff]
  %v61 = vld [vmem:[%s1 + $0xf8] sm:$0xff]
  %v62 = vld [vmem:[%s1 + $0x100] sm:$0xff]
  %v63 = vld [vmem:[%s1 + $0x108] sm:$0xff]
  %v64 = vld [vmem:[%s1 + $0x110] sm:$0xff]
  %v65 = vld [vmem:[%s1 + $0x118] sm:$0xff]
  %v66 = vld [vmem:[%s1 + $0x120] sm:$0xff]
  %v67 = vld [vmem:[%s1 + $0x128] sm:$0xff]
  %v68 = vld [vmem:[%s1 + $0x130] sm:$0xff]
  %v69 = vld [vmem:[%s1 + $0x138] sm:$0xff]
  %v70 = vld [vmem:[%s1 + $0x140] sm:$0xff]
  %v71 = vld [vmem:[%s1 + $0x148] sm:$0xff]
  %v72 = vld [vmem:[%s1 + $0x150] sm:$0xff]
  %v73 = vld [vmem:[%s1 + $0x158] sm:$0xff]
  %v74 = vld [vmem:[%s1 + $0x160] sm:$0xff]
  %v75 = vld [vmem:[%s1 + $0x168] sm:$0xff]
  %v76 = vld [vmem:[%s1 + $0x170] sm:$0xff]
  %v77 = vld [vmem:[%s1 + $0x178] sm:$0xff]
  %v78 = vld [vmem:[%s1 + $0x180] sm:$0xff]
  %v79 = vld [vmem:[%s1 + $0x188] sm:$0xff]
  %v80 = vld [vmem:[%s1 + $0x190] sm:$0xff]
  %v81 = vld [vmem:[%s1 + $0x198] sm:$0xff]
  %v82 = vld [vmem:[%s1 + $0x1a0] sm:$0xff]
  %v83 = vld [vmem:[%s1 + $0x1a8] sm:$0xff]
  %v84 = vld [vmem:[%s1 + $0x1b0] sm:$0xff]
  %v85 = vld [vmem:[%s1 + $0x1b8] sm:$0xff]
  %v86 = vld [vmem:[%s1 + $0x1c0] sm:$0xff]
  %v87 = vld [vmem:[%s1 + $0x1c8] sm:$0xff]
  %v88 = vld [vmem:[%s1 + $0x1d0] sm:$0xff]
  %v89 = vld [vmem:[%s1 + $0x1d8] sm:$0xff]
  %v90 = vld [vmem:[%s1 + $0x1e0] sm:$0xff]
  %v91 = vld [vmem:[%s1 + $0x1e8] sm:$0xff]
  %v92 = vld [vmem:[%s1 + $0x1f0] sm:$0xff]
  %v93 = vld [vmem:[%s1 + $0x1f8] sm:$0xff]
  %v94 = vld [vmem:[%s1 + $0x200] sm:$0xff]
  %v95 = vld [vmem:[%s1 + $0x208] sm:$0xff]
  %v96 = vld [vmem:[%s1 + $0x210] sm:$0xff]
  %v97 = vld [vmem:[%s1 + $0x218] sm:$0xff]
  %v98 = vld [vmem:[%s1 + $0x220] sm:$0xff]
  %v99 = vld [vmem:[%s1 + $0x228] sm:$0xff]
  %v100 = vld [vmem:[%s1 + $0x230] sm:$0xff]
  %v101 = vld [vmem:[%s1 + $0x238] sm:$0xff]
  %v102 = vld [vmem:[%s1 + $0x240] sm:$0xff]
  %v103 = vld [vmem:[%s1 + $0x248] sm:$0xff]
  %v104 = vld [vmem:[%s1 + $0x250] sm:$0xff]
  %v105 = vld [vmem:[%s1 + $0x258] sm:$0xff]
  %v106 = vld [vmem:[%s1 + $0x260] sm:$0xff]
  %v107 = vld [vmem:[%s1 + $0x268] sm:$0xff]
  %v108 = vld [vmem:[%s1 + $0x270] sm:$0xff]
  %v109 = vld [vmem:[%s1 + $0x278] sm:$0xff]
  %v110 = vld [vmem:[%s1 + $0x280] sm:$0xff]
  %v111 = vld [vmem:[%s1 + $0x288] sm:$0xff]
  %v112 = vld [vmem:[%s1 + $0x290] sm:$0xff]
  %v113 = vld [vmem:[%s1 + $0x298] sm:$0xff]
  %v114 = vld [vmem:[%s1 + $0x2a0] sm:$0xff]
  %v115 = vld [vmem:[%s1 + $0x2a8] sm:$0xff]
  %v116 = vld [vmem:[%s1 + $0x2b0] sm:$0xff]
  %v117 = vld [vmem:[%s1 + $0x2b8] sm:$0xff]
  %v118 = vld [vmem:[%s1 + $0x2c0] sm:$0xff]
  %v119 = vld [vmem:[%s1 + $0x2c8] sm:$0xff]
  %v120 = vld [vmem:[%s1 + $0x2d0] sm:$0xff]
  %v121 = vld [vmem:[%s1 + $0x2d8] sm:$0xff]
  %v122 = vld [vmem:[%s1 + $0x2e0] sm:$0xff]
  %v123 = vld [vmem:[%s1 + $0x2e8] sm:$0xff]
  %v124 = vld [vmem:[%s1 + $0x2f0] sm:$0xff]
  %v125 = vld [vmem:[%s1 + $0x2f8] sm:$0xff]
  %v126 = vld [vmem:[%s1 + $0x300] sm:$0xff]
  %v127 = vld [vmem:[%s1 + $0x308] sm:$0xff]
  %v128 = vld [vmem:[%s1 + $0x310] sm:$0xff]
  %v129 = vld [vmem:[%s1 + $0x318] sm:$0xff]
  %v130 = vld [vmem:[%s1 + $0x320] sm:$0xff]
  %v131 = vld [vmem:[%s1 + $0x328] sm:$0xff]
  %v132 = vld [vmem:[%s1 + $0x330] sm:$0xff]
  %v133 = vld [vmem:[%s1 + $0x338] sm:$0xff]
  %v134 = vld [vmem:[%s1 + $0x340] sm:$0xff]
  %v135 = vld [vmem:[%s1 + $0x348] sm:$0xff]
  %v136 = vld [vmem:[%s1 + $0x350] sm:$0xff]
  %v137 = vld [vmem:[%s1 + $0x358] sm:$0xff]
  %v138 = vld [vmem:[%s1 + $0x360] sm:$0xff]
  %v139 = vld [vmem:[%s1 + $0x368] sm:$0xff]
  %v140 = vld [vmem:[%s1 + $0x370] sm:$0xff]
  %v141 = vld [vmem:[%s1 + $0x378] sm:$0xff]
  %v142 = vld [vmem:[%s1 + $0x380] sm:$0xff]
  %v143 = vld [vmem:[%s1 + $0x388] sm:$0xff]
  %v144 = vld [vmem:[%s1 + $0x390] sm:$0xff]
  %v145 = vld [vmem:[%s1 + $0x398] sm:$0xff]
  %v146 = vld [vmem:[%s1 + $0x3a0] sm:$0xff]
  %v147 = vld [vmem:[%s1 + $0x3a8] sm:$0xff]
  %v148 = vld [vmem:[%s1 + $0x3b0] sm:$0xff]
  %v149 = vld [vmem:[%s1 + $0x3b8] sm:$0xff]
  %v150 = vld [vmem:[%s1 + $0x3c0] sm:$0xff]
  %v151 = vld [vmem:[%s1 + $0x3c8] sm:$0xff]
  %v152 = vld [vmem:[%s1 + $0x3d0] sm:$0xff]
  %v153 = vld [vmem:[%s1 + $0x3d8] sm:$0xff]
  %v154 = vld [vmem:[%s1 + $0x3e0] sm:$0xff]
  %v155 = vld [vmem:[%s1 + $0x3e8] sm:$0xff]
  %v156 = vld [vmem:[%s1 + $0x3f0] sm:$0xff]
  %v157 = vld [vmem:[%s1 + $0x3f8] sm:$0xff]
  %v158 = vld [vmem:[%s2] sm:$0xff]
  %v160 = vlaneseq
  %v161 = vshrl.u32 %v160, 7
  %v162 = vsub.s32 0, %v161
  %v163 = vrot.slane %v158, %v162
  %v164 = vlaneseq
  %v165 = vshrl.u32 %v164, 7
  %v166 = vsub.s32 1, %v165
  %v167 = vrot.slane %v158, %v166
  %v168 = vlaneseq
  %v169 = vshrl.u32 %v168, 7
  %v170 = vsub.s32 2, %v169
  %v171 = vrot.slane %v158, %v170
  %v172 = vlaneseq
  %v173 = vshrl.u32 %v172, 7
  %v174 = vsub.s32 3, %v173
  %v175 = vrot.slane %v158, %v174
  %v176 = vlaneseq
  %v177 = vshrl.u32 %v176, 7
  %v178 = vsub.s32 4, %v177
  %v179 = vrot.slane %v158, %v178
  %v180 = vlaneseq
  %v181 = vshrl.u32 %v180, 7
  %v182 = vsub.s32 5, %v181
  %v183 = vrot.slane %v158, %v182
  %v184 = vlaneseq
  %v185 = vshrl.u32 %v184, 7
  %v186 = vsub.s32 6, %v185
  %v187 = vrot.slane %v158, %v186
  %v188 = vlaneseq
  %v189 = vshrl.u32 %v188, 7
  %v190 = vsub.s32 7, %v189
  %v191 = vrot.slane %v158, %v190
  %v328 = vunpack.c.l.b16 %v30
  %v329 = vunpack.c.h.b16 %v30
  %v330 = vunpack.c.l.b16 %v31
  %v331 = vunpack.c.h.b16 %v31
  %v332 = vunpack.c.l.b16 %v32
  %v333 = vunpack.c.h.b16 %v32
  %v334 = vunpack.c.l.b16 %v33
  %v335 = vunpack.c.h.b16 %v33
  %v336 = vunpack.c.l.b16 %v34
  %v337 = vunpack.c.h.b16 %v34
  %v338 = vunpack.c.l.b16 %v35
  %v339 = vunpack.c.h.b16 %v35
  %v340 = vunpack.c.l.b16 %v36
  %v341 = vunpack.c.h.b16 %v36
  %v342 = vunpack.c.l.b16 %v37
  %v343 = vunpack.c.h.b16 %v37
  %v344 = vunpack.c.l.b16 %v38
  %v345 = vunpack.c.h.b16 %v38
  %v346 = vunpack.c.l.b16 %v39
  %v347 = vunpack.c.h.b16 %v39
  %v348 = vunpack.c.l.b16 %v40
  %v349 = vunpack.c.h.b16 %v40
  %v350 = vunpack.c.l.b16 %v41
  %v351 = vunpack.c.h.b16 %v41
  %v352 = vunpack.c.l.b16 %v42
  %v353 = vunpack.c.h.b16 %v42
  %v354 = vunpack.c.l.b16 %v43
  %v355 = vunpack.c.h.b16 %v43
  %v356 = vunpack.c.l.b16 %v44
  %v357 = vunpack.c.h.b16 %v44
  %v358 = vunpack.c.l.b16 %v45
  %v359 = vunpack.c.h.b16 %v45
  %v360 = vunpack.c.l.b16 %v46
  %v361 = vunpack.c.h.b16 %v46
  %v362 = vunpack.c.l.b16 %v47
  %v363 = vunpack.c.h.b16 %v47
  %v364 = vunpack.c.l.b16 %v48
  %v365 = vunpack.c.h.b16 %v48
  %v366 = vunpack.c.l.b16 %v49
  %v367 = vunpack.c.h.b16 %v49
  %v368 = vunpack.c.l.b16 %v50
  %v369 = vunpack.c.h.b16 %v50
  %v370 = vunpack.c.l.b16 %v51
  %v371 = vunpack.c.h.b16 %v51
  %v372 = vunpack.c.l.b16 %v52
  %v373 = vunpack.c.h.b16 %v52
  %v374 = vunpack.c.l.b16 %v53
  %v375 = vunpack.c.h.b16 %v53
  %v376 = vunpack.c.l.b16 %v54
  %v377 = vunpack.c.h.b16 %v54
  %v378 = vunpack.c.l.b16 %v55
  %v379 = vunpack.c.h.b16 %v55
  %v380 = vunpack.c.l.b16 %v56
  %v381 = vunpack.c.h.b16 %v56
  %v382 = vunpack.c.l.b16 %v57
  %v383 = vunpack.c.h.b16 %v57
  %v384 = vunpack.c.l.b16 %v58
  %v385 = vunpack.c.h.b16 %v58
  %v386 = vunpack.c.l.b16 %v59
  %v387 = vunpack.c.h.b16 %v59
  %v388 = vunpack.c.l.b16 %v60
  %v389 = vunpack.c.h.b16 %v60
  %v390 = vunpack.c.l.b16 %v61
  %v391 = vunpack.c.h.b16 %v61
  %v392 = vunpack.c.l.b16 %v62
  %v393 = vunpack.c.h.b16 %v62
  %v394 = vunpack.c.l.b16 %v63
  %v395 = vunpack.c.h.b16 %v63
  %v396 = vunpack.c.l.b16 %v64
  %v397 = vunpack.c.h.b16 %v64
  %v398 = vunpack.c.l.b16 %v65
  %v399 = vunpack.c.h.b16 %v65
  %v400 = vunpack.c.l.b16 %v66
  %v401 = vunpack.c.h.b16 %v66
  %v402 = vunpack.c.l.b16 %v67
  %v403 = vunpack.c.h.b16 %v67
  %v404 = vunpack.c.l.b16 %v68
  %v405 = vunpack.c.h.b16 %v68
  %v406 = vunpack.c.l.b16 %v69
  %v407 = vunpack.c.h.b16 %v69
  %v408 = vunpack.c.l.b16 %v70
  %v409 = vunpack.c.h.b16 %v70
  %v410 = vunpack.c.l.b16 %v71
  %v411 = vunpack.c.h.b16 %v71
  %v412 = vunpack.c.l.b16 %v72
  %v413 = vunpack.c.h.b16 %v72
  %v414 = vunpack.c.l.b16 %v73
  %v415 = vunpack.c.h.b16 %v73
  %v416 = vunpack.c.l.b16 %v74
  %v417 = vunpack.c.h.b16 %v74
  %v418 = vunpack.c.l.b16 %v75
  %v419 = vunpack.c.h.b16 %v75
  %v420 = vunpack.c.l.b16 %v76
  %v421 = vunpack.c.h.b16 %v76
  %v422 = vunpack.c.l.b16 %v77
  %v423 = vunpack.c.h.b16 %v77
  %v424 = vunpack.c.l.b16 %v78
  %v425 = vunpack.c.h.b16 %v78
  %v426 = vunpack.c.l.b16 %v79
  %v427 = vunpack.c.h.b16 %v79
  %v428 = vunpack.c.l.b16 %v80
  %v429 = vunpack.c.h.b16 %v80
  %v430 = vunpack.c.l.b16 %v81
  %v431 = vunpack.c.h.b16 %v81
  %v432 = vunpack.c.l.b16 %v82
  %v433 = vunpack.c.h.b16 %v82
  %v434 = vunpack.c.l.b16 %v83
  %v435 = vunpack.c.h.b16 %v83
  %v436 = vunpack.c.l.b16 %v84
  %v437 = vunpack.c.h.b16 %v84
  %v438 = vunpack.c.l.b16 %v85
  %v439 = vunpack.c.h.b16 %v85
  %v440 = vunpack.c.l.b16 %v86
  %v441 = vunpack.c.h.b16 %v86
  %v442 = vunpack.c.l.b16 %v87
  %v443 = vunpack.c.h.b16 %v87
  %v444 = vunpack.c.l.b16 %v88
  %v445 = vunpack.c.h.b16 %v88
  %v446 = vunpack.c.l.b16 %v89
  %v447 = vunpack.c.h.b16 %v89
  %v448 = vunpack.c.l.b16 %v90
  %v449 = vunpack.c.h.b16 %v90
  %v450 = vunpack.c.l.b16 %v91
  %v451 = vunpack.c.h.b16 %v91
  %v452 = vunpack.c.l.b16 %v92
  %v453 = vunpack.c.h.b16 %v92
  %v454 = vunpack.c.l.b16 %v93
  %v455 = vunpack.c.h.b16 %v93
  %v456 = vunpack.c.l.b16 %v94
  %v457 = vunpack.c.h.b16 %v94
  %v458 = vunpack.c.l.b16 %v95
  %v459 = vunpack.c.h.b16 %v95
  %v460 = vunpack.c.l.b16 %v96
  %v461 = vunpack.c.h.b16 %v96
  %v462 = vunpack.c.l.b16 %v97
  %v463 = vunpack.c.h.b16 %v97
  %v464 = vunpack.c.l.b16 %v98
  %v465 = vunpack.c.h.b16 %v98
  %v466 = vunpack.c.l.b16 %v99
  %v467 = vunpack.c.h.b16 %v99
  %v468 = vunpack.c.l.b16 %v100
  %v469 = vunpack.c.h.b16 %v100
  %v470 = vunpack.c.l.b16 %v101
  %v471 = vunpack.c.h.b16 %v101
  %v472 = vunpack.c.l.b16 %v102
  %v473 = vunpack.c.h.b16 %v102
  %v474 = vunpack.c.l.b16 %v103
  %v475 = vunpack.c.h.b16 %v103
  %v476 = vunpack.c.l.b16 %v104
  %v477 = vunpack.c.h.b16 %v104
  %v478 = vunpack.c.l.b16 %v105
  %v479 = vunpack.c.h.b16 %v105
  %v480 = vunpack.c.l.b16 %v106
  %v481 = vunpack.c.h.b16 %v106
  %v482 = vunpack.c.l.b16 %v107
  %v483 = vunpack.c.h.b16 %v107
  %v484 = vunpack.c.l.b16 %v108
  %v485 = vunpack.c.h.b16 %v108
  %v486 = vunpack.c.l.b16 %v109
  %v487 = vunpack.c.h.b16 %v109
  %v488 = vunpack.c.l.b16 %v110
  %v489 = vunpack.c.h.b16 %v110
  %v490 = vunpack.c.l.b16 %v111
  %v491 = vunpack.c.h.b16 %v111
  %v492 = vunpack.c.l.b16 %v112
  %v493 = vunpack.c.h.b16 %v112
  %v494 = vunpack.c.l.b16 %v113
  %v495 = vunpack.c.h.b16 %v113
  %v496 = vunpack.c.l.b16 %v114
  %v497 = vunpack.c.h.b16 %v114
  %v498 = vunpack.c.l.b16 %v115
  %v499 = vunpack.c.h.b16 %v115
  %v500 = vunpack.c.l.b16 %v116
  %v501 = vunpack.c.h.b16 %v116
  %v502 = vunpack.c.l.b16 %v117
  %v503 = vunpack.c.h.b16 %v117
  %v504 = vunpack.c.l.b16 %v118
  %v505 = vunpack.c.h.b16 %v118
  %v506 = vunpack.c.l.b16 %v119
  %v507 = vunpack.c.h.b16 %v119
  %v508 = vunpack.c.l.b16 %v120
  %v509 = vunpack.c.h.b16 %v120
  %v510 = vunpack.c.l.b16 %v121
  %v511 = vunpack.c.h.b16 %v121
  %v512 = vunpack.c.l.b16 %v122
  %v513 = vunpack.c.h.b16 %v122
  %v514 = vunpack.c.l.b16 %v123
  %v515 = vunpack.c.h.b16 %v123
  %v516 = vunpack.c.l.b16 %v124
  %v517 = vunpack.c.h.b16 %v124
  %v518 = vunpack.c.l.b16 %v125
  %v519 = vunpack.c.h.b16 %v125
  %v520 = vunpack.c.l.b16 %v126
  %v521 = vunpack.c.h.b16 %v126
  %v522 = vunpack.c.l.b16 %v127
  %v523 = vunpack.c.h.b16 %v127
  %v524 = vunpack.c.l.b16 %v128
  %v525 = vunpack.c.h.b16 %v128
  %v526 = vunpack.c.l.b16 %v129
  %v527 = vunpack.c.h.b16 %v129
  %v528 = vunpack.c.l.b16 %v130
  %v529 = vunpack.c.h.b16 %v130
  %v530 = vunpack.c.l.b16 %v131
  %v531 = vunpack.c.h.b16 %v131
  %v532 = vunpack.c.l.b16 %v132
  %v533 = vunpack.c.h.b16 %v132
  %v534 = vunpack.c.l.b16 %v133
  %v535 = vunpack.c.h.b16 %v133
  %v536 = vunpack.c.l.b16 %v134
  %v537 = vunpack.c.h.b16 %v134
  %v538 = vunpack.c.l.b16 %v135
  %v539 = vunpack.c.h.b16 %v135
  %v540 = vunpack.c.l.b16 %v136
  %v541 = vunpack.c.h.b16 %v136
  %v542 = vunpack.c.l.b16 %v137
  %v543 = vunpack.c.h.b16 %v137
  %v544 = vunpack.c.l.b16 %v138
  %v545 = vunpack.c.h.b16 %v138
  %v546 = vunpack.c.l.b16 %v139
  %v547 = vunpack.c.h.b16 %v139
  %v548 = vunpack.c.l.b16 %v140
  %v549 = vunpack.c.h.b16 %v140
  %v550 = vunpack.c.l.b16 %v141
  %v551 = vunpack.c.h.b16 %v141
  %v552 = vunpack.c.l.b16 %v142
  %v553 = vunpack.c.h.b16 %v142
  %v554 = vunpack.c.l.b16 %v143
  %v555 = vunpack.c.h.b16 %v143
  %v556 = vunpack.c.l.b16 %v144
  %v557 = vunpack.c.h.b16 %v144
  %v558 = vunpack.c.l.b16 %v145
  %v559 = vunpack.c.h.b16 %v145
  %v560 = vunpack.c.l.b16 %v146
  %v561 = vunpack.c.h.b16 %v146
  %v562 = vunpack.c.l.b16 %v147
  %v563 = vunpack.c.h.b16 %v147
  %v564 = vunpack.c.l.b16 %v148
  %v565 = vunpack.c.h.b16 %v148
  %v566 = vunpack.c.l.b16 %v149
  %v567 = vunpack.c.h.b16 %v149
  %v568 = vunpack.c.l.b16 %v150
  %v569 = vunpack.c.h.b16 %v150
  %v570 = vunpack.c.l.b16 %v151
  %v571 = vunpack.c.h.b16 %v151
  %v572 = vunpack.c.l.b16 %v152
  %v573 = vunpack.c.h.b16 %v152
  %v574 = vunpack.c.l.b16 %v153
  %v575 = vunpack.c.h.b16 %v153
  %v576 = vunpack.c.l.b16 %v154
  %v577 = vunpack.c.h.b16 %v154
  %v578 = vunpack.c.l.b16 %v155
  %v579 = vunpack.c.h.b16 %v155
  %v580 = vunpack.c.l.b16 %v156
  %v581 = vunpack.c.h.b16 %v156
  %v582 = vunpack.c.l.b16 %v157
  %v583 = vunpack.c.h.b16 %v157
  %v584 = vpack.c.b16 %v336, %v328
  %v585 = vpack.c.b16 %v337, %v329
  %v586 = vpack.c.b16 %v338, %v330
  %v587 = vpack.c.b16 %v339, %v331
  %v588 = vpack.c.b16 %v340, %v332
  %v589 = vpack.c.b16 %v341, %v333
  %v590 = vpack.c.b16 %v342, %v334
  %v591 = vpack.c.b16 %v343, %v335
  %v592 = vpack.c.b16 %v352, %v344
  %v593 = vpack.c.b16 %v353, %v345
  %v594 = vpack.c.b16 %v354, %v346
  %v595 = vpack.c.b16 %v355, %v347
  %v596 = vpack.c.b16 %v356, %v348
  %v597 = vpack.c.b16 %v357, %v349
  %v598 = vpack.c.b16 %v358, %v350
  %v599 = vpack.c.b16 %v359, %v351
  %v600 = vpack.c.b16 %v368, %v360
  %v601 = vpack.c.b16 %v369, %v361
  %v602 = vpack.c.b16 %v370, %v362
  %v603 = vpack.c.b16 %v371, %v363
  %v604 = vpack.c.b16 %v372, %v364
  %v605 = vpack.c.b16 %v373, %v365
  %v606 = vpack.c.b16 %v374, %v366
  %v607 = vpack.c.b16 %v375, %v367
  %v608 = vpack.c.b16 %v384, %v376
  %v609 = vpack.c.b16 %v385, %v377
  %v610 = vpack.c.b16 %v386, %v378
  %v611 = vpack.c.b16 %v387, %v379
  %v612 = vpack.c.b16 %v388, %v380
  %v613 = vpack.c.b16 %v389, %v381
  %v614 = vpack.c.b16 %v390, %v382
  %v615 = vpack.c.b16 %v391, %v383
  %v616 = vpack.c.b16 %v400, %v392
  %v617 = vpack.c.b16 %v401, %v393
  %v618 = vpack.c.b16 %v402, %v394
  %v619 = vpack.c.b16 %v403, %v395
  %v620 = vpack.c.b16 %v404, %v396
  %v621 = vpack.c.b16 %v405, %v397
  %v622 = vpack.c.b16 %v406, %v398
  %v623 = vpack.c.b16 %v407, %v399
  %v624 = vpack.c.b16 %v416, %v408
  %v625 = vpack.c.b16 %v417, %v409
  %v626 = vpack.c.b16 %v418, %v410
  %v627 = vpack.c.b16 %v419, %v411
  %v628 = vpack.c.b16 %v420, %v412
  %v629 = vpack.c.b16 %v421, %v413
  %v630 = vpack.c.b16 %v422, %v414
  %v631 = vpack.c.b16 %v423, %v415
  %v632 = vpack.c.b16 %v432, %v424
  %v633 = vpack.c.b16 %v433, %v425
  %v634 = vpack.c.b16 %v434, %v426
  %v635 = vpack.c.b16 %v435, %v427
  %v636 = vpack.c.b16 %v436, %v428
  %v637 = vpack.c.b16 %v437, %v429
  %v638 = vpack.c.b16 %v438, %v430
  %v639 = vpack.c.b16 %v439, %v431
  %v640 = vpack.c.b16 %v448, %v440
  %v641 = vpack.c.b16 %v449, %v441
  %v642 = vpack.c.b16 %v450, %v442
  %v643 = vpack.c.b16 %v451, %v443
  %v644 = vpack.c.b16 %v452, %v444
  %v645 = vpack.c.b16 %v453, %v445
  %v646 = vpack.c.b16 %v454, %v446
  %v647 = vpack.c.b16 %v455, %v447
  %v648 = vpack.c.b16 %v464, %v456
  %v649 = vpack.c.b16 %v465, %v457
  %v650 = vpack.c.b16 %v466, %v458
  %v651 = vpack.c.b16 %v467, %v459
  %v652 = vpack.c.b16 %v468, %v460
  %v653 = vpack.c.b16 %v469, %v461
  %v654 = vpack.c.b16 %v470, %v462
  %v655 = vpack.c.b16 %v471, %v463
  %v656 = vpack.c.b16 %v480, %v472
  %v657 = vpack.c.b16 %v481, %v473
  %v658 = vpack.c.b16 %v482, %v474
  %v659 = vpack.c.b16 %v483, %v475
  %v660 = vpack.c.b16 %v484, %v476
  %v661 = vpack.c.b16 %v485, %v477
  %v662 = vpack.c.b16 %v486, %v478
  %v663 = vpack.c.b16 %v487, %v479
  %v664 = vpack.c.b16 %v496, %v488
  %v665 = vpack.c.b16 %v497, %v489
  %v666 = vpack.c.b16 %v498, %v490
  %v667 = vpack.c.b16 %v499, %v491
  %v668 = vpack.c.b16 %v500, %v492
  %v669 = vpack.c.b16 %v501, %v493
  %v670 = vpack.c.b16 %v502, %v494
  %v671 = vpack.c.b16 %v503, %v495
  %v672 = vpack.c.b16 %v512, %v504
  %v673 = vpack.c.b16 %v513, %v505
  %v674 = vpack.c.b16 %v514, %v506
  %v675 = vpack.c.b16 %v515, %v507
  %v676 = vpack.c.b16 %v516, %v508
  %v677 = vpack.c.b16 %v517, %v509
  %v678 = vpack.c.b16 %v518, %v510
  %v679 = vpack.c.b16 %v519, %v511
  %v680 = vpack.c.b16 %v528, %v520
  %v681 = vpack.c.b16 %v529, %v521
  %v682 = vpack.c.b16 %v530, %v522
  %v683 = vpack.c.b16 %v531, %v523
  %v684 = vpack.c.b16 %v532, %v524
  %v685 = vpack.c.b16 %v533, %v525
  %v686 = vpack.c.b16 %v534, %v526
  %v687 = vpack.c.b16 %v535, %v527
  %v688 = vpack.c.b16 %v544, %v536
  %v689 = vpack.c.b16 %v545, %v537
  %v690 = vpack.c.b16 %v546, %v538
  %v691 = vpack.c.b16 %v547, %v539
  %v692 = vpack.c.b16 %v548, %v540
  %v693 = vpack.c.b16 %v549, %v541
  %v694 = vpack.c.b16 %v550, %v542
  %v695 = vpack.c.b16 %v551, %v543
  %v696 = vpack.c.b16 %v560, %v552
  %v697 = vpack.c.b16 %v561, %v553
  %v698 = vpack.c.b16 %v562, %v554
  %v699 = vpack.c.b16 %v563, %v555
  %v700 = vpack.c.b16 %v564, %v556
  %v701 = vpack.c.b16 %v565, %v557
  %v702 = vpack.c.b16 %v566, %v558
  %v703 = vpack.c.b16 %v567, %v559
  %v704 = vpack.c.b16 %v576, %v568
  %v705 = vpack.c.b16 %v577, %v569
  %v706 = vpack.c.b16 %v578, %v570
  %v707 = vpack.c.b16 %v579, %v571
  %v708 = vpack.c.b16 %v580, %v572
  %v709 = vpack.c.b16 %v581, %v573
  %v710 = vpack.c.b16 %v582, %v574
  %v711 = vpack.c.b16 %v583, %v575
  %840 = vmatprep.subr.bf16.mxu0 %v641
  %841 = vmatpush1.bf16.msra.mxu0 %v640
  %842 = vmatprep.subr.bf16.mxu0 %v633
  %843 = vmatpush1.bf16.msra.mxu0 %v632
  %844 = vmatprep.subr.bf16.mxu0 %v625
  %845 = vmatpush1.bf16.msra.mxu0 %v624
  %846 = vmatprep.subr.bf16.mxu0 %v617
  %847 = vmatpush1.bf16.msra.mxu0 %v616
  %848 = vmatprep.subr.bf16.mxu0 %v609
  %849 = vmatpush1.bf16.msra.mxu0 %v608
  %850 = vmatprep.subr.bf16.mxu0 %v601
  %851 = vmatpush1.bf16.msra.mxu0 %v600
  %852 = vmatprep.subr.bf16.mxu0 %v593
  %853 = vmatpush1.bf16.msra.mxu0 %v592
  %854 = vmatprep.subr.bf16.mxu0 %v585
  %855 = vmatpush1.bf16.msra.mxu0 %v584
  %856 = vmatprep.subr.bf16.mxu0 %v705
  %857 = vmatpush2.bf16.msra.mxu0 %v704
  %858 = vmatprep.subr.bf16.mxu0 %v697
  %859 = vmatpush2.bf16.msra.mxu0 %v696
  %860 = vmatprep.subr.bf16.mxu0 %v689
  %861 = vmatpush2.bf16.msra.mxu0 %v688
  %862 = vmatprep.subr.bf16.mxu0 %v681
  %863 = vmatpush2.bf16.msra.mxu0 %v680
  %864 = vmatprep.subr.bf16.mxu0 %v673
  %865 = vmatpush2.bf16.msra.mxu0 %v672
  %866 = vmatprep.subr.bf16.mxu0 %v665
  %867 = vmatpush2.bf16.msra.mxu0 %v664
  %868 = vmatprep.subr.bf16.mxu0 %v657
  %869 = vmatpush2.bf16.msra.mxu0 %v656
  %870 = vmatprep.subr.bf16.mxu0 %v649
  %871 = vmatpush2.bf16.msra.mxu0 %v648
  %872 = vmatprep.mubr.bf16.mxu0 %v29
  %873 = vmatmul.mubr.bf16.gmra.mxu0 %v28
  %v874 = vpop.f32.mrf.mxu0
  %v875 = vadd.f32 %v163, %v874
  %v876 = vpop.f32.mrf.mxu0
  %v877 = vadd.f32 %v167, %v876
  %v878 = vpop.f32.mrf.mxu0
  %v879 = vpop.f32.mrf.mxu0
  %880 = vdwg.mxu0
  %881 = vmatprep.subr.bf16.mxu0 %v643
  %882 = vmatpush1.bf16.msra.mxu0 %v642
  %883 = vmatprep.subr.bf16.mxu0 %v635
  %884 = vmatpush1.bf16.msra.mxu0 %v634
  %885 = vmatprep.subr.bf16.mxu0 %v627
  %886 = vmatpush1.bf16.msra.mxu0 %v626
  %887 = vmatprep.subr.bf16.mxu0 %v619
  %888 = vmatpush1.bf16.msra.mxu0 %v618
  %889 = vmatprep.subr.bf16.mxu0 %v611
  %890 = vmatpush1.bf16.msra.mxu0 %v610
  %891 = vmatprep.subr.bf16.mxu0 %v603
  %892 = vmatpush1.bf16.msra.mxu0 %v602
  %893 = vmatprep.subr.bf16.mxu0 %v595
  %894 = vmatpush1.bf16.msra.mxu0 %v594
  %895 = vmatprep.subr.bf16.mxu0 %v587
  %896 = vmatpush1.bf16.msra.mxu0 %v586
  %897 = vmatprep.subr.bf16.mxu0 %v707
  %898 = vmatpush2.bf16.msra.mxu0 %v706
  %899 = vmatprep.subr.bf16.mxu0 %v699
  %900 = vmatpush2.bf16.msra.mxu0 %v698
  %901 = vmatprep.subr.bf16.mxu0 %v691
  %902 = vmatpush2.bf16.msra.mxu0 %v690
  %903 = vmatprep.subr.bf16.mxu0 %v683
  %904 = vmatpush2.bf16.msra.mxu0 %v682
  %905 = vmatprep.subr.bf16.mxu0 %v675
  %906 = vmatpush2.bf16.msra.mxu0 %v674
  %907 = vmatprep.subr.bf16.mxu0 %v667
  %908 = vmatpush2.bf16.msra.mxu0 %v666
  %909 = vmatprep.subr.bf16.mxu0 %v659
  %910 = vmatpush2.bf16.msra.mxu0 %v658
  %911 = vmatprep.subr.bf16.mxu0 %v651
  %912 = vmatpush2.bf16.msra.mxu0 %v650
  %913 = vmatprep.mubr.bf16.mxu0 %v29
  %914 = vmatmul.mubr.bf16.gmra.mxu0 %v28
  %v915 = vpop.f32.mrf.mxu0
  %v916 = vadd.f32 %v171, %v915
  %v917 = vpop.f32.mrf.mxu0
  %v918 = vadd.f32 %v175, %v917
  %v919 = vpop.f32.mrf.mxu0
  %v920 = vpop.f32.mrf.mxu0
  %921 = vdwg.mxu0
  %922 = vmatprep.subr.bf16.mxu0 %v645
  %923 = vmatpush1.bf16.msra.mxu0 %v644
  %924 = vmatprep.subr.bf16.mxu0 %v637
  %925 = vmatpush1.bf16.msra.mxu0 %v636
  %926 = vmatprep.subr.bf16.mxu0 %v629
  %927 = vmatpush1.bf16.msra.mxu0 %v628
  %928 = vmatprep.subr.bf16.mxu0 %v621
  %929 = vmatpush1.bf16.msra.mxu0 %v620
  %930 = vmatprep.subr.bf16.mxu0 %v613
  %931 = vmatpush1.bf16.msra.mxu0 %v612
  %932 = vmatprep.subr.bf16.mxu0 %v605
  %933 = vmatpush1.bf16.msra.mxu0 %v604
  %934 = vmatprep.subr.bf16.mxu0 %v597
  %935 = vmatpush1.bf16.msra.mxu0 %v596
  %936 = vmatprep.subr.bf16.mxu0 %v589
  %937 = vmatpush1.bf16.msra.mxu0 %v588
  %938 = vmatprep.subr.bf16.mxu0 %v709
  %939 = vmatpush2.bf16.msra.mxu0 %v708
  %940 = vmatprep.subr.bf16.mxu0 %v701
  %941 = vmatpush2.bf16.msra.mxu0 %v700
  %942 = vmatprep.subr.bf16.mxu0 %v693
  %943 = vmatpush2.bf16.msra.mxu0 %v692
  %944 = vmatprep.subr.bf16.mxu0 %v685
  %945 = vmatpush2.bf16.msra.mxu0 %v684
  %946 = vmatprep.subr.bf16.mxu0 %v677
  %947 = vmatpush2.bf16.msra.mxu0 %v676
  %948 = vmatprep.subr.bf16.mxu0 %v669
  %949 = vmatpush2.bf16.msra.mxu0 %v668
  %950 = vmatprep.subr.bf16.mxu0 %v661
  %951 = vmatpush2.bf16.msra.mxu0 %v660
  %952 = vmatprep.subr.bf16.mxu0 %v653
  %953 = vmatpush2.bf16.msra.mxu0 %v652
  %954 = vmatprep.mubr.bf16.mxu0 %v29
  %955 = vmatmul.mubr.bf16.gmra.mxu0 %v28
  %v956 = vpop.f32.mrf.mxu0
  %v957 = vadd.f32 %v179, %v956
  %v958 = vpop.f32.mrf.mxu0
  %v959 = vadd.f32 %v183, %v958
  %v960 = vpop.f32.mrf.mxu0
  %v961 = vpop.f32.mrf.mxu0
  %962 = vdwg.mxu0
  %963 = vmatprep.subr.bf16.mxu0 %v647
  %964 = vmatpush1.bf16.msra.mxu0 %v646
  %965 = vmatprep.subr.bf16.mxu0 %v639
  %966 = vmatpush1.bf16.msra.mxu0 %v638
  %967 = vmatprep.subr.bf16.mxu0 %v631
  %968 = vmatpush1.bf16.msra.mxu0 %v630
  %969 = vmatprep.subr.bf16.mxu0 %v623
  %970 = vmatpush1.bf16.msra.mxu0 %v622
  %971 = vmatprep.subr.bf16.mxu0 %v615
  %972 = vmatpush1.bf16.msra.mxu0 %v614
  %973 = vmatprep.subr.bf16.mxu0 %v607
  %974 = vmatpush1.bf16.msra.mxu0 %v606
  %975 = vmatprep.subr.bf16.mxu0 %v599
  %976 = vmatpush1.bf16.msra.mxu0 %v598
  %977 = vmatprep.subr.bf16.mxu0 %v591
  %978 = vmatpush1.bf16.msra.mxu0 %v590
  %979 = vmatprep.subr.bf16.mxu0 %v711
  %980 = vmatpush2.bf16.msra.mxu0 %v710
  %981 = vmatprep.subr.bf16.mxu0 %v703
  %982 = vmatpush2.bf16.msra.mxu0 %v702
  %983 = vmatprep.subr.bf16.mxu0 %v695
  %984 = vmatpush2.bf16.msra.mxu0 %v694
  %985 = vmatprep.subr.bf16.mxu0 %v687
  %986 = vmatpush2.bf16.msra.mxu0 %v686
  %987 = vmatprep.subr.bf16.mxu0 %v679
  %988 = vmatpush2.bf16.msra.mxu0 %v678
  %989 = vmatprep.subr.bf16.mxu0 %v671
  %990 = vmatpush2.bf16.msra.mxu0 %v670
  %991 = vmatprep.subr.bf16.mxu0 %v663
  %992 = vmatpush2.bf16.msra.mxu0 %v662
  %993 = vmatprep.subr.bf16.mxu0 %v655
  %994 = vmatpush2.bf16.msra.mxu0 %v654
  %995 = vmatprep.mubr.bf16.mxu0 %v29
  %996 = vmatmul.mubr.bf16.gmra.mxu0 %v28
  %v997 = vpop.f32.mrf.mxu0
  %v998 = vadd.f32 %v187, %v997
  %v999 = vpop.f32.mrf.mxu0
  %v1000 = vadd.f32 %v191, %v999
  %v1001 = vpop.f32.mrf.mxu0
  %v1002 = vpop.f32.mrf.mxu0
  %1003 = vdwg.mxu0
  %v1004 = vmax.f32 %v875, 0.0
  %v1005 = vmax.f32 %v877, 0.0
  %v1006 = vmax.f32 %v916, 0.0
  %v1007 = vmax.f32 %v918, 0.0
  %v1008 = vmax.f32 %v957, 0.0
  %v1009 = vmax.f32 %v959, 0.0
  %v1010 = vmax.f32 %v998, 0.0
  %v1011 = vmax.f32 %v1000, 0.0
  %v1012 = vpack.c.bf16 %v1004, %v1004
  %v1013 = vpack.c.bf16 %v1005, %v1005
  %v1014 = vpack.c.bf16 %v1006, %v1006
  %v1015 = vpack.c.bf16 %v1007, %v1007
  %v1016 = vpack.c.bf16 %v1008, %v1008
  %v1017 = vpack.c.bf16 %v1009, %v1009
  %v1018 = vpack.c.bf16 %v1010, %v1010
  %v1019 = vpack.c.bf16 %v1011, %v1011
  %v1020 = vld [vmem:[%s3] sm:$0xff]
  %v1021 = vld [vmem:[%s3 + $0x8] sm:$0xff]
  %v1022 = vld [vmem:[%s3 + $0x10] sm:$0xff]
  %v1023 = vld [vmem:[%s3 + $0x18] sm:$0xff]
  %v1024 = vld [vmem:[%s3 + $0x20] sm:$0xff]
  %v1025 = vld [vmem:[%s3 + $0x28] sm:$0xff]
  %v1026 = vld [vmem:[%s3 + $0x30] sm:$0xff]
  %v1027 = vld [vmem:[%s3 + $0x38] sm:$0xff]
  %v1028 = vld [vmem:[%s3 + $0x40] sm:$0xff]
  %v1029 = vld [vmem:[%s3 + $0x48] sm:$0xff]
  %v1030 = vld [vmem:[%s3 + $0x50] sm:$0xff]
  %v1031 = vld [vmem:[%s3 + $0x58] sm:$0xff]
  %v1032 = vld [vmem:[%s3 + $0x60] sm:$0xff]
  %v1033 = vld [vmem:[%s3 + $0x68] sm:$0xff]
  %v1034 = vld [vmem:[%s3 + $0x70] sm:$0xff]
  %v1035 = vld [vmem:[%s3 + $0x78] sm:$0xff]
  %v1036 = vld [vmem:[%s3 + $0x80] sm:$0xff]
  %v1037 = vld [vmem:[%s3 + $0x88] sm:$0xff]
  %v1038 = vld [vmem:[%s3 + $0x90] sm:$0xff]
  %v1039 = vld [vmem:[%s3 + $0x98] sm:$0xff]
  %v1040 = vld [vmem:[%s3 + $0xa0] sm:$0xff]
  %v1041 = vld [vmem:[%s3 + $0xa8] sm:$0xff]
  %v1042 = vld [vmem:[%s3 + $0xb0] sm:$0xff]
  %v1043 = vld [vmem:[%s3 + $0xb8] sm:$0xff]
  %v1044 = vld [vmem:[%s3 + $0xc0] sm:$0xff]
  %v1045 = vld [vmem:[%s3 + $0xc8] sm:$0xff]
  %v1046 = vld [vmem:[%s3 + $0xd0] sm:$0xff]
  %v1047 = vld [vmem:[%s3 + $0xd8] sm:$0xff]
  %v1048 = vld [vmem:[%s3 + $0xe0] sm:$0xff]
  %v1049 = vld [vmem:[%s3 + $0xe8] sm:$0xff]
  %v1050 = vld [vmem:[%s3 + $0xf0] sm:$0xff]
  %v1051 = vld [vmem:[%s3 + $0xf8] sm:$0xff]
  %v1052 = vld [vmem:[%s3 + $0x100] sm:$0xff]
  %v1053 = vld [vmem:[%s3 + $0x108] sm:$0xff]
  %v1054 = vld [vmem:[%s3 + $0x110] sm:$0xff]
  %v1055 = vld [vmem:[%s3 + $0x118] sm:$0xff]
  %v1056 = vld [vmem:[%s3 + $0x120] sm:$0xff]
  %v1057 = vld [vmem:[%s3 + $0x128] sm:$0xff]
  %v1058 = vld [vmem:[%s3 + $0x130] sm:$0xff]
  %v1059 = vld [vmem:[%s3 + $0x138] sm:$0xff]
  %v1060 = vld [vmem:[%s3 + $0x140] sm:$0xff]
  %v1061 = vld [vmem:[%s3 + $0x148] sm:$0xff]
  %v1062 = vld [vmem:[%s3 + $0x150] sm:$0xff]
  %v1063 = vld [vmem:[%s3 + $0x158] sm:$0xff]
  %v1064 = vld [vmem:[%s3 + $0x160] sm:$0xff]
  %v1065 = vld [vmem:[%s3 + $0x168] sm:$0xff]
  %v1066 = vld [vmem:[%s3 + $0x170] sm:$0xff]
  %v1067 = vld [vmem:[%s3 + $0x178] sm:$0xff]
  %v1068 = vld [vmem:[%s3 + $0x180] sm:$0xff]
  %v1069 = vld [vmem:[%s3 + $0x188] sm:$0xff]
  %v1070 = vld [vmem:[%s3 + $0x190] sm:$0xff]
  %v1071 = vld [vmem:[%s3 + $0x198] sm:$0xff]
  %v1072 = vld [vmem:[%s3 + $0x1a0] sm:$0xff]
  %v1073 = vld [vmem:[%s3 + $0x1a8] sm:$0xff]
  %v1074 = vld [vmem:[%s3 + $0x1b0] sm:$0xff]
  %v1075 = vld [vmem:[%s3 + $0x1b8] sm:$0xff]
  %v1076 = vld [vmem:[%s3 + $0x1c0] sm:$0xff]
  %v1077 = vld [vmem:[%s3 + $0x1c8] sm:$0xff]
  %v1078 = vld [vmem:[%s3 + $0x1d0] sm:$0xff]
  %v1079 = vld [vmem:[%s3 + $0x1d8] sm:$0xff]
  %v1080 = vld [vmem:[%s3 + $0x1e0] sm:$0xff]
  %v1081 = vld [vmem:[%s3 + $0x1e8] sm:$0xff]
  %v1082 = vld [vmem:[%s3 + $0x1f0] sm:$0xff]
  %v1083 = vld [vmem:[%s3 + $0x1f8] sm:$0xff]
  %v1084 = vld [vmem:[%s3 + $0x200] sm:$0xff]
  %v1085 = vld [vmem:[%s3 + $0x208] sm:$0xff]
  %v1086 = vld [vmem:[%s3 + $0x210] sm:$0xff]
  %v1087 = vld [vmem:[%s3 + $0x218] sm:$0xff]
  %v1088 = vld [vmem:[%s3 + $0x220] sm:$0xff]
  %v1089 = vld [vmem:[%s3 + $0x228] sm:$0xff]
  %v1090 = vld [vmem:[%s3 + $0x230] sm:$0xff]
  %v1091 = vld [vmem:[%s3 + $0x238] sm:$0xff]
  %v1092 = vld [vmem:[%s3 + $0x240] sm:$0xff]
  %v1093 = vld [vmem:[%s3 + $0x248] sm:$0xff]
  %v1094 = vld [vmem:[%s3 + $0x250] sm:$0xff]
  %v1095 = vld [vmem:[%s3 + $0x258] sm:$0xff]
  %v1096 = vld [vmem:[%s3 + $0x260] sm:$0xff]
  %v1097 = vld [vmem:[%s3 + $0x268] sm:$0xff]
  %v1098 = vld [vmem:[%s3 + $0x270] sm:$0xff]
  %v1099 = vld [vmem:[%s3 + $0x278] sm:$0xff]
  %v1100 = vld [vmem:[%s3 + $0x280] sm:$0xff]
  %v1101 = vld [vmem:[%s3 + $0x288] sm:$0xff]
  %v1102 = vld [vmem:[%s3 + $0x290] sm:$0xff]
  %v1103 = vld [vmem:[%s3 + $0x298] sm:$0xff]
  %v1104 = vld [vmem:[%s3 + $0x2a0] sm:$0xff]
  %v1105 = vld [vmem:[%s3 + $0x2a8] sm:$0xff]
  %v1106 = vld [vmem:[%s3 + $0x2b0] sm:$0xff]
  %v1107 = vld [vmem:[%s3 + $0x2b8] sm:$0xff]
  %v1108 = vld [vmem:[%s3 + $0x2c0] sm:$0xff]
  %v1109 = vld [vmem:[%s3 + $0x2c8] sm:$0xff]
  %v1110 = vld [vmem:[%s3 + $0x2d0] sm:$0xff]
  %v1111 = vld [vmem:[%s3 + $0x2d8] sm:$0xff]
  %v1112 = vld [vmem:[%s3 + $0x2e0] sm:$0xff]
  %v1113 = vld [vmem:[%s3 + $0x2e8] sm:$0xff]
  %v1114 = vld [vmem:[%s3 + $0x2f0] sm:$0xff]
  %v1115 = vld [vmem:[%s3 + $0x2f8] sm:$0xff]
  %v1116 = vld [vmem:[%s3 + $0x300] sm:$0xff]
  %v1117 = vld [vmem:[%s3 + $0x308] sm:$0xff]
  %v1118 = vld [vmem:[%s3 + $0x310] sm:$0xff]
  %v1119 = vld [vmem:[%s3 + $0x318] sm:$0xff]
  %v1120 = vld [vmem:[%s3 + $0x320] sm:$0xff]
  %v1121 = vld [vmem:[%s3 + $0x328] sm:$0xff]
  %v1122 = vld [vmem:[%s3 + $0x330] sm:$0xff]
  %v1123 = vld [vmem:[%s3 + $0x338] sm:$0xff]
  %v1124 = vld [vmem:[%s3 + $0x340] sm:$0xff]
  %v1125 = vld [vmem:[%s3 + $0x348] sm:$0xff]
  %v1126 = vld [vmem:[%s3 + $0x350] sm:$0xff]
  %v1127 = vld [vmem:[%s3 + $0x358] sm:$0xff]
  %v1128 = vld [vmem:[%s3 + $0x360] sm:$0xff]
  %v1129 = vld [vmem:[%s3 + $0x368] sm:$0xff]
  %v1130 = vld [vmem:[%s3 + $0x370] sm:$0xff]
  %v1131 = vld [vmem:[%s3 + $0x378] sm:$0xff]
  %v1132 = vld [vmem:[%s3 + $0x380] sm:$0xff]
  %v1133 = vld [vmem:[%s3 + $0x388] sm:$0xff]
  %v1134 = vld [vmem:[%s3 + $0x390] sm:$0xff]
  %v1135 = vld [vmem:[%s3 + $0x398] sm:$0xff]
  %v1136 = vld [vmem:[%s3 + $0x3a0] sm:$0xff]
  %v1137 = vld [vmem:[%s3 + $0x3a8] sm:$0xff]
  %v1138 = vld [vmem:[%s3 + $0x3b0] sm:$0xff]
  %v1139 = vld [vmem:[%s3 + $0x3b8] sm:$0xff]
  %v1140 = vld [vmem:[%s3 + $0x3c0] sm:$0xff]
  %v1141 = vld [vmem:[%s3 + $0x3c8] sm:$0xff]
  %v1142 = vld [vmem:[%s3 + $0x3d0] sm:$0xff]
  %v1143 = vld [vmem:[%s3 + $0x3d8] sm:$0xff]
  %v1144 = vld [vmem:[%s3 + $0x3e0] sm:$0xff]
  %v1145 = vld [vmem:[%s3 + $0x3e8] sm:$0xff]
  %v1146 = vld [vmem:[%s3 + $0x3f0] sm:$0xff]
  %v1147 = vld [vmem:[%s3 + $0x3f8] sm:$0xff]
  %v1148 = vld [vmem:[%s3 + $0x400] sm:$0xff]
  %v1149 = vld [vmem:[%s3 + $0x408] sm:$0xff]
  %v1150 = vld [vmem:[%s3 + $0x410] sm:$0xff]
  %v1151 = vld [vmem:[%s3 + $0x418] sm:$0xff]
  %v1152 = vld [vmem:[%s3 + $0x420] sm:$0xff]
  %v1153 = vld [vmem:[%s3 + $0x428] sm:$0xff]
  %v1154 = vld [vmem:[%s3 + $0x430] sm:$0xff]
  %v1155 = vld [vmem:[%s3 + $0x438] sm:$0xff]
  %v1156 = vld [vmem:[%s3 + $0x440] sm:$0xff]
  %v1157 = vld [vmem:[%s3 + $0x448] sm:$0xff]
  %v1158 = vld [vmem:[%s3 + $0x450] sm:$0xff]
  %v1159 = vld [vmem:[%s3 + $0x458] sm:$0xff]
  %v1160 = vld [vmem:[%s3 + $0x460] sm:$0xff]
  %v1161 = vld [vmem:[%s3 + $0x468] sm:$0xff]
  %v1162 = vld [vmem:[%s3 + $0x470] sm:$0xff]
  %v1163 = vld [vmem:[%s3 + $0x478] sm:$0xff]
  %v1164 = vld [vmem:[%s3 + $0x480] sm:$0xff]
  %v1165 = vld [vmem:[%s3 + $0x488] sm:$0xff]
  %v1166 = vld [vmem:[%s3 + $0x490] sm:$0xff]
  %v1167 = vld [vmem:[%s3 + $0x498] sm:$0xff]
  %v1168 = vld [vmem:[%s3 + $0x4a0] sm:$0xff]
  %v1169 = vld [vmem:[%s3 + $0x4a8] sm:$0xff]
  %v1170 = vld [vmem:[%s3 + $0x4b0] sm:$0xff]
  %v1171 = vld [vmem:[%s3 + $0x4b8] sm:$0xff]
  %v1172 = vld [vmem:[%s3 + $0x4c0] sm:$0xff]
  %v1173 = vld [vmem:[%s3 + $0x4c8] sm:$0xff]
  %v1174 = vld [vmem:[%s3 + $0x4d0] sm:$0xff]
  %v1175 = vld [vmem:[%s3 + $0x4d8] sm:$0xff]
  %v1176 = vld [vmem:[%s3 + $0x4e0] sm:$0xff]
  %v1177 = vld [vmem:[%s3 + $0x4e8] sm:$0xff]
  %v1178 = vld [vmem:[%s3 + $0x4f0] sm:$0xff]
  %v1179 = vld [vmem:[%s3 + $0x4f8] sm:$0xff]
  %v1180 = vld [vmem:[%s3 + $0x500] sm:$0xff]
  %v1181 = vld [vmem:[%s3 + $0x508] sm:$0xff]
  %v1182 = vld [vmem:[%s3 + $0x510] sm:$0xff]
  %v1183 = vld [vmem:[%s3 + $0x518] sm:$0xff]
  %v1184 = vld [vmem:[%s3 + $0x520] sm:$0xff]
  %v1185 = vld [vmem:[%s3 + $0x528] sm:$0xff]
  %v1186 = vld [vmem:[%s3 + $0x530] sm:$0xff]
  %v1187 = vld [vmem:[%s3 + $0x538] sm:$0xff]
  %v1188 = vld [vmem:[%s3 + $0x540] sm:$0xff]
  %v1189 = vld [vmem:[%s3 + $0x548] sm:$0xff]
  %v1190 = vld [vmem:[%s3 + $0x550] sm:$0xff]
  %v1191 = vld [vmem:[%s3 + $0x558] sm:$0xff]
  %v1192 = vld [vmem:[%s3 + $0x560] sm:$0xff]
  %v1193 = vld [vmem:[%s3 + $0x568] sm:$0xff]
  %v1194 = vld [vmem:[%s3 + $0x570] sm:$0xff]
  %v1195 = vld [vmem:[%s3 + $0x578] sm:$0xff]
  %v1196 = vld [vmem:[%s3 + $0x580] sm:$0xff]
  %v1197 = vld [vmem:[%s3 + $0x588] sm:$0xff]
  %v1198 = vld [vmem:[%s3 + $0x590] sm:$0xff]
  %v1199 = vld [vmem:[%s3 + $0x598] sm:$0xff]
  %v1200 = vld [vmem:[%s3 + $0x5a0] sm:$0xff]
  %v1201 = vld [vmem:[%s3 + $0x5a8] sm:$0xff]
  %v1202 = vld [vmem:[%s3 + $0x5b0] sm:$0xff]
  %v1203 = vld [vmem:[%s3 + $0x5b8] sm:$0xff]
  %v1204 = vld [vmem:[%s3 + $0x5c0] sm:$0xff]
  %v1205 = vld [vmem:[%s3 + $0x5c8] sm:$0xff]
  %v1206 = vld [vmem:[%s3 + $0x5d0] sm:$0xff]
  %v1207 = vld [vmem:[%s3 + $0x5d8] sm:$0xff]
  %v1208 = vld [vmem:[%s3 + $0x5e0] sm:$0xff]
  %v1209 = vld [vmem:[%s3 + $0x5e8] sm:$0xff]
  %v1210 = vld [vmem:[%s3 + $0x5f0] sm:$0xff]
  %v1211 = vld [vmem:[%s3 + $0x5f8] sm:$0xff]
  %v1212 = vld [vmem:[%s3 + $0x600] sm:$0xff]
  %v1213 = vld [vmem:[%s3 + $0x608] sm:$0xff]
  %v1214 = vld [vmem:[%s3 + $0x610] sm:$0xff]
  %v1215 = vld [vmem:[%s3 + $0x618] sm:$0xff]
  %v1216 = vld [vmem:[%s3 + $0x620] sm:$0xff]
  %v1217 = vld [vmem:[%s3 + $0x628] sm:$0xff]
  %v1218 = vld [vmem:[%s3 + $0x630] sm:$0xff]
  %v1219 = vld [vmem:[%s3 + $0x638] sm:$0xff]
  %v1220 = vld [vmem:[%s3 + $0x640] sm:$0xff]
  %v1221 = vld [vmem:[%s3 + $0x648] sm:$0xff]
  %v1222 = vld [vmem:[%s3 + $0x650] sm:$0xff]
  %v1223 = vld [vmem:[%s3 + $0x658] sm:$0xff]
  %v1224 = vld [vmem:[%s3 + $0x660] sm:$0xff]
  %v1225 = vld [vmem:[%s3 + $0x668] sm:$0xff]
  %v1226 = vld [vmem:[%s3 + $0x670] sm:$0xff]
  %v1227 = vld [vmem:[%s3 + $0x678] sm:$0xff]
  %v1228 = vld [vmem:[%s3 + $0x680] sm:$0xff]
  %v1229 = vld [vmem:[%s3 + $0x688] sm:$0xff]
  %v1230 = vld [vmem:[%s3 + $0x690] sm:$0xff]
  %v1231 = vld [vmem:[%s3 + $0x698] sm:$0xff]
  %v1232 = vld [vmem:[%s3 + $0x6a0] sm:$0xff]
  %v1233 = vld [vmem:[%s3 + $0x6a8] sm:$0xff]
  %v1234 = vld [vmem:[%s3 + $0x6b0] sm:$0xff]
  %v1235 = vld [vmem:[%s3 + $0x6b8] sm:$0xff]
  %v1236 = vld [vmem:[%s3 + $0x6c0] sm:$0xff]
  %v1237 = vld [vmem:[%s3 + $0x6c8] sm:$0xff]
  %v1238 = vld [vmem:[%s3 + $0x6d0] sm:$0xff]
  %v1239 = vld [vmem:[%s3 + $0x6d8] sm:$0xff]
  %v1240 = vld [vmem:[%s3 + $0x6e0] sm:$0xff]
  %v1241 = vld [vmem:[%s3 + $0x6e8] sm:$0xff]
  %v1242 = vld [vmem:[%s3 + $0x6f0] sm:$0xff]
  %v1243 = vld [vmem:[%s3 + $0x6f8] sm:$0xff]
  %v1244 = vld [vmem:[%s3 + $0x700] sm:$0xff]
  %v1245 = vld [vmem:[%s3 + $0x708] sm:$0xff]
  %v1246 = vld [vmem:[%s3 + $0x710] sm:$0xff]
  %v1247 = vld [vmem:[%s3 + $0x718] sm:$0xff]
  %v1248 = vld [vmem:[%s3 + $0x720] sm:$0xff]
  %v1249 = vld [vmem:[%s3 + $0x728] sm:$0xff]
  %v1250 = vld [vmem:[%s3 + $0x730] sm:$0xff]
  %v1251 = vld [vmem:[%s3 + $0x738] sm:$0xff]
  %v1252 = vld [vmem:[%s3 + $0x740] sm:$0xff]
  %v1253 = vld [vmem:[%s3 + $0x748] sm:$0xff]
  %v1254 = vld [vmem:[%s3 + $0x750] sm:$0xff]
  %v1255 = vld [vmem:[%s3 + $0x758] sm:$0xff]
  %v1256 = vld [vmem:[%s3 + $0x760] sm:$0xff]
  %v1257 = vld [vmem:[%s3 + $0x768] sm:$0xff]
  %v1258 = vld [vmem:[%s3 + $0x770] sm:$0xff]
  %v1259 = vld [vmem:[%s3 + $0x778] sm:$0xff]
  %v1260 = vld [vmem:[%s3 + $0x780] sm:$0xff]
  %v1261 = vld [vmem:[%s3 + $0x788] sm:$0xff]
  %v1262 = vld [vmem:[%s3 + $0x790] sm:$0xff]
  %v1263 = vld [vmem:[%s3 + $0x798] sm:$0xff]
  %v1264 = vld [vmem:[%s3 + $0x7a0] sm:$0xff]
  %v1265 = vld [vmem:[%s3 + $0x7a8] sm:$0xff]
  %v1266 = vld [vmem:[%s3 + $0x7b0] sm:$0xff]
  %v1267 = vld [vmem:[%s3 + $0x7b8] sm:$0xff]
  %v1268 = vld [vmem:[%s3 + $0x7c0] sm:$0xff]
  %v1269 = vld [vmem:[%s3 + $0x7c8] sm:$0xff]
  %v1270 = vld [vmem:[%s3 + $0x7d0] sm:$0xff]
  %v1271 = vld [vmem:[%s3 + $0x7d8] sm:$0xff]
  %v1272 = vld [vmem:[%s3 + $0x7e0] sm:$0xff]
  %v1273 = vld [vmem:[%s3 + $0x7e8] sm:$0xff]
  %v1274 = vld [vmem:[%s3 + $0x7f0] sm:$0xff]
  %v1275 = vld [vmem:[%s3 + $0x7f8] sm:$0xff]
  %v1276 = vld [vmem:[%s4] sm:$0xf]
  %v1278 = vlaneseq
  %v1279 = vshrl.u32 %v1278, 7
  %v1280 = vsub.s32 0, %v1279
  %v1281 = vrot.slane %v1276, %v1280
  %v1282 = vlaneseq
  %v1283 = vshrl.u32 %v1282, 7
  %v1284 = vsub.s32 1, %v1283
  %v1285 = vrot.slane %v1276, %v1284
  %v1286 = vlaneseq
  %v1287 = vshrl.u32 %v1286, 7
  %v1288 = vsub.s32 2, %v1287
  %v1289 = vrot.slane %v1276, %v1288
  %v1290 = vlaneseq
  %v1291 = vshrl.u32 %v1290, 7
  %v1292 = vsub.s32 3, %v1291
  %v1293 = vrot.slane %v1276, %v1292
  %v1554 = vunpack.c.l.b16 %v1020
  %v1555 = vunpack.c.h.b16 %v1020
  %v1556 = vunpack.c.l.b16 %v1021
  %v1557 = vunpack.c.h.b16 %v1021
  %v1558 = vunpack.c.l.b16 %v1022
  %v1559 = vunpack.c.h.b16 %v1022
  %v1560 = vunpack.c.l.b16 %v1023
  %v1561 = vunpack.c.h.b16 %v1023
  %v1562 = vunpack.c.l.b16 %v1024
  %v1563 = vunpack.c.h.b16 %v1024
  %v1564 = vunpack.c.l.b16 %v1025
  %v1565 = vunpack.c.h.b16 %v1025
  %v1566 = vunpack.c.l.b16 %v1026
  %v1567 = vunpack.c.h.b16 %v1026
  %v1568 = vunpack.c.l.b16 %v1027
  %v1569 = vunpack.c.h.b16 %v1027
  %v1570 = vunpack.c.l.b16 %v1028
  %v1571 = vunpack.c.h.b16 %v1028
  %v1572 = vunpack.c.l.b16 %v1029
  %v1573 = vunpack.c.h.b16 %v1029
  %v1574 = vunpack.c.l.b16 %v1030
  %v1575 = vunpack.c.h.b16 %v1030
  %v1576 = vunpack.c.l.b16 %v1031
  %v1577 = vunpack.c.h.b16 %v1031
  %v1578 = vunpack.c.l.b16 %v1032
  %v1579 = vunpack.c.h.b16 %v1032
  %v1580 = vunpack.c.l.b16 %v1033
  %v1581 = vunpack.c.h.b16 %v1033
  %v1582 = vunpack.c.l.b16 %v1034
  %v1583 = vunpack.c.h.b16 %v1034
  %v1584 = vunpack.c.l.b16 %v1035
  %v1585 = vunpack.c.h.b16 %v1035
  %v1586 = vunpack.c.l.b16 %v1036
  %v1587 = vunpack.c.h.b16 %v1036
  %v1588 = vunpack.c.l.b16 %v1037
  %v1589 = vunpack.c.h.b16 %v1037
  %v1590 = vunpack.c.l.b16 %v1038
  %v1591 = vunpack.c.h.b16 %v1038
  %v1592 = vunpack.c.l.b16 %v1039
  %v1593 = vunpack.c.h.b16 %v1039
  %v1594 = vunpack.c.l.b16 %v1040
  %v1595 = vunpack.c.h.b16 %v1040
  %v1596 = vunpack.c.l.b16 %v1041
  %v1597 = vunpack.c.h.b16 %v1041
  %v1598 = vunpack.c.l.b16 %v1042
  %v1599 = vunpack.c.h.b16 %v1042
  %v1600 = vunpack.c.l.b16 %v1043
  %v1601 = vunpack.c.h.b16 %v1043
  %v1602 = vunpack.c.l.b16 %v1044
  %v1603 = vunpack.c.h.b16 %v1044
  %v1604 = vunpack.c.l.b16 %v1045
  %v1605 = vunpack.c.h.b16 %v1045
  %v1606 = vunpack.c.l.b16 %v1046
  %v1607 = vunpack.c.h.b16 %v1046
  %v1608 = vunpack.c.l.b16 %v1047
  %v1609 = vunpack.c.h.b16 %v1047
  %v1610 = vunpack.c.l.b16 %v1048
  %v1611 = vunpack.c.h.b16 %v1048
  %v1612 = vunpack.c.l.b16 %v1049
  %v1613 = vunpack.c.h.b16 %v1049
  %v1614 = vunpack.c.l.b16 %v1050
  %v1615 = vunpack.c.h.b16 %v1050
  %v1616 = vunpack.c.l.b16 %v1051
  %v1617 = vunpack.c.h.b16 %v1051
  %v1618 = vunpack.c.l.b16 %v1052
  %v1619 = vunpack.c.h.b16 %v1052
  %v1620 = vunpack.c.l.b16 %v1053
  %v1621 = vunpack.c.h.b16 %v1053
  %v1622 = vunpack.c.l.b16 %v1054
  %v1623 = vunpack.c.h.b16 %v1054
  %v1624 = vunpack.c.l.b16 %v1055
  %v1625 = vunpack.c.h.b16 %v1055
  %v1626 = vunpack.c.l.b16 %v1056
  %v1627 = vunpack.c.h.b16 %v1056
  %v1628 = vunpack.c.l.b16 %v1057
  %v1629 = vunpack.c.h.b16 %v1057
  %v1630 = vunpack.c.l.b16 %v1058
  %v1631 = vunpack.c.h.b16 %v1058
  %v1632 = vunpack.c.l.b16 %v1059
  %v1633 = vunpack.c.h.b16 %v1059
  %v1634 = vunpack.c.l.b16 %v1060
  %v1635 = vunpack.c.h.b16 %v1060
  %v1636 = vunpack.c.l.b16 %v1061
  %v1637 = vunpack.c.h.b16 %v1061
  %v1638 = vunpack.c.l.b16 %v1062
  %v1639 = vunpack.c.h.b16 %v1062
  %v1640 = vunpack.c.l.b16 %v1063
  %v1641 = vunpack.c.h.b16 %v1063
  %v1642 = vunpack.c.l.b16 %v1064
  %v1643 = vunpack.c.h.b16 %v1064
  %v1644 = vunpack.c.l.b16 %v1065
  %v1645 = vunpack.c.h.b16 %v1065
  %v1646 = vunpack.c.l.b16 %v1066
  %v1647 = vunpack.c.h.b16 %v1066
  %v1648 = vunpack.c.l.b16 %v1067
  %v1649 = vunpack.c.h.b16 %v1067
  %v1650 = vunpack.c.l.b16 %v1068
  %v1651 = vunpack.c.h.b16 %v1068
  %v1652 = vunpack.c.l.b16 %v1069
  %v1653 = vunpack.c.h.b16 %v1069
  %v1654 = vunpack.c.l.b16 %v1070
  %v1655 = vunpack.c.h.b16 %v1070
  %v1656 = vunpack.c.l.b16 %v1071
  %v1657 = vunpack.c.h.b16 %v1071
  %v1658 = vunpack.c.l.b16 %v1072
  %v1659 = vunpack.c.h.b16 %v1072
  %v1660 = vunpack.c.l.b16 %v1073
  %v1661 = vunpack.c.h.b16 %v1073
  %v1662 = vunpack.c.l.b16 %v1074
  %v1663 = vunpack.c.h.b16 %v1074
  %v1664 = vunpack.c.l.b16 %v1075
  %v1665 = vunpack.c.h.b16 %v1075
  %v1666 = vunpack.c.l.b16 %v1076
  %v1667 = vunpack.c.h.b16 %v1076
  %v1668 = vunpack.c.l.b16 %v1077
  %v1669 = vunpack.c.h.b16 %v1077
  %v1670 = vunpack.c.l.b16 %v1078
  %v1671 = vunpack.c.h.b16 %v1078
  %v1672 = vunpack.c.l.b16 %v1079
  %v1673 = vunpack.c.h.b16 %v1079
  %v1674 = vunpack.c.l.b16 %v1080
  %v1675 = vunpack.c.h.b16 %v1080
  %v1676 = vunpack.c.l.b16 %v1081
  %v1677 = vunpack.c.h.b16 %v1081
  %v1678 = vunpack.c.l.b16 %v1082
  %v1679 = vunpack.c.h.b16 %v1082
  %v1680 = vunpack.c.l.b16 %v1083
  %v1681 = vunpack.c.h.b16 %v1083
  %v1682 = vunpack.c.l.b16 %v1084
  %v1683 = vunpack.c.h.b16 %v1084
  %v1684 = vunpack.c.l.b16 %v1085
  %v1685 = vunpack.c.h.b16 %v1085
  %v1686 = vunpack.c.l.b16 %v1086
  %v1687 = vunpack.c.h.b16 %v1086
  %v1688 = vunpack.c.l.b16 %v1087
  %v1689 = vunpack.c.h.b16 %v1087
  %v1690 = vunpack.c.l.b16 %v1088
  %v1691 = vunpack.c.h.b16 %v1088
  %v1692 = vunpack.c.l.b16 %v1089
  %v1693 = vunpack.c.h.b16 %v1089
  %v1694 = vunpack.c.l.b16 %v1090
  %v1695 = vunpack.c.h.b16 %v1090
  %v1696 = vunpack.c.l.b16 %v1091
  %v1697 = vunpack.c.h.b16 %v1091
  %v1698 = vunpack.c.l.b16 %v1092
  %v1699 = vunpack.c.h.b16 %v1092
  %v1700 = vunpack.c.l.b16 %v1093
  %v1701 = vunpack.c.h.b16 %v1093
  %v1702 = vunpack.c.l.b16 %v1094
  %v1703 = vunpack.c.h.b16 %v1094
  %v1704 = vunpack.c.l.b16 %v1095
  %v1705 = vunpack.c.h.b16 %v1095
  %v1706 = vunpack.c.l.b16 %v1096
  %v1707 = vunpack.c.h.b16 %v1096
  %v1708 = vunpack.c.l.b16 %v1097
  %v1709 = vunpack.c.h.b16 %v1097
  %v1710 = vunpack.c.l.b16 %v1098
  %v1711 = vunpack.c.h.b16 %v1098
  %v1712 = vunpack.c.l.b16 %v1099
  %v1713 = vunpack.c.h.b16 %v1099
  %v1714 = vunpack.c.l.b16 %v1100
  %v1715 = vunpack.c.h.b16 %v1100
  %v1716 = vunpack.c.l.b16 %v1101
  %v1717 = vunpack.c.h.b16 %v1101
  %v1718 = vunpack.c.l.b16 %v1102
  %v1719 = vunpack.c.h.b16 %v1102
  %v1720 = vunpack.c.l.b16 %v1103
  %v1721 = vunpack.c.h.b16 %v1103
  %v1722 = vunpack.c.l.b16 %v1104
  %v1723 = vunpack.c.h.b16 %v1104
  %v1724 = vunpack.c.l.b16 %v1105
  %v1725 = vunpack.c.h.b16 %v1105
  %v1726 = vunpack.c.l.b16 %v1106
  %v1727 = vunpack.c.h.b16 %v1106
  %v1728 = vunpack.c.l.b16 %v1107
  %v1729 = vunpack.c.h.b16 %v1107
  %v1730 = vunpack.c.l.b16 %v1108
  %v1731 = vunpack.c.h.b16 %v1108
  %v1732 = vunpack.c.l.b16 %v1109
  %v1733 = vunpack.c.h.b16 %v1109
  %v1734 = vunpack.c.l.b16 %v1110
  %v1735 = vunpack.c.h.b16 %v1110
  %v1736 = vunpack.c.l.b16 %v1111
  %v1737 = vunpack.c.h.b16 %v1111
  %v1738 = vunpack.c.l.b16 %v1112
  %v1739 = vunpack.c.h.b16 %v1112
  %v1740 = vunpack.c.l.b16 %v1113
  %v1741 = vunpack.c.h.b16 %v1113
  %v1742 = vunpack.c.l.b16 %v1114
  %v1743 = vunpack.c.h.b16 %v1114
  %v1744 = vunpack.c.l.b16 %v1115
  %v1745 = vunpack.c.h.b16 %v1115
  %v1746 = vunpack.c.l.b16 %v1116
  %v1747 = vunpack.c.h.b16 %v1116
  %v1748 = vunpack.c.l.b16 %v1117
  %v1749 = vunpack.c.h.b16 %v1117
  %v1750 = vunpack.c.l.b16 %v1118
  %v1751 = vunpack.c.h.b16 %v1118
  %v1752 = vunpack.c.l.b16 %v1119
  %v1753 = vunpack.c.h.b16 %v1119
  %v1754 = vunpack.c.l.b16 %v1120
  %v1755 = vunpack.c.h.b16 %v1120
  %v1756 = vunpack.c.l.b16 %v1121
  %v1757 = vunpack.c.h.b16 %v1121
  %v1758 = vunpack.c.l.b16 %v1122
  %v1759 = vunpack.c.h.b16 %v1122
  %v1760 = vunpack.c.l.b16 %v1123
  %v1761 = vunpack.c.h.b16 %v1123
  %v1762 = vunpack.c.l.b16 %v1124
  %v1763 = vunpack.c.h.b16 %v1124
  %v1764 = vunpack.c.l.b16 %v1125
  %v1765 = vunpack.c.h.b16 %v1125
  %v1766 = vunpack.c.l.b16 %v1126
  %v1767 = vunpack.c.h.b16 %v1126
  %v1768 = vunpack.c.l.b16 %v1127
  %v1769 = vunpack.c.h.b16 %v1127
  %v1770 = vunpack.c.l.b16 %v1128
  %v1771 = vunpack.c.h.b16 %v1128
  %v1772 = vunpack.c.l.b16 %v1129
  %v1773 = vunpack.c.h.b16 %v1129
  %v1774 = vunpack.c.l.b16 %v1130
  %v1775 = vunpack.c.h.b16 %v1130
  %v1776 = vunpack.c.l.b16 %v1131
  %v1777 = vunpack.c.h.b16 %v1131
  %v1778 = vunpack.c.l.b16 %v1132
  %v1779 = vunpack.c.h.b16 %v1132
  %v1780 = vunpack.c.l.b16 %v1133
  %v1781 = vunpack.c.h.b16 %v1133
  %v1782 = vunpack.c.l.b16 %v1134
  %v1783 = vunpack.c.h.b16 %v1134
  %v1784 = vunpack.c.l.b16 %v1135
  %v1785 = vunpack.c.h.b16 %v1135
  %v1786 = vunpack.c.l.b16 %v1136
  %v1787 = vunpack.c.h.b16 %v1136
  %v1788 = vunpack.c.l.b16 %v1137
  %v1789 = vunpack.c.h.b16 %v1137
  %v1790 = vunpack.c.l.b16 %v1138
  %v1791 = vunpack.c.h.b16 %v1138
  %v1792 = vunpack.c.l.b16 %v1139
  %v1793 = vunpack.c.h.b16 %v1139
  %v1794 = vunpack.c.l.b16 %v1140
  %v1795 = vunpack.c.h.b16 %v1140
  %v1796 = vunpack.c.l.b16 %v1141
  %v1797 = vunpack.c.h.b16 %v1141
  %v1798 = vunpack.c.l.b16 %v1142
  %v1799 = vunpack.c.h.b16 %v1142
  %v1800 = vunpack.c.l.b16 %v1143
  %v1801 = vunpack.c.h.b16 %v1143
  %v1802 = vunpack.c.l.b16 %v1144
  %v1803 = vunpack.c.h.b16 %v1144
  %v1804 = vunpack.c.l.b16 %v1145
  %v1805 = vunpack.c.h.b16 %v1145
  %v1806 = vunpack.c.l.b16 %v1146
  %v1807 = vunpack.c.h.b16 %v1146
  %v1808 = vunpack.c.l.b16 %v1147
  %v1809 = vunpack.c.h.b16 %v1147
  %v1810 = vunpack.c.l.b16 %v1148
  %v1811 = vunpack.c.h.b16 %v1148
  %v1812 = vunpack.c.l.b16 %v1149
  %v1813 = vunpack.c.h.b16 %v1149
  %v1814 = vunpack.c.l.b16 %v1150
  %v1815 = vunpack.c.h.b16 %v1150
  %v1816 = vunpack.c.l.b16 %v1151
  %v1817 = vunpack.c.h.b16 %v1151
  %v1818 = vunpack.c.l.b16 %v1152
  %v1819 = vunpack.c.h.b16 %v1152
  %v1820 = vunpack.c.l.b16 %v1153
  %v1821 = vunpack.c.h.b16 %v1153
  %v1822 = vunpack.c.l.b16 %v1154
  %v1823 = vunpack.c.h.b16 %v1154
  %v1824 = vunpack.c.l.b16 %v1155
  %v1825 = vunpack.c.h.b16 %v1155
  %v1826 = vunpack.c.l.b16 %v1156
  %v1827 = vunpack.c.h.b16 %v1156
  %v1828 = vunpack.c.l.b16 %v1157
  %v1829 = vunpack.c.h.b16 %v1157
  %v1830 = vunpack.c.l.b16 %v1158
  %v1831 = vunpack.c.h.b16 %v1158
  %v1832 = vunpack.c.l.b16 %v1159
  %v1833 = vunpack.c.h.b16 %v1159
  %v1834 = vunpack.c.l.b16 %v1160
  %v1835 = vunpack.c.h.b16 %v1160
  %v1836 = vunpack.c.l.b16 %v1161
  %v1837 = vunpack.c.h.b16 %v1161
  %v1838 = vunpack.c.l.b16 %v1162
  %v1839 = vunpack.c.h.b16 %v1162
  %v1840 = vunpack.c.l.b16 %v1163
  %v1841 = vunpack.c.h.b16 %v1163
  %v1842 = vunpack.c.l.b16 %v1164
  %v1843 = vunpack.c.h.b16 %v1164
  %v1844 = vunpack.c.l.b16 %v1165
  %v1845 = vunpack.c.h.b16 %v1165
  %v1846 = vunpack.c.l.b16 %v1166
  %v1847 = vunpack.c.h.b16 %v1166
  %v1848 = vunpack.c.l.b16 %v1167
  %v1849 = vunpack.c.h.b16 %v1167
  %v1850 = vunpack.c.l.b16 %v1168
  %v1851 = vunpack.c.h.b16 %v1168
  %v1852 = vunpack.c.l.b16 %v1169
  %v1853 = vunpack.c.h.b16 %v1169
  %v1854 = vunpack.c.l.b16 %v1170
  %v1855 = vunpack.c.h.b16 %v1170
  %v1856 = vunpack.c.l.b16 %v1171
  %v1857 = vunpack.c.h.b16 %v1171
  %v1858 = vunpack.c.l.b16 %v1172
  %v1859 = vunpack.c.h.b16 %v1172
  %v1860 = vunpack.c.l.b16 %v1173
  %v1861 = vunpack.c.h.b16 %v1173
  %v1862 = vunpack.c.l.b16 %v1174
  %v1863 = vunpack.c.h.b16 %v1174
  %v1864 = vunpack.c.l.b16 %v1175
  %v1865 = vunpack.c.h.b16 %v1175
  %v1866 = vunpack.c.l.b16 %v1176
  %v1867 = vunpack.c.h.b16 %v1176
  %v1868 = vunpack.c.l.b16 %v1177
  %v1869 = vunpack.c.h.b16 %v1177
  %v1870 = vunpack.c.l.b16 %v1178
  %v1871 = vunpack.c.h.b16 %v1178
  %v1872 = vunpack.c.l.b16 %v1179
  %v1873 = vunpack.c.h.b16 %v1179
  %v1874 = vunpack.c.l.b16 %v1180
  %v1875 = vunpack.c.h.b16 %v1180
  %v1876 = vunpack.c.l.b16 %v1181
  %v1877 = vunpack.c.h.b16 %v1181
  %v1878 = vunpack.c.l.b16 %v1182
  %v1879 = vunpack.c.h.b16 %v1182
  %v1880 = vunpack.c.l.b16 %v1183
  %v1881 = vunpack.c.h.b16 %v1183
  %v1882 = vunpack.c.l.b16 %v1184
  %v1883 = vunpack.c.h.b16 %v1184
  %v1884 = vunpack.c.l.b16 %v1185
  %v1885 = vunpack.c.h.b16 %v1185
  %v1886 = vunpack.c.l.b16 %v1186
  %v1887 = vunpack.c.h.b16 %v1186
  %v1888 = vunpack.c.l.b16 %v1187
  %v1889 = vunpack.c.h.b16 %v1187
  %v1890 = vunpack.c.l.b16 %v1188
  %v1891 = vunpack.c.h.b16 %v1188
  %v1892 = vunpack.c.l.b16 %v1189
  %v1893 = vunpack.c.h.b16 %v1189
  %v1894 = vunpack.c.l.b16 %v1190
  %v1895 = vunpack.c.h.b16 %v1190
  %v1896 = vunpack.c.l.b16 %v1191
  %v1897 = vunpack.c.h.b16 %v1191
  %v1898 = vunpack.c.l.b16 %v1192
  %v1899 = vunpack.c.h.b16 %v1192
  %v1900 = vunpack.c.l.b16 %v1193
  %v1901 = vunpack.c.h.b16 %v1193
  %v1902 = vunpack.c.l.b16 %v1194
  %v1903 = vunpack.c.h.b16 %v1194
  %v1904 = vunpack.c.l.b16 %v1195
  %v1905 = vunpack.c.h.b16 %v1195
  %v1906 = vunpack.c.l.b16 %v1196
  %v1907 = vunpack.c.h.b16 %v1196
  %v1908 = vunpack.c.l.b16 %v1197
  %v1909 = vunpack.c.h.b16 %v1197
  %v1910 = vunpack.c.l.b16 %v1198
  %v1911 = vunpack.c.h.b16 %v1198
  %v1912 = vunpack.c.l.b16 %v1199
  %v1913 = vunpack.c.h.b16 %v1199
  %v1914 = vunpack.c.l.b16 %v1200
  %v1915 = vunpack.c.h.b16 %v1200
  %v1916 = vunpack.c.l.b16 %v1201
  %v1917 = vunpack.c.h.b16 %v1201
  %v1918 = vunpack.c.l.b16 %v1202
  %v1919 = vunpack.c.h.b16 %v1202
  %v1920 = vunpack.c.l.b16 %v1203
  %v1921 = vunpack.c.h.b16 %v1203
  %v1922 = vunpack.c.l.b16 %v1204
  %v1923 = vunpack.c.h.b16 %v1204
  %v1924 = vunpack.c.l.b16 %v1205
  %v1925 = vunpack.c.h.b16 %v1205
  %v1926 = vunpack.c.l.b16 %v1206
  %v1927 = vunpack.c.h.b16 %v1206
  %v1928 = vunpack.c.l.b16 %v1207
  %v1929 = vunpack.c.h.b16 %v1207
  %v1930 = vunpack.c.l.b16 %v1208
  %v1931 = vunpack.c.h.b16 %v1208
  %v1932 = vunpack.c.l.b16 %v1209
  %v1933 = vunpack.c.h.b16 %v1209
  %v1934 = vunpack.c.l.b16 %v1210
  %v1935 = vunpack.c.h.b16 %v1210
  %v1936 = vunpack.c.l.b16 %v1211
  %v1937 = vunpack.c.h.b16 %v1211
  %v1938 = vunpack.c.l.b16 %v1212
  %v1939 = vunpack.c.h.b16 %v1212
  %v1940 = vunpack.c.l.b16 %v1213
  %v1941 = vunpack.c.h.b16 %v1213
  %v1942 = vunpack.c.l.b16 %v1214
  %v1943 = vunpack.c.h.b16 %v1214
  %v1944 = vunpack.c.l.b16 %v1215
  %v1945 = vunpack.c.h.b16 %v1215
  %v1946 = vunpack.c.l.b16 %v1216
  %v1947 = vunpack.c.h.b16 %v1216
  %v1948 = vunpack.c.l.b16 %v1217
  %v1949 = vunpack.c.h.b16 %v1217
  %v1950 = vunpack.c.l.b16 %v1218
  %v1951 = vunpack.c.h.b16 %v1218
  %v1952 = vunpack.c.l.b16 %v1219
  %v1953 = vunpack.c.h.b16 %v1219
  %v1954 = vunpack.c.l.b16 %v1220
  %v1955 = vunpack.c.h.b16 %v1220
  %v1956 = vunpack.c.l.b16 %v1221
  %v1957 = vunpack.c.h.b16 %v1221
  %v1958 = vunpack.c.l.b16 %v1222
  %v1959 = vunpack.c.h.b16 %v1222
  %v1960 = vunpack.c.l.b16 %v1223
  %v1961 = vunpack.c.h.b16 %v1223
  %v1962 = vunpack.c.l.b16 %v1224
  %v1963 = vunpack.c.h.b16 %v1224
  %v1964 = vunpack.c.l.b16 %v1225
  %v1965 = vunpack.c.h.b16 %v1225
  %v1966 = vunpack.c.l.b16 %v1226
  %v1967 = vunpack.c.h.b16 %v1226
  %v1968 = vunpack.c.l.b16 %v1227
  %v1969 = vunpack.c.h.b16 %v1227
  %v1970 = vunpack.c.l.b16 %v1228
  %v1971 = vunpack.c.h.b16 %v1228
  %v1972 = vunpack.c.l.b16 %v1229
  %v1973 = vunpack.c.h.b16 %v1229
  %v1974 = vunpack.c.l.b16 %v1230
  %v1975 = vunpack.c.h.b16 %v1230
  %v1976 = vunpack.c.l.b16 %v1231
  %v1977 = vunpack.c.h.b16 %v1231
  %v1978 = vunpack.c.l.b16 %v1232
  %v1979 = vunpack.c.h.b16 %v1232
  %v1980 = vunpack.c.l.b16 %v1233
  %v1981 = vunpack.c.h.b16 %v1233
  %v1982 = vunpack.c.l.b16 %v1234
  %v1983 = vunpack.c.h.b16 %v1234
  %v1984 = vunpack.c.l.b16 %v1235
  %v1985 = vunpack.c.h.b16 %v1235
  %v1986 = vunpack.c.l.b16 %v1236
  %v1987 = vunpack.c.h.b16 %v1236
  %v1988 = vunpack.c.l.b16 %v1237
  %v1989 = vunpack.c.h.b16 %v1237
  %v1990 = vunpack.c.l.b16 %v1238
  %v1991 = vunpack.c.h.b16 %v1238
  %v1992 = vunpack.c.l.b16 %v1239
  %v1993 = vunpack.c.h.b16 %v1239
  %v1994 = vunpack.c.l.b16 %v1240
  %v1995 = vunpack.c.h.b16 %v1240
  %v1996 = vunpack.c.l.b16 %v1241
  %v1997 = vunpack.c.h.b16 %v1241
  %v1998 = vunpack.c.l.b16 %v1242
  %v1999 = vunpack.c.h.b16 %v1242
  %v2000 = vunpack.c.l.b16 %v1243
  %v2001 = vunpack.c.h.b16 %v1243
  %v2002 = vunpack.c.l.b16 %v1244
  %v2003 = vunpack.c.h.b16 %v1244
  %v2004 = vunpack.c.l.b16 %v1245
  %v2005 = vunpack.c.h.b16 %v1245
  %v2006 = vunpack.c.l.b16 %v1246
  %v2007 = vunpack.c.h.b16 %v1246
  %v2008 = vunpack.c.l.b16 %v1247
  %v2009 = vunpack.c.h.b16 %v1247
  %v2010 = vunpack.c.l.b16 %v1248
  %v2011 = vunpack.c.h.b16 %v1248
  %v2012 = vunpack.c.l.b16 %v1249
  %v2013 = vunpack.c.h.b16 %v1249
  %v2014 = vunpack.c.l.b16 %v1250
  %v2015 = vunpack.c.h.b16 %v1250
  %v2016 = vunpack.c.l.b16 %v1251
  %v2017 = vunpack.c.h.b16 %v1251
  %v2018 = vunpack.c.l.b16 %v1252
  %v2019 = vunpack.c.h.b16 %v1252
  %v2020 = vunpack.c.l.b16 %v1253
  %v2021 = vunpack.c.h.b16 %v1253
  %v2022 = vunpack.c.l.b16 %v1254
  %v2023 = vunpack.c.h.b16 %v1254
  %v2024 = vunpack.c.l.b16 %v1255
  %v2025 = vunpack.c.h.b16 %v1255
  %v2026 = vunpack.c.l.b16 %v1256
  %v2027 = vunpack.c.h.b16 %v1256
  %v2028 = vunpack.c.l.b16 %v1257
  %v2029 = vunpack.c.h.b16 %v1257
  %v2030 = vunpack.c.l.b16 %v1258
  %v2031 = vunpack.c.h.b16 %v1258
  %v2032 = vunpack.c.l.b16 %v1259
  %v2033 = vunpack.c.h.b16 %v1259
  %v2034 = vunpack.c.l.b16 %v1260
  %v2035 = vunpack.c.h.b16 %v1260
  %v2036 = vunpack.c.l.b16 %v1261
  %v2037 = vunpack.c.h.b16 %v1261
  %v2038 = vunpack.c.l.b16 %v1262
  %v2039 = vunpack.c.h.b16 %v1262
  %v2040 = vunpack.c.l.b16 %v1263
  %v2041 = vunpack.c.h.b16 %v1263
  %v2042 = vunpack.c.l.b16 %v1264
  %v2043 = vunpack.c.h.b16 %v1264
  %v2044 = vunpack.c.l.b16 %v1265
  %v2045 = vunpack.c.h.b16 %v1265
  %v2046 = vunpack.c.l.b16 %v1266
  %v2047 = vunpack.c.h.b16 %v1266
  %v2048 = vunpack.c.l.b16 %v1267
  %v2049 = vunpack.c.h.b16 %v1267
  %v2050 = vunpack.c.l.b16 %v1268
  %v2051 = vunpack.c.h.b16 %v1268
  %v2052 = vunpack.c.l.b16 %v1269
  %v2053 = vunpack.c.h.b16 %v1269
  %v2054 = vunpack.c.l.b16 %v1270
  %v2055 = vunpack.c.h.b16 %v1270
  %v2056 = vunpack.c.l.b16 %v1271
  %v2057 = vunpack.c.h.b16 %v1271
  %v2058 = vunpack.c.l.b16 %v1272
  %v2059 = vunpack.c.h.b16 %v1272
  %v2060 = vunpack.c.l.b16 %v1273
  %v2061 = vunpack.c.h.b16 %v1273
  %v2062 = vunpack.c.l.b16 %v1274
  %v2063 = vunpack.c.h.b16 %v1274
  %v2064 = vunpack.c.l.b16 %v1275
  %v2065 = vunpack.c.h.b16 %v1275
  %v2066 = vpack.c.b16 %v1558, %v1554
  %v2067 = vpack.c.b16 %v1559, %v1555
  %v2068 = vpack.c.b16 %v1560, %v1556
  %v2069 = vpack.c.b16 %v1561, %v1557
  %v2070 = vpack.c.b16 %v1566, %v1562
  %v2071 = vpack.c.b16 %v1567, %v1563
  %v2072 = vpack.c.b16 %v1568, %v1564
  %v2073 = vpack.c.b16 %v1569, %v1565
  %v2074 = vpack.c.b16 %v1574, %v1570
  %v2075 = vpack.c.b16 %v1575, %v1571
  %v2076 = vpack.c.b16 %v1576, %v1572
  %v2077 = vpack.c.b16 %v1577, %v1573
  %v2078 = vpack.c.b16 %v1582, %v1578
  %v2079 = vpack.c.b16 %v1583, %v1579
  %v2080 = vpack.c.b16 %v1584, %v1580
  %v2081 = vpack.c.b16 %v1585, %v1581
  %v2082 = vpack.c.b16 %v1590, %v1586
  %v2083 = vpack.c.b16 %v1591, %v1587
  %v2084 = vpack.c.b16 %v1592, %v1588
  %v2085 = vpack.c.b16 %v1593, %v1589
  %v2086 = vpack.c.b16 %v1598, %v1594
  %v2087 = vpack.c.b16 %v1599, %v1595
  %v2088 = vpack.c.b16 %v1600, %v1596
  %v2089 = vpack.c.b16 %v1601, %v1597
  %v2090 = vpack.c.b16 %v1606, %v1602
  %v2091 = vpack.c.b16 %v1607, %v1603
  %v2092 = vpack.c.b16 %v1608, %v1604
  %v2093 = vpack.c.b16 %v1609, %v1605
  %v2094 = vpack.c.b16 %v1614, %v1610
  %v2095 = vpack.c.b16 %v1615, %v1611
  %v2096 = vpack.c.b16 %v1616, %v1612
  %v2097 = vpack.c.b16 %v1617, %v1613
  %v2098 = vpack.c.b16 %v1622, %v1618
  %v2099 = vpack.c.b16 %v1623, %v1619
  %v2100 = vpack.c.b16 %v1624, %v1620
  %v2101 = vpack.c.b16 %v1625, %v1621
  %v2102 = vpack.c.b16 %v1630, %v1626
  %v2103 = vpack.c.b16 %v1631, %v1627
  %v2104 = vpack.c.b16 %v1632, %v1628
  %v2105 = vpack.c.b16 %v1633, %v1629
  %v2106 = vpack.c.b16 %v1638, %v1634
  %v2107 = vpack.c.b16 %v1639, %v1635
  %v2108 = vpack.c.b16 %v1640, %v1636
  %v2109 = vpack.c.b16 %v1641, %v1637
  %v2110 = vpack.c.b16 %v1646, %v1642
  %v2111 = vpack.c.b16 %v1647, %v1643
  %v2112 = vpack.c.b16 %v1648, %v1644
  %v2113 = vpack.c.b16 %v1649, %v1645
  %v2114 = vpack.c.b16 %v1654, %v1650
  %v2115 = vpack.c.b16 %v1655, %v1651
  %v2116 = vpack.c.b16 %v1656, %v1652
  %v2117 = vpack.c.b16 %v1657, %v1653
  %v2118 = vpack.c.b16 %v1662, %v1658
  %v2119 = vpack.c.b16 %v1663, %v1659
  %v2120 = vpack.c.b16 %v1664, %v1660
  %v2121 = vpack.c.b16 %v1665, %v1661
  %v2122 = vpack.c.b16 %v1670, %v1666
  %v2123 = vpack.c.b16 %v1671, %v1667
  %v2124 = vpack.c.b16 %v1672, %v1668
  %v2125 = vpack.c.b16 %v1673, %v1669
  %v2126 = vpack.c.b16 %v1678, %v1674
  %v2127 = vpack.c.b16 %v1679, %v1675
  %v2128 = vpack.c.b16 %v1680, %v1676
  %v2129 = vpack.c.b16 %v1681, %v1677
  %v2130 = vpack.c.b16 %v1686, %v1682
  %v2131 = vpack.c.b16 %v1687, %v1683
  %v2132 = vpack.c.b16 %v1688, %v1684
  %v2133 = vpack.c.b16 %v1689, %v1685
  %v2134 = vpack.c.b16 %v1694, %v1690
  %v2135 = vpack.c.b16 %v1695, %v1691
  %v2136 = vpack.c.b16 %v1696, %v1692
  %v2137 = vpack.c.b16 %v1697, %v1693
  %v2138 = vpack.c.b16 %v1702, %v1698
  %v2139 = vpack.c.b16 %v1703, %v1699
  %v2140 = vpack.c.b16 %v1704, %v1700
  %v2141 = vpack.c.b16 %v1705, %v1701
  %v2142 = vpack.c.b16 %v1710, %v1706
  %v2143 = vpack.c.b16 %v1711, %v1707
  %v2144 = vpack.c.b16 %v1712, %v1708
  %v2145 = vpack.c.b16 %v1713, %v1709
  %v2146 = vpack.c.b16 %v1718, %v1714
  %v2147 = vpack.c.b16 %v1719, %v1715
  %v2148 = vpack.c.b16 %v1720, %v1716
  %v2149 = vpack.c.b16 %v1721, %v1717
  %v2150 = vpack.c.b16 %v1726, %v1722
  %v2151 = vpack.c.b16 %v1727, %v1723
  %v2152 = vpack.c.b16 %v1728, %v1724
  %v2153 = vpack.c.b16 %v1729, %v1725
  %v2154 = vpack.c.b16 %v1734, %v1730
  %v2155 = vpack.c.b16 %v1735, %v1731
  %v2156 = vpack.c.b16 %v1736, %v1732
  %v2157 = vpack.c.b16 %v1737, %v1733
  %v2158 = vpack.c.b16 %v1742, %v1738
  %v2159 = vpack.c.b16 %v1743, %v1739
  %v2160 = vpack.c.b16 %v1744, %v1740
  %v2161 = vpack.c.b16 %v1745, %v1741
  %v2162 = vpack.c.b16 %v1750, %v1746
  %v2163 = vpack.c.b16 %v1751, %v1747
  %v2164 = vpack.c.b16 %v1752, %v1748
  %v2165 = vpack.c.b16 %v1753, %v1749
  %v2166 = vpack.c.b16 %v1758, %v1754
  %v2167 = vpack.c.b16 %v1759, %v1755
  %v2168 = vpack.c.b16 %v1760, %v1756
  %v2169 = vpack.c.b16 %v1761, %v1757
  %v2170 = vpack.c.b16 %v1766, %v1762
  %v2171 = vpack.c.b16 %v1767, %v1763
  %v2172 = vpack.c.b16 %v1768, %v1764
  %v2173 = vpack.c.b16 %v1769, %v1765
  %v2174 = vpack.c.b16 %v1774, %v1770
  %v2175 = vpack.c.b16 %v1775, %v1771
  %v2176 = vpack.c.b16 %v1776, %v1772
  %v2177 = vpack.c.b16 %v1777, %v1773
  %v2178 = vpack.c.b16 %v1782, %v1778
  %v2179 = vpack.c.b16 %v1783, %v1779
  %v2180 = vpack.c.b16 %v1784, %v1780
  %v2181 = vpack.c.b16 %v1785, %v1781
  %v2182 = vpack.c.b16 %v1790, %v1786
  %v2183 = vpack.c.b16 %v1791, %v1787
  %v2184 = vpack.c.b16 %v1792, %v1788
  %v2185 = vpack.c.b16 %v1793, %v1789
  %v2186 = vpack.c.b16 %v1798, %v1794
  %v2187 = vpack.c.b16 %v1799, %v1795
  %v2188 = vpack.c.b16 %v1800, %v1796
  %v2189 = vpack.c.b16 %v1801, %v1797
  %v2190 = vpack.c.b16 %v1806, %v1802
  %v2191 = vpack.c.b16 %v1807, %v1803
  %v2192 = vpack.c.b16 %v1808, %v1804
  %v2193 = vpack.c.b16 %v1809, %v1805
  %v2194 = vpack.c.b16 %v1814, %v1810
  %v2195 = vpack.c.b16 %v1815, %v1811
  %v2196 = vpack.c.b16 %v1816, %v1812
  %v2197 = vpack.c.b16 %v1817, %v1813
  %v2198 = vpack.c.b16 %v1822, %v1818
  %v2199 = vpack.c.b16 %v1823, %v1819
  %v2200 = vpack.c.b16 %v1824, %v1820
  %v2201 = vpack.c.b16 %v1825, %v1821
  %v2202 = vpack.c.b16 %v1830, %v1826
  %v2203 = vpack.c.b16 %v1831, %v1827
  %v2204 = vpack.c.b16 %v1832, %v1828
  %v2205 = vpack.c.b16 %v1833, %v1829
  %v2206 = vpack.c.b16 %v1838, %v1834
  %v2207 = vpack.c.b16 %v1839, %v1835
  %v2208 = vpack.c.b16 %v1840, %v1836
  %v2209 = vpack.c.b16 %v1841, %v1837
  %v2210 = vpack.c.b16 %v1846, %v1842
  %v2211 = vpack.c.b16 %v1847, %v1843
  %v2212 = vpack.c.b16 %v1848, %v1844
  %v2213 = vpack.c.b16 %v1849, %v1845
  %v2214 = vpack.c.b16 %v1854, %v1850
  %v2215 = vpack.c.b16 %v1855, %v1851
  %v2216 = vpack.c.b16 %v1856, %v1852
  %v2217 = vpack.c.b16 %v1857, %v1853
  %v2218 = vpack.c.b16 %v1862, %v1858
  %v2219 = vpack.c.b16 %v1863, %v1859
  %v2220 = vpack.c.b16 %v1864, %v1860
  %v2221 = vpack.c.b16 %v1865, %v1861
  %v2222 = vpack.c.b16 %v1870, %v1866
  %v2223 = vpack.c.b16 %v1871, %v1867
  %v2224 = vpack.c.b16 %v1872, %v1868
  %v2225 = vpack.c.b16 %v1873, %v1869
  %v2226 = vpack.c.b16 %v1878, %v1874
  %v2227 = vpack.c.b16 %v1879, %v1875
  %v2228 = vpack.c.b16 %v1880, %v1876
  %v2229 = vpack.c.b16 %v1881, %v1877
  %v2230 = vpack.c.b16 %v1886, %v1882
  %v2231 = vpack.c.b16 %v1887, %v1883
  %v2232 = vpack.c.b16 %v1888, %v1884
  %v2233 = vpack.c.b16 %v1889, %v1885
  %v2234 = vpack.c.b16 %v1894, %v1890
  %v2235 = vpack.c.b16 %v1895, %v1891
  %v2236 = vpack.c.b16 %v1896, %v1892
  %v2237 = vpack.c.b16 %v1897, %v1893
  %v2238 = vpack.c.b16 %v1902, %v1898
  %v2239 = vpack.c.b16 %v1903, %v1899
  %v2240 = vpack.c.b16 %v1904, %v1900
  %v2241 = vpack.c.b16 %v1905, %v1901
  %v2242 = vpack.c.b16 %v1910, %v1906
  %v2243 = vpack.c.b16 %v1911, %v1907
  %v2244 = vpack.c.b16 %v1912, %v1908
  %v2245 = vpack.c.b16 %v1913, %v1909
  %v2246 = vpack.c.b16 %v1918, %v1914
  %v2247 = vpack.c.b16 %v1919, %v1915
  %v2248 = vpack.c.b16 %v1920, %v1916
  %v2249 = vpack.c.b16 %v1921, %v1917
  %v2250 = vpack.c.b16 %v1926, %v1922
  %v2251 = vpack.c.b16 %v1927, %v1923
  %v2252 = vpack.c.b16 %v1928, %v1924
  %v2253 = vpack.c.b16 %v1929, %v1925
  %v2254 = vpack.c.b16 %v1934, %v1930
  %v2255 = vpack.c.b16 %v1935, %v1931
  %v2256 = vpack.c.b16 %v1936, %v1932
  %v2257 = vpack.c.b16 %v1937, %v1933
  %v2258 = vpack.c.b16 %v1942, %v1938
  %v2259 = vpack.c.b16 %v1943, %v1939
  %v2260 = vpack.c.b16 %v1944, %v1940
  %v2261 = vpack.c.b16 %v1945, %v1941
  %v2262 = vpack.c.b16 %v1950, %v1946
  %v2263 = vpack.c.b16 %v1951, %v1947
  %v2264 = vpack.c.b16 %v1952, %v1948
  %v2265 = vpack.c.b16 %v1953, %v1949
  %v2266 = vpack.c.b16 %v1958, %v1954
  %v2267 = vpack.c.b16 %v1959, %v1955
  %v2268 = vpack.c.b16 %v1960, %v1956
  %v2269 = vpack.c.b16 %v1961, %v1957
  %v2270 = vpack.c.b16 %v1966, %v1962
  %v2271 = vpack.c.b16 %v1967, %v1963
  %v2272 = vpack.c.b16 %v1968, %v1964
  %v2273 = vpack.c.b16 %v1969, %v1965
  %v2274 = vpack.c.b16 %v1974, %v1970
  %v2275 = vpack.c.b16 %v1975, %v1971
  %v2276 = vpack.c.b16 %v1976, %v1972
  %v2277 = vpack.c.b16 %v1977, %v1973
  %v2278 = vpack.c.b16 %v1982, %v1978
  %v2279 = vpack.c.b16 %v1983, %v1979
  %v2280 = vpack.c.b16 %v1984, %v1980
  %v2281 = vpack.c.b16 %v1985, %v1981
  %v2282 = vpack.c.b16 %v1990, %v1986
  %v2283 = vpack.c.b16 %v1991, %v1987
  %v2284 = vpack.c.b16 %v1992, %v1988
  %v2285 = vpack.c.b16 %v1993, %v1989
  %v2286 = vpack.c.b16 %v1998, %v1994
  %v2287 = vpack.c.b16 %v1999, %v1995
  %v2288 = vpack.c.b16 %v2000, %v1996
  %v2289 = vpack.c.b16 %v2001, %v1997
  %v2290 = vpack.c.b16 %v2006, %v2002
  %v2291 = vpack.c.b16 %v2007, %v2003
  %v2292 = vpack.c.b16 %v2008, %v2004
  %v2293 = vpack.c.b16 %v2009, %v2005
  %v2294 = vpack.c.b16 %v2014, %v2010
  %v2295 = vpack.c.b16 %v2015, %v2011
  %v2296 = vpack.c.b16 %v2016, %v2012
  %v2297 = vpack.c.b16 %v2017, %v2013
  %v2298 = vpack.c.b16 %v2022, %v2018
  %v2299 = vpack.c.b16 %v2023, %v2019
  %v2300 = vpack.c.b16 %v2024, %v2020
  %v2301 = vpack.c.b16 %v2025, %v2021
  %v2302 = vpack.c.b16 %v2030, %v2026
  %v2303 = vpack.c.b16 %v2031, %v2027
  %v2304 = vpack.c.b16 %v2032, %v2028
  %v2305 = vpack.c.b16 %v2033, %v2029
  %v2306 = vpack.c.b16 %v2038, %v2034
  %v2307 = vpack.c.b16 %v2039, %v2035
  %v2308 = vpack.c.b16 %v2040, %v2036
  %v2309 = vpack.c.b16 %v2041, %v2037
  %v2310 = vpack.c.b16 %v2046, %v2042
  %v2311 = vpack.c.b16 %v2047, %v2043
  %v2312 = vpack.c.b16 %v2048, %v2044
  %v2313 = vpack.c.b16 %v2049, %v2045
  %v2314 = vpack.c.b16 %v2054, %v2050
  %v2315 = vpack.c.b16 %v2055, %v2051
  %v2316 = vpack.c.b16 %v2056, %v2052
  %v2317 = vpack.c.b16 %v2057, %v2053
  %v2318 = vpack.c.b16 %v2062, %v2058
  %v2319 = vpack.c.b16 %v2063, %v2059
  %v2320 = vpack.c.b16 %v2064, %v2060
  %v2321 = vpack.c.b16 %v2065, %v2061
  %2578 = vmatprep.subr.bf16.mxu0 %v2095
  %2579 = vmatpush1.bf16.msra.mxu0 %v2094
  %2580 = vmatprep.subr.bf16.mxu0 %v2091
  %2581 = vmatpush1.bf16.msra.mxu0 %v2090
  %2582 = vmatprep.subr.bf16.mxu0 %v2087
  %2583 = vmatpush1.bf16.msra.mxu0 %v2086
  %2584 = vmatprep.subr.bf16.mxu0 %v2083
  %2585 = vmatpush1.bf16.msra.mxu0 %v2082
  %2586 = vmatprep.subr.bf16.mxu0 %v2079
  %2587 = vmatpush1.bf16.msra.mxu0 %v2078
  %2588 = vmatprep.subr.bf16.mxu0 %v2075
  %2589 = vmatpush1.bf16.msra.mxu0 %v2074
  %2590 = vmatprep.subr.bf16.mxu0 %v2071
  %2591 = vmatpush1.bf16.msra.mxu0 %v2070
  %2592 = vmatprep.subr.bf16.mxu0 %v2067
  %2593 = vmatpush1.bf16.msra.mxu0 %v2066
  %2594 = vmatprep.subr.bf16.mxu0 %v2127
  %2595 = vmatpush2.bf16.msra.mxu0 %v2126
  %2596 = vmatprep.subr.bf16.mxu0 %v2123
  %2597 = vmatpush2.bf16.msra.mxu0 %v2122
  %2598 = vmatprep.subr.bf16.mxu0 %v2119
  %2599 = vmatpush2.bf16.msra.mxu0 %v2118
  %2600 = vmatprep.subr.bf16.mxu0 %v2115
  %2601 = vmatpush2.bf16.msra.mxu0 %v2114
  %2602 = vmatprep.subr.bf16.mxu0 %v2111
  %2603 = vmatpush2.bf16.msra.mxu0 %v2110
  %2604 = vmatprep.subr.bf16.mxu0 %v2107
  %2605 = vmatpush2.bf16.msra.mxu0 %v2106
  %2606 = vmatprep.subr.bf16.mxu0 %v2103
  %2607 = vmatpush2.bf16.msra.mxu0 %v2102
  %2608 = vmatprep.subr.bf16.mxu0 %v2099
  %2609 = vmatpush2.bf16.msra.mxu0 %v2098
  %2610 = vmatprep.mubr.bf16.mxu0 %v1013
  %2611 = vmatmul.mubr.bf16.gmra.mxu0 %v1012
  %v2612 = vpop.f32.mrf.mxu0
  %v2613 = vadd.f32 %v1281, %v2612
  %v2614 = vpop.f32.mrf.mxu0
  %v2615 = vadd.f32 %v1285, %v2614
  %v2616 = vpop.f32.mrf.mxu0
  %v2617 = vpop.f32.mrf.mxu0
  %2618 = vdwg.mxu0
  %2619 = vmatprep.subr.bf16.mxu0 %v2159
  %2620 = vmatpush1.bf16.msra.mxu0 %v2158
  %2621 = vmatprep.subr.bf16.mxu0 %v2155
  %2622 = vmatpush1.bf16.msra.mxu0 %v2154
  %2623 = vmatprep.subr.bf16.mxu0 %v2151
  %2624 = vmatpush1.bf16.msra.mxu0 %v2150
  %2625 = vmatprep.subr.bf16.mxu0 %v2147
  %2626 = vmatpush1.bf16.msra.mxu0 %v2146
  %2627 = vmatprep.subr.bf16.mxu0 %v2143
  %2628 = vmatpush1.bf16.msra.mxu0 %v2142
  %2629 = vmatprep.subr.bf16.mxu0 %v2139
  %2630 = vmatpush1.bf16.msra.mxu0 %v2138
  %2631 = vmatprep.subr.bf16.mxu0 %v2135
  %2632 = vmatpush1.bf16.msra.mxu0 %v2134
  %2633 = vmatprep.subr.bf16.mxu0 %v2131
  %2634 = vmatpush1.bf16.msra.mxu0 %v2130
  %2635 = vmatprep.subr.bf16.mxu0 %v2191
  %2636 = vmatpush2.bf16.msra.mxu0 %v2190
  %2637 = vmatprep.subr.bf16.mxu0 %v2187
  %2638 = vmatpush2.bf16.msra.mxu0 %v2186
  %2639 = vmatprep.subr.bf16.mxu0 %v2183
  %2640 = vmatpush2.bf16.msra.mxu0 %v2182
  %2641 = vmatprep.subr.bf16.mxu0 %v2179
  %2642 = vmatpush2.bf16.msra.mxu0 %v2178
  %2643 = vmatprep.subr.bf16.mxu0 %v2175
  %2644 = vmatpush2.bf16.msra.mxu0 %v2174
  %2645 = vmatprep.subr.bf16.mxu0 %v2171
  %2646 = vmatpush2.bf16.msra.mxu0 %v2170
  %2647 = vmatprep.subr.bf16.mxu0 %v2167
  %2648 = vmatpush2.bf16.msra.mxu0 %v2166
  %2649 = vmatprep.subr.bf16.mxu0 %v2163
  %2650 = vmatpush2.bf16.msra.mxu0 %v2162
  %2651 = vmatprep.mubr.bf16.mxu0 %v1015
  %2652 = vmatmul.mubr.bf16.gmra.mxu0 %v1014
  %v2653 = vpop.f32.mrf.mxu0
  %v2654 = vadd.f32 %v2613, %v2653
  %v2655 = vpop.f32.mrf.mxu0
  %v2656 = vadd.f32 %v2615, %v2655
  %v2657 = vpop.f32.mrf.mxu0
  %v2658 = vpop.f32.mrf.mxu0
  %2659 = vdwg.mxu0
  %2660 = vmatprep.subr.bf16.mxu0 %v2223
  %2661 = vmatpush1.bf16.msra.mxu0 %v2222
  %2662 = vmatprep.subr.bf16.mxu0 %v2219
  %2663 = vmatpush1.bf16.msra.mxu0 %v2218
  %2664 = vmatprep.subr.bf16.mxu0 %v2215
  %2665 = vmatpush1.bf16.msra.mxu0 %v2214
  %2666 = vmatprep.subr.bf16.mxu0 %v2211
  %2667 = vmatpush1.bf16.msra.mxu0 %v2210
  %2668 = vmatprep.subr.bf16.mxu0 %v2207
  %2669 = vmatpush1.bf16.msra.mxu0 %v2206
  %2670 = vmatprep.subr.bf16.mxu0 %v2203
  %2671 = vmatpush1.bf16.msra.mxu0 %v2202
  %2672 = vmatprep.subr.bf16.mxu0 %v2199
  %2673 = vmatpush1.bf16.msra.mxu0 %v2198
  %2674 = vmatprep.subr.bf16.mxu0 %v2195
  %2675 = vmatpush1.bf16.msra.mxu0 %v2194
  %2676 = vmatprep.subr.bf16.mxu0 %v2255
  %2677 = vmatpush2.bf16.msra.mxu0 %v2254
  %2678 = vmatprep.subr.bf16.mxu0 %v2251
  %2679 = vmatpush2.bf16.msra.mxu0 %v2250
  %2680 = vmatprep.subr.bf16.mxu0 %v2247
  %2681 = vmatpush2.bf16.msra.mxu0 %v2246
  %2682 = vmatprep.subr.bf16.mxu0 %v2243
  %2683 = vmatpush2.bf16.msra.mxu0 %v2242
  %2684 = vmatprep.subr.bf16.mxu0 %v2239
  %2685 = vmatpush2.bf16.msra.mxu0 %v2238
  %2686 = vmatprep.subr.bf16.mxu0 %v2235
  %2687 = vmatpush2.bf16.msra.mxu0 %v2234
  %2688 = vmatprep.subr.bf16.mxu0 %v2231
  %2689 = vmatpush2.bf16.msra.mxu0 %v2230
  %2690 = vmatprep.subr.bf16.mxu0 %v2227
  %2691 = vmatpush2.bf16.msra.mxu0 %v2226
  %2692 = vmatprep.mubr.bf16.mxu0 %v1017
  %2693 = vmatmul.mubr.bf16.gmra.mxu0 %v1016
  %v2694 = vpop.f32.mrf.mxu0
  %v2695 = vadd.f32 %v2654, %v2694
  %v2696 = vpop.f32.mrf.mxu0
  %v2697 = vadd.f32 %v2656, %v2696
  %v2698 = vpop.f32.mrf.mxu0
  %v2699 = vpop.f32.mrf.mxu0
  %2700 = vdwg.mxu0
  %2701 = vmatprep.subr.bf16.mxu0 %v2287
  %2702 = vmatpush1.bf16.msra.mxu0 %v2286
  %2703 = vmatprep.subr.bf16.mxu0 %v2283
  %2704 = vmatpush1.bf16.msra.mxu0 %v2282
  %2705 = vmatprep.subr.bf16.mxu0 %v2279
  %2706 = vmatpush1.bf16.msra.mxu0 %v2278
  %2707 = vmatprep.subr.bf16.mxu0 %v2275
  %2708 = vmatpush1.bf16.msra.mxu0 %v2274
  %2709 = vmatprep.subr.bf16.mxu0 %v2271
  %2710 = vmatpush1.bf16.msra.mxu0 %v2270
  %2711 = vmatprep.subr.bf16.mxu0 %v2267
  %2712 = vmatpush1.bf16.msra.mxu0 %v2266
  %2713 = vmatprep.subr.bf16.mxu0 %v2263
  %2714 = vmatpush1.bf16.msra.mxu0 %v2262
  %2715 = vmatprep.subr.bf16.mxu0 %v2259
  %2716 = vmatpush1.bf16.msra.mxu0 %v2258
  %2717 = vmatprep.subr.bf16.mxu0 %v2319
  %2718 = vmatpush2.bf16.msra.mxu0 %v2318
  %2719 = vmatprep.subr.bf16.mxu0 %v2315
  %2720 = vmatpush2.bf16.msra.mxu0 %v2314
  %2721 = vmatprep.subr.bf16.mxu0 %v2311
  %2722 = vmatpush2.bf16.msra.mxu0 %v2310
  %2723 = vmatprep.subr.bf16.mxu0 %v2307
  %2724 = vmatpush2.bf16.msra.mxu0 %v2306
  %2725 = vmatprep.subr.bf16.mxu0 %v2303
  %2726 = vmatpush2.bf16.msra.mxu0 %v2302
  %2727 = vmatprep.subr.bf16.mxu0 %v2299
  %2728 = vmatpush2.bf16.msra.mxu0 %v2298
  %2729 = vmatprep.subr.bf16.mxu0 %v2295
  %2730 = vmatpush2.bf16.msra.mxu0 %v2294
  %2731 = vmatprep.subr.bf16.mxu0 %v2291
  %2732 = vmatpush2.bf16.msra.mxu0 %v2290
  %2733 = vmatprep.mubr.bf16.mxu0 %v1019
  %2734 = vmatmul.mubr.bf16.gmra.mxu0 %v1018
  %v2735 = vpop.f32.mrf.mxu0
  %v2736 = vadd.f32 %v2695, %v2735
  %v2737 = vpop.f32.mrf.mxu0
  %v2738 = vadd.f32 %v2697, %v2737
  %v2739 = vpop.f32.mrf.mxu0
  %v2740 = vpop.f32.mrf.mxu0
  %2741 = vdwg.mxu0
  %2742 = vmatprep.subr.bf16.mxu0 %v2097
  %2743 = vmatpush1.bf16.msra.mxu0 %v2096
  %2744 = vmatprep.subr.bf16.mxu0 %v2093
  %2745 = vmatpush1.bf16.msra.mxu0 %v2092
  %2746 = vmatprep.subr.bf16.mxu0 %v2089
  %2747 = vmatpush1.bf16.msra.mxu0 %v2088
  %2748 = vmatprep.subr.bf16.mxu0 %v2085
  %2749 = vmatpush1.bf16.msra.mxu0 %v2084
  %2750 = vmatprep.subr.bf16.mxu0 %v2081
  %2751 = vmatpush1.bf16.msra.mxu0 %v2080
  %2752 = vmatprep.subr.bf16.mxu0 %v2077
  %2753 = vmatpush1.bf16.msra.mxu0 %v2076
  %2754 = vmatprep.subr.bf16.mxu0 %v2073
  %2755 = vmatpush1.bf16.msra.mxu0 %v2072
  %2756 = vmatprep.subr.bf16.mxu0 %v2069
  %2757 = vmatpush1.bf16.msra.mxu0 %v2068
  %2758 = vmatprep.subr.bf16.mxu0 %v2129
  %2759 = vmatpush2.bf16.msra.mxu0 %v2128
  %2760 = vmatprep.subr.bf16.mxu0 %v2125
  %2761 = vmatpush2.bf16.msra.mxu0 %v2124
  %2762 = vmatprep.subr.bf16.mxu0 %v2121
  %2763 = vmatpush2.bf16.msra.mxu0 %v2120
  %2764 = vmatprep.subr.bf16.mxu0 %v2117
  %2765 = vmatpush2.bf16.msra.mxu0 %v2116
  %2766 = vmatprep.subr.bf16.mxu0 %v2113
  %2767 = vmatpush2.bf16.msra.mxu0 %v2112
  %2768 = vmatprep.subr.bf16.mxu0 %v2109
  %2769 = vmatpush2.bf16.msra.mxu0 %v2108
  %2770 = vmatprep.subr.bf16.mxu0 %v2105
  %2771 = vmatpush2.bf16.msra.mxu0 %v2104
  %2772 = vmatprep.subr.bf16.mxu0 %v2101
  %2773 = vmatpush2.bf16.msra.mxu0 %v2100
  %2774 = vmatprep.mubr.bf16.mxu0 %v1013
  %2775 = vmatmul.mubr.bf16.gmra.mxu0 %v1012
  %v2776 = vpop.f32.mrf.mxu0
  %v2777 = vadd.f32 %v1289, %v2776
  %v2778 = vpop.f32.mrf.mxu0
  %v2779 = vadd.f32 %v1293, %v2778
  %v2780 = vpop.f32.mrf.mxu0
  %v2781 = vpop.f32.mrf.mxu0
  %2782 = vdwg.mxu0
  %2783 = vmatprep.subr.bf16.mxu0 %v2161
  %2784 = vmatpush1.bf16.msra.mxu0 %v2160
  %2785 = vmatprep.subr.bf16.mxu0 %v2157
  %2786 = vmatpush1.bf16.msra.mxu0 %v2156
  %2787 = vmatprep.subr.bf16.mxu0 %v2153
  %2788 = vmatpush1.bf16.msra.mxu0 %v2152
  %2789 = vmatprep.subr.bf16.mxu0 %v2149
  %2790 = vmatpush1.bf16.msra.mxu0 %v2148
  %2791 = vmatprep.subr.bf16.mxu0 %v2145
  %2792 = vmatpush1.bf16.msra.mxu0 %v2144
  %2793 = vmatprep.subr.bf16.mxu0 %v2141
  %2794 = vmatpush1.bf16.msra.mxu0 %v2140
  %2795 = vmatprep.subr.bf16.mxu0 %v2137
  %2796 = vmatpush1.bf16.msra.mxu0 %v2136
  %2797 = vmatprep.subr.bf16.mxu0 %v2133
  %2798 = vmatpush1.bf16.msra.mxu0 %v2132
  %2799 = vmatprep.subr.bf16.mxu0 %v2193
  %2800 = vmatpush2.bf16.msra.mxu0 %v2192
  %2801 = vmatprep.subr.bf16.mxu0 %v2189
  %2802 = vmatpush2.bf16.msra.mxu0 %v2188
  %2803 = vmatprep.subr.bf16.mxu0 %v2185
  %2804 = vmatpush2.bf16.msra.mxu0 %v2184
  %2805 = vmatprep.subr.bf16.mxu0 %v2181
  %2806 = vmatpush2.bf16.msra.mxu0 %v2180
  %2807 = vmatprep.subr.bf16.mxu0 %v2177
  %2808 = vmatpush2.bf16.msra.mxu0 %v2176
  %2809 = vmatprep.subr.bf16.mxu0 %v2173
  %2810 = vmatpush2.bf16.msra.mxu0 %v2172
  %2811 = vmatprep.subr.bf16.mxu0 %v2169
  %2812 = vmatpush2.bf16.msra.mxu0 %v2168
  %2813 = vmatprep.subr.bf16.mxu0 %v2165
  %2814 = vmatpush2.bf16.msra.mxu0 %v2164
  %2815 = vmatprep.mubr.bf16.mxu0 %v1015
  %2816 = vmatmul.mubr.bf16.gmra.mxu0 %v1014
  %v2817 = vpop.f32.mrf.mxu0
  %v2818 = vadd.f32 %v2777, %v2817
  %v2819 = vpop.f32.mrf.mxu0
  %v2820 = vadd.f32 %v2779, %v2819
  %v2821 = vpop.f32.mrf.mxu0
  %v2822 = vpop.f32.mrf.mxu0
  %2823 = vdwg.mxu0
  %2824 = vmatprep.subr.bf16.mxu0 %v2225
  %2825 = vmatpush1.bf16.msra.mxu0 %v2224
  %2826 = vmatprep.subr.bf16.mxu0 %v2221
  %2827 = vmatpush1.bf16.msra.mxu0 %v2220
  %2828 = vmatprep.subr.bf16.mxu0 %v2217
  %2829 = vmatpush1.bf16.msra.mxu0 %v2216
  %2830 = vmatprep.subr.bf16.mxu0 %v2213
  %2831 = vmatpush1.bf16.msra.mxu0 %v2212
  %2832 = vmatprep.subr.bf16.mxu0 %v2209
  %2833 = vmatpush1.bf16.msra.mxu0 %v2208
  %2834 = vmatprep.subr.bf16.mxu0 %v2205
  %2835 = vmatpush1.bf16.msra.mxu0 %v2204
  %2836 = vmatprep.subr.bf16.mxu0 %v2201
  %2837 = vmatpush1.bf16.msra.mxu0 %v2200
  %2838 = vmatprep.subr.bf16.mxu0 %v2197
  %2839 = vmatpush1.bf16.msra.mxu0 %v2196
  %2840 = vmatprep.subr.bf16.mxu0 %v2257
  %2841 = vmatpush2.bf16.msra.mxu0 %v2256
  %2842 = vmatprep.subr.bf16.mxu0 %v2253
  %2843 = vmatpush2.bf16.msra.mxu0 %v2252
  %2844 = vmatprep.subr.bf16.mxu0 %v2249
  %2845 = vmatpush2.bf16.msra.mxu0 %v2248
  %2846 = vmatprep.subr.bf16.mxu0 %v2245
  %2847 = vmatpush2.bf16.msra.mxu0 %v2244
  %2848 = vmatprep.subr.bf16.mxu0 %v2241
  %2849 = vmatpush2.bf16.msra.mxu0 %v2240
  %2850 = vmatprep.subr.bf16.mxu0 %v2237
  %2851 = vmatpush2.bf16.msra.mxu0 %v2236
  %2852 = vmatprep.subr.bf16.mxu0 %v2233
  %2853 = vmatpush2.bf16.msra.mxu0 %v2232
  %2854 = vmatprep.subr.bf16.mxu0 %v2229
  %2855 = vmatpush2.bf16.msra.mxu0 %v2228
  %2856 = vmatprep.mubr.bf16.mxu0 %v1017
  %2857 = vmatmul.mubr.bf16.gmra.mxu0 %v1016
  %v2858 = vpop.f32.mrf.mxu0
  %v2859 = vadd.f32 %v2818, %v2858
  %v2860 = vpop.f32.mrf.mxu0
  %v2861 = vadd.f32 %v2820, %v2860
  %v2862 = vpop.f32.mrf.mxu0
  %v2863 = vpop.f32.mrf.mxu0
  %2864 = vdwg.mxu0
  %2865 = vmatprep.subr.bf16.mxu0 %v2289
  %2866 = vmatpush1.bf16.msra.mxu0 %v2288
  %2867 = vmatprep.subr.bf16.mxu0 %v2285
  %2868 = vmatpush1.bf16.msra.mxu0 %v2284
  %2869 = vmatprep.subr.bf16.mxu0 %v2281
  %2870 = vmatpush1.bf16.msra.mxu0 %v2280
  %2871 = vmatprep.subr.bf16.mxu0 %v2277
  %2872 = vmatpush1.bf16.msra.mxu0 %v2276
  %2873 = vmatprep.subr.bf16.mxu0 %v2273
  %2874 = vmatpush1.bf16.msra.mxu0 %v2272
  %2875 = vmatprep.subr.bf16.mxu0 %v2269
  %2876 = vmatpush1.bf16.msra.mxu0 %v2268
  %2877 = vmatprep.subr.bf16.mxu0 %v2265
  %2878 = vmatpush1.bf16.msra.mxu0 %v2264
  %2879 = vmatprep.subr.bf16.mxu0 %v2261
  %2880 = vmatpush1.bf16.msra.mxu0 %v2260
  %2881 = vmatprep.subr.bf16.mxu0 %v2321
  %2882 = vmatpush2.bf16.msra.mxu0 %v2320
  %2883 = vmatprep.subr.bf16.mxu0 %v2317
  %2884 = vmatpush2.bf16.msra.mxu0 %v2316
  %2885 = vmatprep.subr.bf16.mxu0 %v2313
  %2886 = vmatpush2.bf16.msra.mxu0 %v2312
  %2887 = vmatprep.subr.bf16.mxu0 %v2309
  %2888 = vmatpush2.bf16.msra.mxu0 %v2308
  %2889 = vmatprep.subr.bf16.mxu0 %v2305
  %2890 = vmatpush2.bf16.msra.mxu0 %v2304
  %2891 = vmatprep.subr.bf16.mxu0 %v2301
  %2892 = vmatpush2.bf16.msra.mxu0 %v2300
  %2893 = vmatprep.subr.bf16.mxu0 %v2297
  %2894 = vmatpush2.bf16.msra.mxu0 %v2296
  %2895 = vmatprep.subr.bf16.mxu0 %v2293
  %2896 = vmatpush2.bf16.msra.mxu0 %v2292
  %2897 = vmatprep.mubr.bf16.mxu0 %v1019
  %2898 = vmatmul.mubr.bf16.gmra.mxu0 %v1018
  %v2899 = vpop.f32.mrf.mxu0
  %v2900 = vadd.f32 %v2859, %v2899
  %v2901 = vpop.f32.mrf.mxu0
  %v2902 = vadd.f32 %v2861, %v2901
  %v2903 = vpop.f32.mrf.mxu0
  %v2904 = vpop.f32.mrf.mxu0
  %2905 = vdwg.mxu0
  %v2906 = vmax.f32 %v2736, 0.0
  %v2907 = vmax.f32 %v2738, 0.0
  %v2908 = vmax.f32 %v2900, 0.0
  %v2909 = vmax.f32 %v2902, 0.0
  %v2910 = vpack.c.bf16 %v2906, %v2906
  %v2911 = vpack.c.bf16 %v2907, %v2907
  %v2912 = vpack.c.bf16 %v2908, %v2908
  %v2913 = vpack.c.bf16 %v2909, %v2909
  %v2914 = vld [vmem:[%s5] sm:$0xff]
  %v2915 = vld [vmem:[%s5 + $0x8] sm:$0xff]
  %v2916 = vld [vmem:[%s5 + $0x10] sm:$0xff]
  %v2917 = vld [vmem:[%s5 + $0x18] sm:$0xff]
  %v2918 = vld [vmem:[%s5 + $0x20] sm:$0xff]
  %v2919 = vld [vmem:[%s5 + $0x28] sm:$0xff]
  %v2920 = vld [vmem:[%s5 + $0x30] sm:$0xff]
  %v2921 = vld [vmem:[%s5 + $0x38] sm:$0xff]
  %v2922 = vld [vmem:[%s5 + $0x40] sm:$0xff]
  %v2923 = vld [vmem:[%s5 + $0x48] sm:$0xff]
  %v2924 = vld [vmem:[%s5 + $0x50] sm:$0xff]
  %v2925 = vld [vmem:[%s5 + $0x58] sm:$0xff]
  %v2926 = vld [vmem:[%s5 + $0x60] sm:$0xff]
  %v2927 = vld [vmem:[%s5 + $0x68] sm:$0xff]
  %v2928 = vld [vmem:[%s5 + $0x70] sm:$0xff]
  %v2929 = vld [vmem:[%s5 + $0x78] sm:$0xff]
  %v2930 = vld [vmem:[%s5 + $0x80] sm:$0xff]
  %v2931 = vld [vmem:[%s5 + $0x88] sm:$0xff]
  %v2932 = vld [vmem:[%s5 + $0x90] sm:$0xff]
  %v2933 = vld [vmem:[%s5 + $0x98] sm:$0xff]
  %v2934 = vld [vmem:[%s5 + $0xa0] sm:$0xff]
  %v2935 = vld [vmem:[%s5 + $0xa8] sm:$0xff]
  %v2936 = vld [vmem:[%s5 + $0xb0] sm:$0xff]
  %v2937 = vld [vmem:[%s5 + $0xb8] sm:$0xff]
  %v2938 = vld [vmem:[%s5 + $0xc0] sm:$0xff]
  %v2939 = vld [vmem:[%s5 + $0xc8] sm:$0xff]
  %v2940 = vld [vmem:[%s5 + $0xd0] sm:$0xff]
  %v2941 = vld [vmem:[%s5 + $0xd8] sm:$0xff]
  %v2942 = vld [vmem:[%s5 + $0xe0] sm:$0xff]
  %v2943 = vld [vmem:[%s5 + $0xe8] sm:$0xff]
  %v2944 = vld [vmem:[%s5 + $0xf0] sm:$0xff]
  %v2945 = vld [vmem:[%s5 + $0xf8] sm:$0xff]
  %v2946 = vld [vmem:[%s5 + $0x100] sm:$0xff]
  %v2947 = vld [vmem:[%s5 + $0x108] sm:$0xff]
  %v2948 = vld [vmem:[%s5 + $0x110] sm:$0xff]
  %v2949 = vld [vmem:[%s5 + $0x118] sm:$0xff]
  %v2950 = vld [vmem:[%s5 + $0x120] sm:$0xff]
  %v2951 = vld [vmem:[%s5 + $0x128] sm:$0xff]
  %v2952 = vld [vmem:[%s5 + $0x130] sm:$0xff]
  %v2953 = vld [vmem:[%s5 + $0x138] sm:$0xff]
  %v2954 = vld [vmem:[%s5 + $0x140] sm:$0xff]
  %v2955 = vld [vmem:[%s5 + $0x148] sm:$0xff]
  %v2956 = vld [vmem:[%s5 + $0x150] sm:$0xff]
  %v2957 = vld [vmem:[%s5 + $0x158] sm:$0xff]
  %v2958 = vld [vmem:[%s5 + $0x160] sm:$0xff]
  %v2959 = vld [vmem:[%s5 + $0x168] sm:$0xff]
  %v2960 = vld [vmem:[%s5 + $0x170] sm:$0xff]
  %v2961 = vld [vmem:[%s5 + $0x178] sm:$0xff]
  %v2962 = vld [vmem:[%s5 + $0x180] sm:$0xff]
  %v2963 = vld [vmem:[%s5 + $0x188] sm:$0xff]
  %v2964 = vld [vmem:[%s5 + $0x190] sm:$0xff]
  %v2965 = vld [vmem:[%s5 + $0x198] sm:$0xff]
  %v2966 = vld [vmem:[%s5 + $0x1a0] sm:$0xff]
  %v2967 = vld [vmem:[%s5 + $0x1a8] sm:$0xff]
  %v2968 = vld [vmem:[%s5 + $0x1b0] sm:$0xff]
  %v2969 = vld [vmem:[%s5 + $0x1b8] sm:$0xff]
  %v2970 = vld [vmem:[%s5 + $0x1c0] sm:$0xff]
  %v2971 = vld [vmem:[%s5 + $0x1c8] sm:$0xff]
  %v2972 = vld [vmem:[%s5 + $0x1d0] sm:$0xff]
  %v2973 = vld [vmem:[%s5 + $0x1d8] sm:$0xff]
  %v2974 = vld [vmem:[%s5 + $0x1e0] sm:$0xff]
  %v2975 = vld [vmem:[%s5 + $0x1e8] sm:$0xff]
  %v2976 = vld [vmem:[%s5 + $0x1f0] sm:$0xff]
  %v2977 = vld [vmem:[%s5 + $0x1f8] sm:$0xff]
  %v2978 = vld [vmem:[%s6] sm:$0x3]
  %v2980 = vlaneseq
  %v2981 = vshrl.u32 %v2980, 7
  %v2982 = vsub.s32 0, %v2981
  %v2983 = vrot.slane %v2978, %v2982
  %v2984 = vlaneseq
  %v2985 = vshrl.u32 %v2984, 7
  %v2986 = vsub.s32 1, %v2985
  %v2987 = vrot.slane %v2978, %v2986
  %v3054 = vunpack.c.l.b16 %v2914
  %v3055 = vunpack.c.h.b16 %v2914
  %v3056 = vunpack.c.l.b16 %v2915
  %v3057 = vunpack.c.h.b16 %v2915
  %v3058 = vunpack.c.l.b16 %v2916
  %v3059 = vunpack.c.h.b16 %v2916
  %v3060 = vunpack.c.l.b16 %v2917
  %v3061 = vunpack.c.h.b16 %v2917
  %v3062 = vunpack.c.l.b16 %v2918
  %v3063 = vunpack.c.h.b16 %v2918
  %v3064 = vunpack.c.l.b16 %v2919
  %v3065 = vunpack.c.h.b16 %v2919
  %v3066 = vunpack.c.l.b16 %v2920
  %v3067 = vunpack.c.h.b16 %v2920
  %v3068 = vunpack.c.l.b16 %v2921
  %v3069 = vunpack.c.h.b16 %v2921
  %v3070 = vunpack.c.l.b16 %v2922
  %v3071 = vunpack.c.h.b16 %v2922
  %v3072 = vunpack.c.l.b16 %v2923
  %v3073 = vunpack.c.h.b16 %v2923
  %v3074 = vunpack.c.l.b16 %v2924
  %v3075 = vunpack.c.h.b16 %v2924
  %v3076 = vunpack.c.l.b16 %v2925
  %v3077 = vunpack.c.h.b16 %v2925
  %v3078 = vunpack.c.l.b16 %v2926
  %v3079 = vunpack.c.h.b16 %v2926
  %v3080 = vunpack.c.l.b16 %v2927
  %v3081 = vunpack.c.h.b16 %v2927
  %v3082 = vunpack.c.l.b16 %v2928
  %v3083 = vunpack.c.h.b16 %v2928
  %v3084 = vunpack.c.l.b16 %v2929
  %v3085 = vunpack.c.h.b16 %v2929
  %v3086 = vunpack.c.l.b16 %v2930
  %v3087 = vunpack.c.h.b16 %v2930
  %v3088 = vunpack.c.l.b16 %v2931
  %v3089 = vunpack.c.h.b16 %v2931
  %v3090 = vunpack.c.l.b16 %v2932
  %v3091 = vunpack.c.h.b16 %v2932
  %v3092 = vunpack.c.l.b16 %v2933
  %v3093 = vunpack.c.h.b16 %v2933
  %v3094 = vunpack.c.l.b16 %v2934
  %v3095 = vunpack.c.h.b16 %v2934
  %v3096 = vunpack.c.l.b16 %v2935
  %v3097 = vunpack.c.h.b16 %v2935
  %v3098 = vunpack.c.l.b16 %v2936
  %v3099 = vunpack.c.h.b16 %v2936
  %v3100 = vunpack.c.l.b16 %v2937
  %v3101 = vunpack.c.h.b16 %v2937
  %v3102 = vunpack.c.l.b16 %v2938
  %v3103 = vunpack.c.h.b16 %v2938
  %v3104 = vunpack.c.l.b16 %v2939
  %v3105 = vunpack.c.h.b16 %v2939
  %v3106 = vunpack.c.l.b16 %v2940
  %v3107 = vunpack.c.h.b16 %v2940
  %v3108 = vunpack.c.l.b16 %v2941
  %v3109 = vunpack.c.h.b16 %v2941
  %v3110 = vunpack.c.l.b16 %v2942
  %v3111 = vunpack.c.h.b16 %v2942
  %v3112 = vunpack.c.l.b16 %v2943
  %v3113 = vunpack.c.h.b16 %v2943
  %v3114 = vunpack.c.l.b16 %v2944
  %v3115 = vunpack.c.h.b16 %v2944
  %v3116 = vunpack.c.l.b16 %v2945
  %v3117 = vunpack.c.h.b16 %v2945
  %v3118 = vunpack.c.l.b16 %v2946
  %v3119 = vunpack.c.h.b16 %v2946
  %v3120 = vunpack.c.l.b16 %v2947
  %v3121 = vunpack.c.h.b16 %v2947
  %v3122 = vunpack.c.l.b16 %v2948
  %v3123 = vunpack.c.h.b16 %v2948
  %v3124 = vunpack.c.l.b16 %v2949
  %v3125 = vunpack.c.h.b16 %v2949
  %v3126 = vunpack.c.l.b16 %v2950
  %v3127 = vunpack.c.h.b16 %v2950
  %v3128 = vunpack.c.l.b16 %v2951
  %v3129 = vunpack.c.h.b16 %v2951
  %v3130 = vunpack.c.l.b16 %v2952
  %v3131 = vunpack.c.h.b16 %v2952
  %v3132 = vunpack.c.l.b16 %v2953
  %v3133 = vunpack.c.h.b16 %v2953
  %v3134 = vunpack.c.l.b16 %v2954
  %v3135 = vunpack.c.h.b16 %v2954
  %v3136 = vunpack.c.l.b16 %v2955
  %v3137 = vunpack.c.h.b16 %v2955
  %v3138 = vunpack.c.l.b16 %v2956
  %v3139 = vunpack.c.h.b16 %v2956
  %v3140 = vunpack.c.l.b16 %v2957
  %v3141 = vunpack.c.h.b16 %v2957
  %v3142 = vunpack.c.l.b16 %v2958
  %v3143 = vunpack.c.h.b16 %v2958
  %v3144 = vunpack.c.l.b16 %v2959
  %v3145 = vunpack.c.h.b16 %v2959
  %v3146 = vunpack.c.l.b16 %v2960
  %v3147 = vunpack.c.h.b16 %v2960
  %v3148 = vunpack.c.l.b16 %v2961
  %v3149 = vunpack.c.h.b16 %v2961
  %v3150 = vunpack.c.l.b16 %v2962
  %v3151 = vunpack.c.h.b16 %v2962
  %v3152 = vunpack.c.l.b16 %v2963
  %v3153 = vunpack.c.h.b16 %v2963
  %v3154 = vunpack.c.l.b16 %v2964
  %v3155 = vunpack.c.h.b16 %v2964
  %v3156 = vunpack.c.l.b16 %v2965
  %v3157 = vunpack.c.h.b16 %v2965
  %v3158 = vunpack.c.l.b16 %v2966
  %v3159 = vunpack.c.h.b16 %v2966
  %v3160 = vunpack.c.l.b16 %v2967
  %v3161 = vunpack.c.h.b16 %v2967
  %v3162 = vunpack.c.l.b16 %v2968
  %v3163 = vunpack.c.h.b16 %v2968
  %v3164 = vunpack.c.l.b16 %v2969
  %v3165 = vunpack.c.h.b16 %v2969
  %v3166 = vunpack.c.l.b16 %v2970
  %v3167 = vunpack.c.h.b16 %v2970
  %v3168 = vunpack.c.l.b16 %v2971
  %v3169 = vunpack.c.h.b16 %v2971
  %v3170 = vunpack.c.l.b16 %v2972
  %v3171 = vunpack.c.h.b16 %v2972
  %v3172 = vunpack.c.l.b16 %v2973
  %v3173 = vunpack.c.h.b16 %v2973
  %v3174 = vunpack.c.l.b16 %v2974
  %v3175 = vunpack.c.h.b16 %v2974
  %v3176 = vunpack.c.l.b16 %v2975
  %v3177 = vunpack.c.h.b16 %v2975
  %v3178 = vunpack.c.l.b16 %v2976
  %v3179 = vunpack.c.h.b16 %v2976
  %v3180 = vunpack.c.l.b16 %v2977
  %v3181 = vunpack.c.h.b16 %v2977
  %v3182 = vpack.c.b16 %v3056, %v3054
  %v3183 = vpack.c.b16 %v3057, %v3055
  %v3184 = vpack.c.b16 %v3060, %v3058
  %v3185 = vpack.c.b16 %v3061, %v3059
  %v3186 = vpack.c.b16 %v3064, %v3062
  %v3187 = vpack.c.b16 %v3065, %v3063
  %v3188 = vpack.c.b16 %v3068, %v3066
  %v3189 = vpack.c.b16 %v3069, %v3067
  %v3190 = vpack.c.b16 %v3072, %v3070
  %v3191 = vpack.c.b16 %v3073, %v3071
  %v3192 = vpack.c.b16 %v3076, %v3074
  %v3193 = vpack.c.b16 %v3077, %v3075
  %v3194 = vpack.c.b16 %v3080, %v3078
  %v3195 = vpack.c.b16 %v3081, %v3079
  %v3196 = vpack.c.b16 %v3084, %v3082
  %v3197 = vpack.c.b16 %v3085, %v3083
  %v3198 = vpack.c.b16 %v3088, %v3086
  %v3199 = vpack.c.b16 %v3089, %v3087
  %v3200 = vpack.c.b16 %v3092, %v3090
  %v3201 = vpack.c.b16 %v3093, %v3091
  %v3202 = vpack.c.b16 %v3096, %v3094
  %v3203 = vpack.c.b16 %v3097, %v3095
  %v3204 = vpack.c.b16 %v3100, %v3098
  %v3205 = vpack.c.b16 %v3101, %v3099
  %v3206 = vpack.c.b16 %v3104, %v3102
  %v3207 = vpack.c.b16 %v3105, %v3103
  %v3208 = vpack.c.b16 %v3108, %v3106
  %v3209 = vpack.c.b16 %v3109, %v3107
  %v3210 = vpack.c.b16 %v3112, %v3110
  %v3211 = vpack.c.b16 %v3113, %v3111
  %v3212 = vpack.c.b16 %v3116, %v3114
  %v3213 = vpack.c.b16 %v3117, %v3115
  %v3214 = vpack.c.b16 %v3120, %v3118
  %v3215 = vpack.c.b16 %v3121, %v3119
  %v3216 = vpack.c.b16 %v3124, %v3122
  %v3217 = vpack.c.b16 %v3125, %v3123
  %v3218 = vpack.c.b16 %v3128, %v3126
  %v3219 = vpack.c.b16 %v3129, %v3127
  %v3220 = vpack.c.b16 %v3132, %v3130
  %v3221 = vpack.c.b16 %v3133, %v3131
  %v3222 = vpack.c.b16 %v3136, %v3134
  %v3223 = vpack.c.b16 %v3137, %v3135
  %v3224 = vpack.c.b16 %v3140, %v3138
  %v3225 = vpack.c.b16 %v3141, %v3139
  %v3226 = vpack.c.b16 %v3144, %v3142
  %v3227 = vpack.c.b16 %v3145, %v3143
  %v3228 = vpack.c.b16 %v3148, %v3146
  %v3229 = vpack.c.b16 %v3149, %v3147
  %v3230 = vpack.c.b16 %v3152, %v3150
  %v3231 = vpack.c.b16 %v3153, %v3151
  %v3232 = vpack.c.b16 %v3156, %v3154
  %v3233 = vpack.c.b16 %v3157, %v3155
  %v3234 = vpack.c.b16 %v3160, %v3158
  %v3235 = vpack.c.b16 %v3161, %v3159
  %v3236 = vpack.c.b16 %v3164, %v3162
  %v3237 = vpack.c.b16 %v3165, %v3163
  %v3238 = vpack.c.b16 %v3168, %v3166
  %v3239 = vpack.c.b16 %v3169, %v3167
  %v3240 = vpack.c.b16 %v3172, %v3170
  %v3241 = vpack.c.b16 %v3173, %v3171
  %v3242 = vpack.c.b16 %v3176, %v3174
  %v3243 = vpack.c.b16 %v3177, %v3175
  %v3244 = vpack.c.b16 %v3180, %v3178
  %v3245 = vpack.c.b16 %v3181, %v3179
  %3310 = vmatprep.subr.bf16.mxu0 %v3197
  %3311 = vmatpush1.bf16.msra.mxu0 %v3196
  %3312 = vmatprep.subr.bf16.mxu0 %v3195
  %3313 = vmatpush1.bf16.msra.mxu0 %v3194
  %3314 = vmatprep.subr.bf16.mxu0 %v3193
  %3315 = vmatpush1.bf16.msra.mxu0 %v3192
  %3316 = vmatprep.subr.bf16.mxu0 %v3191
  %3317 = vmatpush1.bf16.msra.mxu0 %v3190
  %3318 = vmatprep.subr.bf16.mxu0 %v3189
  %3319 = vmatpush1.bf16.msra.mxu0 %v3188
  %3320 = vmatprep.subr.bf16.mxu0 %v3187
  %3321 = vmatpush1.bf16.msra.mxu0 %v3186
  %3322 = vmatprep.subr.bf16.mxu0 %v3185
  %3323 = vmatpush1.bf16.msra.mxu0 %v3184
  %3324 = vmatprep.subr.bf16.mxu0 %v3183
  %3325 = vmatpush1.bf16.msra.mxu0 %v3182
  %3326 = vmatprep.subr.bf16.mxu0 %v3213
  %3327 = vmatpush2.bf16.msra.mxu0 %v3212
  %3328 = vmatprep.subr.bf16.mxu0 %v3211
  %3329 = vmatpush2.bf16.msra.mxu0 %v3210
  %3330 = vmatprep.subr.bf16.mxu0 %v3209
  %3331 = vmatpush2.bf16.msra.mxu0 %v3208
  %3332 = vmatprep.subr.bf16.mxu0 %v3207
  %3333 = vmatpush2.bf16.msra.mxu0 %v3206
  %3334 = vmatprep.subr.bf16.mxu0 %v3205
  %3335 = vmatpush2.bf16.msra.mxu0 %v3204
  %3336 = vmatprep.subr.bf16.mxu0 %v3203
  %3337 = vmatpush2.bf16.msra.mxu0 %v3202
  %3338 = vmatprep.subr.bf16.mxu0 %v3201
  %3339 = vmatpush2.bf16.msra.mxu0 %v3200
  %3340 = vmatprep.subr.bf16.mxu0 %v3199
  %3341 = vmatpush2.bf16.msra.mxu0 %v3198
  %3342 = vmatprep.mubr.bf16.mxu0 %v2911
  %3343 = vmatmul.mubr.bf16.gmra.mxu0 %v2910
  %v3344 = vpop.f32.mrf.mxu0
  %v3345 = vadd.f32 %v2983, %v3344
  %v3346 = vpop.f32.mrf.mxu0
  %v3347 = vadd.f32 %v2987, %v3346
  %v3348 = vpop.f32.mrf.mxu0
  %v3349 = vpop.f32.mrf.mxu0
  %3350 = vdwg.mxu0
  %3351 = vmatprep.subr.bf16.mxu0 %v3229
  %3352 = vmatpush1.bf16.msra.mxu0 %v3228
  %3353 = vmatprep.subr.bf16.mxu0 %v3227
  %3354 = vmatpush1.bf16.msra.mxu0 %v3226
  %3355 = vmatprep.subr.bf16.mxu0 %v3225
  %3356 = vmatpush1.bf16.msra.mxu0 %v3224
  %3357 = vmatprep.subr.bf16.mxu0 %v3223
  %3358 = vmatpush1.bf16.msra.mxu0 %v3222
  %3359 = vmatprep.subr.bf16.mxu0 %v3221
  %3360 = vmatpush1.bf16.msra.mxu0 %v3220
  %3361 = vmatprep.subr.bf16.mxu0 %v3219
  %3362 = vmatpush1.bf16.msra.mxu0 %v3218
  %3363 = vmatprep.subr.bf16.mxu0 %v3217
  %3364 = vmatpush1.bf16.msra.mxu0 %v3216
  %3365 = vmatprep.subr.bf16.mxu0 %v3215
  %3366 = vmatpush1.bf16.msra.mxu0 %v3214
  %3367 = vmatprep.subr.bf16.mxu0 %v3245
  %3368 = vmatpush2.bf16.msra.mxu0 %v3244
  %3369 = vmatprep.subr.bf16.mxu0 %v3243
  %3370 = vmatpush2.bf16.msra.mxu0 %v3242
  %3371 = vmatprep.subr.bf16.mxu0 %v3241
  %3372 = vmatpush2.bf16.msra.mxu0 %v3240
  %3373 = vmatprep.subr.bf16.mxu0 %v3239
  %3374 = vmatpush2.bf16.msra.mxu0 %v3238
  %3375 = vmatprep.subr.bf16.mxu0 %v3237
  %3376 = vmatpush2.bf16.msra.mxu0 %v3236
  %3377 = vmatprep.subr.bf16.mxu0 %v3235
  %3378 = vmatpush2.bf16.msra.mxu0 %v3234
  %3379 = vmatprep.subr.bf16.mxu0 %v3233
  %3380 = vmatpush2.bf16.msra.mxu0 %v3232
  %3381 = vmatprep.subr.bf16.mxu0 %v3231
  %3382 = vmatpush2.bf16.msra.mxu0 %v3230
  %3383 = vmatprep.mubr.bf16.mxu0 %v2913
  %3384 = vmatmul.mubr.bf16.gmra.mxu0 %v2912
  %v3385 = vpop.f32.mrf.mxu0
  %v3386 = vadd.f32 %v3345, %v3385
  %v3387 = vpop.f32.mrf.mxu0
  %v3388 = vadd.f32 %v3347, %v3387
  %v3389 = vpop.f32.mrf.mxu0
  %v3390 = vpop.f32.mrf.mxu0
  %3391 = vdwg.mxu0
  %3392 = vst [vmem:[%s7] sm:$0xff] %v3386
  %3393 = vst [vmem:[%s7 + $0x8] sm:$0xff] %v3388
  // Predicated region
  $region30: #{global_block_forward.4} parent=0 // pred_check
    _
  $region31: #{global_block_forward.4} parent=0 // pred_check_branch
    %3395 = sbr.rel (0) target = $region33
  $region32: #{global_block_forward.4} parent=0 // pred_region
    _
  $region33: #{global_block_forward.4} parent=0 // pred_fallthru
    _
  // Predicated region
  $region34: #{global_block_forward.4} parent=0 // pred_check
    _
  $region35: #{global_block_forward.4} parent=0 // pred_check_branch
    %3397 = sbr.rel (0) target = $region37
  $region36: #{global_block_forward.4} parent=0 // pred_region
    _
  $region37: #{global_block_forward.4} parent=0 // pred_fallthru
    _

</llo_original>
